<compile_context>
chip_gen: v5e
topology: v5e:2x2
jax: 0.10.0
libtpu: 0.0.40
codegen_flags: <defaults>
</compile_context>

<pallas_src>
import jax
import jax.numpy as jnp
from jax.experimental import pallas as pl
from jax.experimental.pallas import tpu as pltpu

FEATURE = 64        # input node-feature size
HIDDEN = 512        # ChebConv / BN hidden width (fixed by the module)
OUT_CHANNEL = 16    # final output channels
N_NODES = 16        # nodes per graph
BLOCK_GRAPHS = 4    # graphs per grid step (BM = 64 rows per branch per step)

PARAM_ORDER = (
    "w1", "b1",          # [branch1 | branch2] layer-1, (64,1024)/(1,1024), BN+bias folded
    "w2", "b2",          # [branch1 | branch2] layer-2, (512,1024)/(1,1024)
    "wf1a", "wf1b", "bf1",   # feature_layer Linear(1024,512), split by branch
    "wf2", "bf2",        # feature_layer Linear(512,out_channel)
)


def chebynet1_kernel(
    x1_ref, x2_ref,
    w1_ref, b1_ref,
    w2_ref, b2_ref,
    wf1a_ref, wf1b_ref, bf1_ref,
    wf2_ref, bf2_ref,
    out_ref,
):
    bm = x1_ref.shape[0]  # rows per branch in this block (static)

    # Cast in-kernel (inputs arrive as f32); merge both branches into one MXU issue.
    x = jnp.concatenate([x1_ref[...], x2_ref[...]], axis=0).astype(jnp.bfloat16)  # (2*BM, 64)

    # Layer 1: [x1; x2] @ [w11 | w12].  Wanted results are the diagonal blocks:
    #   rows [0:BM]   x cols [0:512]    = x1 @ w11
    #   rows [BM:2BM] x cols [512:1024] = x2 @ w12
    h = jnp.dot(x, w1_ref[...], preferred_element_type=jnp.float32) + b1_ref[...]
    h = jnp.maximum(h, 0.0)
    hcat = jnp.concatenate(
        [h[:bm, :HIDDEN], h[bm:, HIDDEN:]], axis=0
    ).astype(jnp.bfloat16)                                                       # (2*BM, 512)

    # Layer 2, same diagonal-block trick with [w21 | w22].
    g = jnp.dot(hcat, w2_ref[...], preferred_element_type=jnp.float32) + b2_ref[...]
    g = jnp.maximum(g, 0.0)
    g1 = g[:bm, :HIDDEN].astype(jnp.bfloat16)   # fc1_1 == identity
    g2 = g[bm:, HIDDEN:].astype(jnp.bfloat16)   # fc1_2 == identity

    # feature_layer: cat([g1, g2], dim=1) @ Wf1  ==  g1 @ Wf1[:512] + g2 @ Wf1[512:]
    f = (jnp.dot(g1, wf1a_ref[...], preferred_element_type=jnp.float32)
         + jnp.dot(g2, wf1b_ref[...], preferred_element_type=jnp.float32)
         + bf1_ref[...])
    f = jnp.maximum(f, 0.0).astype(jnp.bfloat16)  # Dropout(0.2) == identity (eval)
    out_ref[...] = (jnp.dot(f, wf2_ref[...], preferred_element_type=jnp.float32)
                    + bf2_ref[...])


def chebynet1_forward(x1, x2, params, *, block_graphs=BLOCK_GRAPHS):
    """x1, x2: (B*N_NODES, FEATURE) f32 node features for B graphs per branch."""
    assert x1.shape == x2.shape and x1.shape[1] == FEATURE
    n_rows = x1.shape[0]
    bm = block_graphs * N_NODES
    n_blocks = pl.cdiv(n_rows, bm)
    padded = n_blocks * bm
    if padded != n_rows:
        x1 = jnp.pad(x1, ((0, padded - n_rows), (0, 0)))
        x2 = jnp.pad(x2, ((0, padded - n_rows), (0, 0)))

    const = lambda g: (0, 0)  # weights: same block every step -> DMA'd once, VMEM-resident
    in_specs = [
        pl.BlockSpec((bm, FEATURE), lambda g: (g, 0)),            # x1 block
        pl.BlockSpec((bm, FEATURE), lambda g: (g, 0)),            # x2 block
        pl.BlockSpec((FEATURE, 2 * HIDDEN), const),               # w1  [b1|b2]
        pl.BlockSpec((1, 2 * HIDDEN), const),                     # b1
        pl.BlockSpec((HIDDEN, 2 * HIDDEN), const),                # w2  [b1|b2]
        pl.BlockSpec((1, 2 * HIDDEN), const),                     # b2
        pl.BlockSpec((HIDDEN, HIDDEN), const),                    # wf1a
        pl.BlockSpec((HIDDEN, HIDDEN), const),                    # wf1b
        pl.BlockSpec((1, HIDDEN), const),                         # bf1
        pl.BlockSpec((HIDDEN, OUT_CHANNEL), const),               # wf2
        pl.BlockSpec((1, OUT_CHANNEL), const),                    # bf2
    ]
    out_spec = pl.BlockSpec((bm, OUT_CHANNEL), lambda g: (g, 0))

    out = pl.pallas_call(
        chebynet1_kernel,
        out_shape=jax.ShapeDtypeStruct((padded, OUT_CHANNEL), jnp.float32),
        grid_spec=pltpu.PrefetchScalarGridSpec(
            num_scalar_prefetch=0,
            grid=(n_blocks,),
            in_specs=in_specs,
            out_specs=out_spec,
        ),
        compiler_params=pltpu.CompilerParams(
            dimension_semantics=("parallel",),      # v7x: split batch across TensorCores
            vmem_limit_bytes=16 * 1024 * 1024,
        ),
    )(x1, x2, *[params[k] for k in PARAM_ORDER])
    return out[:n_rows]


def make_params(key):
    """Deterministic synthetic parameters; BN folded in f32, weights cast to bf16 last."""
    ks = iter(jax.random.split(key, 32))
    eps = 1e-5

    def linear(kin, kout, scale=0.05):
        w = jax.random.normal(next(ks), (kin, kout), jnp.float32) * scale
        b = jax.random.normal(next(ks), (1, kout), jnp.float32) * 0.01
        return w, b

    def bn(d):
        gamma = 1.0 + 0.1 * jax.random.normal(next(ks), (1, d), jnp.float32)
        beta = 0.05 * jax.random.normal(next(ks), (1, d), jnp.float32)
        mean = 0.05 * jax.random.normal(next(ks), (1, d), jnp.float32)
        var = 1.0 + 0.1 * jax.random.uniform(next(ks), (1, d), jnp.float32)
        scale = gamma / jnp.sqrt(var + eps)
        shift = beta - mean * scale
        return scale, shift

    def fold(w, b, s, t):
        # y = (x@w + b)*s + t == x@(w*s) + (b*s + t); keep in f32, cast later.
        return w * s, b * s + t

    w11, b11 = fold(*linear(FEATURE, HIDDEN), *bn(HIDDEN))
    w21, b21 = fold(*linear(HIDDEN, HIDDEN), *bn(HIDDEN))
    w12, b12 = fold(*linear(FEATURE, HIDDEN), *bn(HIDDEN))
    w22, b22 = fold(*linear(HIDDEN, HIDDEN), *bn(HIDDEN))
    wf1, bf1 = linear(2 * HIDDEN, HIDDEN)
    wf2, bf2 = linear(HIDDEN, OUT_CHANNEL)

    # TODO(synk): for production, quantize the 512-wide weights per generation
    # (int8 on v5e/v6e, fp8 on v7x) and keep them resident across calls; bf16
    # is kept here for cross-generation correctness of this self-contained script.
    return {
        "w1": jnp.concatenate([w11, w12], axis=1).astype(jnp.bfloat16),
        "b1": jnp.concatenate([b11, b12], axis=1).astype(jnp.float32),
        "w2": jnp.concatenate([w21, w22], axis=1).astype(jnp.bfloat16),
        "b2": jnp.concatenate([b21, b22], axis=1).astype(jnp.float32),
        "wf1a": wf1[:HIDDEN, :].astype(jnp.bfloat16),
        "wf1b": wf1[HIDDEN:, :].astype(jnp.bfloat16),
        "bf1": bf1.astype(jnp.float32),
        "wf2": wf2.astype(jnp.bfloat16),
        "bf2": bf2.astype(jnp.float32),
    }


def reference_forward(x1, x2, p):
    """Pure-JAX reference with the two branches computed separately (un-merged)."""
    x1 = x1.astype(jnp.bfloat16)
    x2 = x2.astype(jnp.bfloat16)
    H = HIDDEN

    def branch(x, w1, b1, w2, b2):
        h = jnp.maximum(jnp.dot(x, w1, preferred_element_type=jnp.float32) + b1,
                        0.0).astype(jnp.bfloat16)
        h = jnp.maximum(jnp.dot(h, w2, preferred_element_type=jnp.float32) + b2,
                        0.0).astype(jnp.bfloat16)
        return h

    h1 = branch(x1, p["w1"][:, :H], p["b1"][:, :H], p["w2"][:, :H], p["b2"][:, :H])
    h2 = branch(x2, p["w1"][:, H:], p["b1"][:, H:], p["w2"][:, H:], p["b2"][:, H:])
    f = jnp.maximum(
        jnp.dot(h1, p["wf1a"], preferred_element_type=jnp.float32)
        + jnp.dot(h2, p["wf1b"], preferred_element_type=jnp.float32)
        + p["bf1"], 0.0).astype(jnp.bfloat16)
    return jnp.dot(f, p["wf2"], preferred_element_type=jnp.float32) + p["bf2"]


if __name__ == "__main__":
    key = jax.random.PRNGKey(0)
    k_x1, k_x2, k_p = jax.random.split(key, 3)

    # 8 graphs per branch, stacked along rows: (8*16, 64) node features each.
    B_GRAPHS = 8
    rows = B_GRAPHS * N_NODES
    x1 = jax.random.normal(k_x1, (rows, FEATURE), jnp.float32)
    x2 = jax.random.normal(k_x2, (rows, FEATURE), jnp.float32)

    # edge_index / edge_attr are part of the PyTorch Data objects but are
    # mathematically unused for ChebConv with K=1 (only T_0 = I is applied).
    edge_index = jnp.stack([jnp.arange(rows), jnp.roll(jnp.arange(rows), 1)])
    edge_attr = jnp.ones((rows,), jnp.float32)
    del edge_index, edge_attr  # not consumed by the K=1 kernel

    params = make_params(k_p)

    out = jax.block_until_ready(chebynet1_forward(x1, x2, params))
    ref = reference_forward(x1, x2, params)

    assert out.shape == (rows, OUT_CHANNEL)
    assert jnp.allclose(out, ref, atol=1e-2, rtol=1e-2), "mismatch vs reference"

    print("KERNEL_OK")
</pallas_src>

<mosaic_0001>
module attributes {stable_mosaic.version = 11 : i64} {
  func.func @chebynet1_kernel(%arg0: i32, %arg1: memref<64x64xf32, #tpu.memory_space<vmem>>, %arg2: memref<64x64xf32, #tpu.memory_space<vmem>>, %arg3: memref<64x1024xbf16, #tpu.memory_space<vmem>>, %arg4: memref<1x1024xf32, #tpu.memory_space<vmem>>, %arg5: memref<512x1024xbf16, #tpu.memory_space<vmem>>, %arg6: memref<1x1024xf32, #tpu.memory_space<vmem>>, %arg7: memref<512x512xbf16, #tpu.memory_space<vmem>>, %arg8: memref<512x512xbf16, #tpu.memory_space<vmem>>, %arg9: memref<1x512xf32, #tpu.memory_space<vmem>>, %arg10: memref<512x16xbf16, #tpu.memory_space<vmem>>, %arg11: memref<1x16xf32, #tpu.memory_space<vmem>>, %arg12: memref<64x16xf32, #tpu.memory_space<vmem>>) attributes {dimension_semantics = [#tpu.dimension_semantics<parallel>], iteration_bounds = array<i64: 2>, scalar_prefetch = 0 : i64, scratch_operands = 0 : i64, tpu.core_type = #tpu.core_type<tc>, window_params = [{transform_indices = @transform_0, window_bounds = array<i64: 64, 64>}, {transform_indices = @transform_1, window_bounds = array<i64: 64, 64>}, {pipeline_mode = #tpu.pipeline_mode<synchronous>, transform_indices = @transform_2, window_bounds = array<i64: 64, 1024>}, {pipeline_mode = #tpu.pipeline_mode<synchronous>, transform_indices = @transform_3, window_bounds = array<i64: 1, 1024>}, {pipeline_mode = #tpu.pipeline_mode<synchronous>, transform_indices = @transform_4, window_bounds = array<i64: 512, 1024>}, {pipeline_mode = #tpu.pipeline_mode<synchronous>, transform_indices = @transform_5, window_bounds = array<i64: 1, 1024>}, {pipeline_mode = #tpu.pipeline_mode<synchronous>, transform_indices = @transform_6, window_bounds = array<i64: 512, 512>}, {pipeline_mode = #tpu.pipeline_mode<synchronous>, transform_indices = @transform_7, window_bounds = array<i64: 512, 512>}, {pipeline_mode = #tpu.pipeline_mode<synchronous>, transform_indices = @transform_8, window_bounds = array<i64: 1, 512>}, {pipeline_mode = #tpu.pipeline_mode<synchronous>, transform_indices = @transform_9, window_bounds = array<i64: 512, 16>}, {pipeline_mode = #tpu.pipeline_mode<synchronous>, transform_indices = @transform_10, window_bounds = array<i64: 1, 16>}, {transform_indices = @transform_11, window_bounds = array<i64: 64, 16>}]} {
    %c0 = arith.constant 0 : index
    %c0_0 = arith.constant 0 : index
    %0 = vector.load %arg1[%c0, %c0_0] : memref<64x64xf32, #tpu.memory_space<vmem>>, vector<64x64xf32>
    %c0_1 = arith.constant 0 : index
    %c0_2 = arith.constant 0 : index
    %1 = vector.load %arg2[%c0_1, %c0_2] : memref<64x64xf32, #tpu.memory_space<vmem>>, vector<64x64xf32>
    %2 = tpu.concatenate %0, %1 in 0 : vector<64x64xf32>, vector<64x64xf32> -> vector<128x64xf32>
    %3 = arith.truncf %2 : vector<128x64xf32> to vector<128x64xbf16>
    %c0_3 = arith.constant 0 : index
    %c0_4 = arith.constant 0 : index
    %4 = vector.load %arg3[%c0_3, %c0_4] : memref<64x1024xbf16, #tpu.memory_space<vmem>>, vector<64x1024xbf16>
    %cst = arith.constant dense<0.000000e+00> : vector<128x1024xf32>
    %5 = tpu.matmul %3, %4, %cst {dimension_numbers = #tpu.dot_dimension_numbers<[1], [0], [0], [1], [0, 0, 1, 1], [], []>} : vector<128x64xbf16>, vector<64x1024xbf16>, vector<128x1024xf32> -> vector<128x1024xf32>
    %c0_5 = arith.constant 0 : index
    %c0_6 = arith.constant 0 : index
    %6 = vector.load %arg4[%c0_5, %c0_6] : memref<1x1024xf32, #tpu.memory_space<vmem>>, vector<1x1024xf32>
    %7 = vector.broadcast %6 : vector<1x1024xf32> to vector<128x1024xf32>
    %8 = arith.addf %5, %7 : vector<128x1024xf32>
    %cst_7 = arith.constant 0.000000e+00 : f32
    %9 = vector.broadcast %cst_7 : f32 to vector<128x1024xf32>
    %10 = arith.maximumf %8, %9 : vector<128x1024xf32>
    %11 = vector.extract_strided_slice %10 {offsets = [0, 0], sizes = [64, 512], strides = [1, 1]} : vector<128x1024xf32> to vector<64x512xf32>
    %12 = vector.extract_strided_slice %10 {offsets = [64, 512], sizes = [64, 512], strides = [1, 1]} : vector<128x1024xf32> to vector<64x512xf32>
    %13 = tpu.concatenate %11, %12 in 0 : vector<64x512xf32>, vector<64x512xf32> -> vector<128x512xf32>
    %14 = arith.truncf %13 : vector<128x512xf32> to vector<128x512xbf16>
    %c0_8 = arith.constant 0 : index
    %c0_9 = arith.constant 0 : index
    %15 = vector.load %arg5[%c0_8, %c0_9] : memref<512x1024xbf16, #tpu.memory_space<vmem>>, vector<512x1024xbf16>
    %cst_10 = arith.constant dense<0.000000e+00> : vector<128x1024xf32>
    %16 = tpu.matmul %14, %15, %cst_10 {dimension_numbers = #tpu.dot_dimension_numbers<[1], [0], [0], [1], [0, 0, 1, 1], [], []>} : vector<128x512xbf16>, vector<512x1024xbf16>, vector<128x1024xf32> -> vector<128x1024xf32>
    %c0_11 = arith.constant 0 : index
    %c0_12 = arith.constant 0 : index
    %17 = vector.load %arg6[%c0_11, %c0_12] : memref<1x1024xf32, #tpu.memory_space<vmem>>, vector<1x1024xf32>
    %18 = vector.broadcast %17 : vector<1x1024xf32> to vector<128x1024xf32>
    %19 = arith.addf %16, %18 : vector<128x1024xf32>
    %cst_13 = arith.constant 0.000000e+00 : f32
    %20 = vector.broadcast %cst_13 : f32 to vector<128x1024xf32>
    %21 = arith.maximumf %19, %20 : vector<128x1024xf32>
    %22 = vector.extract_strided_slice %21 {offsets = [0, 0], sizes = [64, 512], strides = [1, 1]} : vector<128x1024xf32> to vector<64x512xf32>
    %23 = arith.truncf %22 : vector<64x512xf32> to vector<64x512xbf16>
    %24 = vector.extract_strided_slice %21 {offsets = [64, 512], sizes = [64, 512], strides = [1, 1]} : vector<128x1024xf32> to vector<64x512xf32>
    %25 = arith.truncf %24 : vector<64x512xf32> to vector<64x512xbf16>
    %c0_14 = arith.constant 0 : index
    %c0_15 = arith.constant 0 : index
    %26 = vector.load %arg7[%c0_14, %c0_15] : memref<512x512xbf16, #tpu.memory_space<vmem>>, vector<512x512xbf16>
    %cst_16 = arith.constant dense<0.000000e+00> : vector<64x512xf32>
    %27 = tpu.matmul %23, %26, %cst_16 {dimension_numbers = #tpu.dot_dimension_numbers<[1], [0], [0], [1], [0, 0, 1, 1], [], []>} : vector<64x512xbf16>, vector<512x512xbf16>, vector<64x512xf32> -> vector<64x512xf32>
    %c0_17 = arith.constant 0 : index
    %c0_18 = arith.constant 0 : index
    %28 = vector.load %arg8[%c0_17, %c0_18] : memref<512x512xbf16, #tpu.memory_space<vmem>>, vector<512x512xbf16>
    %cst_19 = arith.constant dense<0.000000e+00> : vector<64x512xf32>
    %29 = tpu.matmul %25, %28, %cst_19 {dimension_numbers = #tpu.dot_dimension_numbers<[1], [0], [0], [1], [0, 0, 1, 1], [], []>} : vector<64x512xbf16>, vector<512x512xbf16>, vector<64x512xf32> -> vector<64x512xf32>
    %30 = arith.addf %27, %29 : vector<64x512xf32>
    %c0_20 = arith.constant 0 : index
    %c0_21 = arith.constant 0 : index
    %31 = vector.load %arg9[%c0_20, %c0_21] : memref<1x512xf32, #tpu.memory_space<vmem>>, vector<1x512xf32>
    %32 = vector.broadcast %31 : vector<1x512xf32> to vector<64x512xf32>
    %33 = arith.addf %30, %32 : vector<64x512xf32>
    %cst_22 = arith.constant 0.000000e+00 : f32
    %34 = vector.broadcast %cst_22 : f32 to vector<64x512xf32>
    %35 = arith.maximumf %33, %34 : vector<64x512xf32>
    %36 = arith.truncf %35 : vector<64x512xf32> to vector<64x512xbf16>
    %c0_23 = arith.constant 0 : index
    %c0_24 = arith.constant 0 : index
    %37 = vector.load %arg10[%c0_23, %c0_24] : memref<512x16xbf16, #tpu.memory_space<vmem>>, vector<512x16xbf16>
    %cst_25 = arith.constant dense<0.000000e+00> : vector<64x16xf32>
    %38 = tpu.matmul %36, %37, %cst_25 {dimension_numbers = #tpu.dot_dimension_numbers<[1], [0], [0], [1], [0, 0, 1, 1], [], []>} : vector<64x512xbf16>, vector<512x16xbf16>, vector<64x16xf32> -> vector<64x16xf32>
    %c0_26 = arith.constant 0 : index
    %c0_27 = arith.constant 0 : index
    %39 = vector.load %arg11[%c0_26, %c0_27] : memref<1x16xf32, #tpu.memory_space<vmem>>, vector<1x16xf32>
    %40 = vector.broadcast %39 : vector<1x16xf32> to vector<64x16xf32>
    %41 = arith.addf %38, %40 : vector<64x16xf32>
    %c0_28 = arith.constant 0 : index
    %c0_29 = arith.constant 0 : index
    %42 = vector.load %arg12[%c0_28, %c0_29] : memref<64x16xf32, #tpu.memory_space<vmem>>, vector<64x16xf32>
    tpu.vector_store %arg12[%c0_28, %c0_29], %41 {strides = array<i32>} : memref<64x16xf32, #tpu.memory_space<vmem>>, vector<64x16xf32>,
    return
  }
  func.func @transform_0(%arg0: i32) -> (i32, i32) {
    %c0_i32 = arith.constant 0 : i32
    %c0_i32_0 = arith.constant 0 : i32
    return %arg0, %c0_i32 : i32, i32
  }
  func.func @transform_1(%arg0: i32) -> (i32, i32) {
    %c0_i32 = arith.constant 0 : i32
    %c0_i32_0 = arith.constant 0 : i32
    return %arg0, %c0_i32 : i32, i32
  }
  func.func @transform_2(%arg0: i32) -> (i32, i32) {
    %c0_i32 = arith.constant 0 : i32
    %c0_i32_0 = arith.constant 0 : i32
    %c0_i32_1 = arith.constant 0 : i32
    return %c0_i32, %c0_i32_0 : i32, i32
  }
  func.func @transform_3(%arg0: i32) -> (i32, i32) {
    %c0_i32 = arith.constant 0 : i32
    %c0_i32_0 = arith.constant 0 : i32
    %c0_i32_1 = arith.constant 0 : i32
    return %c0_i32, %c0_i32_0 : i32, i32
  }
  func.func @transform_4(%arg0: i32) -> (i32, i32) {
    %c0_i32 = arith.constant 0 : i32
    %c0_i32_0 = arith.constant 0 : i32
    %c0_i32_1 = arith.constant 0 : i32
    return %c0_i32, %c0_i32_0 : i32, i32
  }
  func.func @transform_5(%arg0: i32) -> (i32, i32) {
    %c0_i32 = arith.constant 0 : i32
    %c0_i32_0 = arith.constant 0 : i32
    %c0_i32_1 = arith.constant 0 : i32
    return %c0_i32, %c0_i32_0 : i32, i32
  }
  func.func @transform_6(%arg0: i32) -> (i32, i32) {
    %c0_i32 = arith.constant 0 : i32
    %c0_i32_0 = arith.constant 0 : i32
    %c0_i32_1 = arith.constant 0 : i32
    return %c0_i32, %c0_i32_0 : i32, i32
  }
  func.func @transform_7(%arg0: i32) -> (i32, i32) {
    %c0_i32 = arith.constant 0 : i32
    %c0_i32_0 = arith.constant 0 : i32
    %c0_i32_1 = arith.constant 0 : i32
    return %c0_i32, %c0_i32_0 : i32, i32
  }
  func.func @transform_8(%arg0: i32) -> (i32, i32) {
    %c0_i32 = arith.constant 0 : i32
    %c0_i32_0 = arith.constant 0 : i32
    %c0_i32_1 = arith.constant 0 : i32
    return %c0_i32, %c0_i32_0 : i32, i32
  }
  func.func @transform_9(%arg0: i32) -> (i32, i32) {
    %c0_i32 = arith.constant 0 : i32
    %c0_i32_0 = arith.constant 0 : i32
    %c0_i32_1 = arith.constant 0 : i32
    return %c0_i32, %c0_i32_0 : i32, i32
  }
  func.func @transform_10(%arg0: i32) -> (i32, i32) {
    %c0_i32 = arith.constant 0 : i32
    %c0_i32_0 = arith.constant 0 : i32
    %c0_i32_1 = arith.constant 0 : i32
    return %c0_i32, %c0_i32_0 : i32, i32
  }
  func.func @transform_11(%arg0: i32) -> (i32, i32) {
    %c0_i32 = arith.constant 0 : i32
    %c0_i32_0 = arith.constant 0 : i32
    return %arg0, %c0_i32 : i32, i32
  }
}

</mosaic_0001>

<llo_original>
// kernel: tpu_custom_call.1
$region0: #{tpu_custom_call.1}
  #allocation0 [shape = 'u32[]', space=smem, size = 0x4, offset = 0x4, fixed_abs, tag = 'smem constant byte address 0x4 - core index']
  #allocation1 [shape = 'u32[72,128]{1,0:T(1,128)}', space=vmem, size = 0x9000, scoped, tag = 'internal scratch']
  %s0 = inlined_call_operand.vmem [shape: f32[128,64], index: 0, kind: input, shape index: {}]
  %s1 = inlined_call_operand.vmem [shape: f32[128,64], index: 1, kind: input, shape index: {}]
  %s2 = inlined_call_operand.vmem [shape: bf16[64,1024], index: 2, kind: input, shape index: {}]
  %s3 = inlined_call_operand.vmem [shape: f32[1,1024], index: 3, kind: input, shape index: {}]
  %s4 = inlined_call_operand.hbm [shape: bf16[512,1024], index: 4, kind: input, shape index: {}]
  %s5 = inlined_call_operand.vmem [shape: f32[1,1024], index: 5, kind: input, shape index: {}]
  %s6 = inlined_call_operand.hbm [shape: bf16[512,512], index: 6, kind: input, shape index: {}]
  %s7 = inlined_call_operand.hbm [shape: bf16[512,512], index: 7, kind: input, shape index: {}]
  %s8 = inlined_call_operand.vmem [shape: f32[1,512], index: 8, kind: input, shape index: {}]
  %s9 = inlined_call_operand.vmem [shape: bf16[512,16], index: 9, kind: input, shape index: {}]
  %s10 = inlined_call_operand.vmem [shape: f32[1,16], index: 10, kind: input, shape index: {}]
  %s11 = inlined_call_operand.vmem [shape: f32[128,16], index: 11, kind: output, shape index: {}]
  %s12 = sld [smem:[#allocation0]]
  $region89: #{tpu_custom_call.1} parent=0
    _
  %s14 = ssub.s32 1, %s12
  %s15 = scalar_select 0, %s14, %s12
  $region1: #{tpu_custom_call.1} parent=0
    #allocation2 [shape = 'u8[1048576]{0}', space=vmem, size = 0x100000, scoped, tag = 'input window, operand 4, single buffered']
    #allocation3 [shape = 's32[2]{0}', space=sflag, size = 0x8, scoped, tag = 'scoped memory for tpu_custom_call.1']
    #allocation4 [shape = 'u8[524288]{0}', space=vmem, size = 0x80000, scoped, tag = 'input window, operand 6, single buffered']
    #allocation5 [shape = 's32[1]{0}', space=sflag, size = 0x4, scoped, tag = 'scoped memory for tpu_custom_call.1']
    #allocation6 [shape = 'u8[524288]{0}', space=vmem, size = 0x80000, scoped, tag = 'input window, operand 7, single buffered']
    %16 = vsyncpa [#allocation3], 0
    %17 = vsyncpa [#allocation5], 0
    loop: start=0, step=1, limit=4
    $region2: #{tpu_custom_call.1} parent=1 // loop_pre_header
      _
    $region3: #{tpu_custom_call.1} parent=1 // loop_header
      %s19 = sphi 0, %s23
      %p20 = scmp.ge.s32.totalorder %s19, 4
      %s29 = sphi 0, %s31
      %s32 = sphi 0, %s29
      %s33 = sphi 0, %s32
      %s49 = sphi 0, %s33
      %s55 = sphi 0, %s57
      %s58 = sphi 0, %s55
      %s59 = sphi 0, %s58
      %s75 = sphi 0, %s59
      %s79 = sphi 0, %s79
      %s81 = sphi 0, %s79
      %s82 = sphi 0, %s81
      %s96 = sphi 0, %s82
      %s100 = sphi 0, %s100
      %s102 = sphi 0, %s100
      %s103 = sphi 0, %s102
      %s117 = sphi 0, %s103
      %s121 = sphi 0, %s121
      %s123 = sphi 0, %s121
      %s124 = sphi 0, %s123
      %s138 = sphi 0, %s124
      %s142 = sphi 0, %s142
      %s144 = sphi 0, %s142
      %s145 = sphi 0, %s144
      %s159 = sphi 0, %s145
      %s163 = sphi 0, %s163
      %s165 = sphi 0, %s163
      %s166 = sphi 0, %s165
      %s180 = sphi 0, %s166
      %s184 = sphi 0, %s184
      %s186 = sphi 0, %s184
      %s187 = sphi 0, %s186
      %s201 = sphi 0, %s187
      %s205 = sphi 0, %s205
      %s207 = sphi 0, %s205
      %s208 = sphi 0, %s207
      %s222 = sphi 0, %s208
      %s226 = sphi 0, %s226
      %s228 = sphi 0, %s226
      %s229 = sphi 0, %s228
      %s243 = sphi 0, %s229
      %s247 = sphi 0, %s247
      %s249 = sphi 0, %s247
      %s250 = sphi 0, %s249
      %s264 = sphi 0, %s250
      %s270 = sphi 0, %s272
      %s273 = sphi 0, %s270
      %s274 = sphi 0, %s273
      %s290 = sphi 0, %s274
    $region4: #{tpu_custom_call.1} parent=1 // loop_header_branch
      %22 = sbr.rel (%p20) target = $region8
    $region5: #{tpu_custom_call.1} parent=1 // loop_body
      %s24 = ssub.s32 %s19, 1
      %s25 = ssub.s32 %s19, 2
      %s26 = sadd.s32 %s19, 1
      %s27 = ssub.s32 %s19, %s26
      %p28 = scmp.eq.s32.totalorder %s27, 0
      %s30 = sadd.s32 %s29, 1
      %s31 = scalar_select %p28, %s29, %s30
      %p34 = pneg %p28
      %p35 = scmp.eq.s32.totalorder %s19, 1
      %p36 = por %p34, %p35
      %p37 = scmp.ne.s32.totalorder %s29, %s32
      %p38 = scmp.eq.s32.totalorder %s19, 0
      %p39 = por %p37, %p38
      %p40 = scmp.ne.s32.totalorder %s29, %s32
      %p41 = scmp.eq.s32.totalorder %s24, 1
      %p42 = por %p40, %p41
      %p43 = scmp.ne.s32.totalorder %s32, %s33
      %p44 = scmp.eq.s32.totalorder %s24, 0
      %p45 = por %p43, %p44
      %p46 = scmp.ne.s32.totalorder %s32, %s33
      %p47 = scmp.eq.s32.totalorder %s25, 1
      %p48 = por %p46, %p47
      %p50 = scmp.ne.s32.totalorder %s33, %s49
      %p51 = scmp.eq.s32.totalorder %s25, 0
      %p52 = por %p50, %p51
      %s53 = ssub.s32 %s19, %s26
      %p54 = scmp.eq.s32.totalorder %s53, 0
      %s56 = sadd.s32 %s55, 1
      %s57 = scalar_select %p54, %s55, %s56
      %p60 = pneg %p54
      %p61 = scmp.eq.s32.totalorder %s19, 1
      %p62 = por %p60, %p61
      %p63 = scmp.ne.s32.totalorder %s55, %s58
      %p64 = scmp.eq.s32.totalorder %s19, 0
      %p65 = por %p63, %p64
      %p66 = scmp.ne.s32.totalorder %s55, %s58
      %p67 = scmp.eq.s32.totalorder %s24, 1
      %p68 = por %p66, %p67
      %p69 = scmp.ne.s32.totalorder %s58, %s59
      %p70 = scmp.eq.s32.totalorder %s24, 0
      %p71 = por %p69, %p70
      %p72 = scmp.ne.s32.totalorder %s58, %s59
      %p73 = scmp.eq.s32.totalorder %s25, 1
      %p74 = por %p72, %p73
      %p76 = scmp.ne.s32.totalorder %s59, %s75
      %p77 = scmp.eq.s32.totalorder %s25, 0
      %p78 = por %p76, %p77
      %s80 = sadd.s32 %s79, 1
      %p83 = scmp.eq.s32.totalorder %s19, 1
      %p84 = scmp.ne.s32.totalorder %s79, %s81
      %p85 = scmp.eq.s32.totalorder %s19, 0
      %p86 = por %p84, %p85
      %p87 = scmp.ne.s32.totalorder %s79, %s81
      %p88 = scmp.eq.s32.totalorder %s24, 1
      %p89 = por %p87, %p88
      %p90 = scmp.ne.s32.totalorder %s81, %s82
      %p91 = scmp.eq.s32.totalorder %s24, 0
      %p92 = por %p90, %p91
      %p93 = scmp.ne.s32.totalorder %s81, %s82
      %p94 = scmp.eq.s32.totalorder %s25, 1
      %p95 = por %p93, %p94
      %p97 = scmp.ne.s32.totalorder %s82, %s96
      %p98 = scmp.eq.s32.totalorder %s25, 0
      %p99 = por %p97, %p98
      %s101 = sadd.s32 %s100, 1
      %p104 = scmp.eq.s32.totalorder %s19, 1
      %p105 = scmp.ne.s32.totalorder %s100, %s102
      %p106 = scmp.eq.s32.totalorder %s19, 0
      %p107 = por %p105, %p106
      %p108 = scmp.ne.s32.totalorder %s100, %s102
      %p109 = scmp.eq.s32.totalorder %s24, 1
      %p110 = por %p108, %p109
      %p111 = scmp.ne.s32.totalorder %s102, %s103
      %p112 = scmp.eq.s32.totalorder %s24, 0
      %p113 = por %p111, %p112
      %p114 = scmp.ne.s32.totalorder %s102, %s103
      %p115 = scmp.eq.s32.totalorder %s25, 1
      %p116 = por %p114, %p115
      %p118 = scmp.ne.s32.totalorder %s103, %s117
      %p119 = scmp.eq.s32.totalorder %s25, 0
      %p120 = por %p118, %p119
      %s122 = sadd.s32 %s121, 1
      %p125 = scmp.eq.s32.totalorder %s19, 1
      %p126 = scmp.ne.s32.totalorder %s121, %s123
      %p127 = scmp.eq.s32.totalorder %s19, 0
      %p128 = por %p126, %p127
      %p129 = scmp.ne.s32.totalorder %s121, %s123
      %p130 = scmp.eq.s32.totalorder %s24, 1
      %p131 = por %p129, %p130
      %p132 = scmp.ne.s32.totalorder %s123, %s124
      %p133 = scmp.eq.s32.totalorder %s24, 0
      %p134 = por %p132, %p133
      %p135 = scmp.ne.s32.totalorder %s123, %s124
      %p136 = scmp.eq.s32.totalorder %s25, 1
      %p137 = por %p135, %p136
      %p139 = scmp.ne.s32.totalorder %s124, %s138
      %p140 = scmp.eq.s32.totalorder %s25, 0
      %p141 = por %p139, %p140
      %s143 = sadd.s32 %s142, 1
      %p146 = scmp.eq.s32.totalorder %s19, 1
      %p147 = scmp.ne.s32.totalorder %s142, %s144
      %p148 = scmp.eq.s32.totalorder %s19, 0
      %p149 = por %p147, %p148
      %p150 = scmp.ne.s32.totalorder %s142, %s144
      %p151 = scmp.eq.s32.totalorder %s24, 1
      %p152 = por %p150, %p151
      %p153 = scmp.ne.s32.totalorder %s144, %s145
      %p154 = scmp.eq.s32.totalorder %s24, 0
      %p155 = por %p153, %p154
      %p156 = scmp.ne.s32.totalorder %s144, %s145
      %p157 = scmp.eq.s32.totalorder %s25, 1
      %p158 = por %p156, %p157
      %p160 = scmp.ne.s32.totalorder %s145, %s159
      %p161 = scmp.eq.s32.totalorder %s25, 0
      %p162 = por %p160, %p161
      %s164 = sadd.s32 %s163, 1
      %p167 = scmp.eq.s32.totalorder %s19, 1
      %p168 = scmp.ne.s32.totalorder %s163, %s165
      %p169 = scmp.eq.s32.totalorder %s19, 0
      %p170 = por %p168, %p169
      %p171 = scmp.ne.s32.totalorder %s163, %s165
      %p172 = scmp.eq.s32.totalorder %s24, 1
      %p173 = por %p171, %p172
      %p174 = scmp.ne.s32.totalorder %s165, %s166
      %p175 = scmp.eq.s32.totalorder %s24, 0
      %p176 = por %p174, %p175
      %p177 = scmp.ne.s32.totalorder %s165, %s166
      %p178 = scmp.eq.s32.totalorder %s25, 1
      %p179 = por %p177, %p178
      %p181 = scmp.ne.s32.totalorder %s166, %s180
      %p182 = scmp.eq.s32.totalorder %s25, 0
      %p183 = por %p181, %p182
      %s185 = sadd.s32 %s184, 1
      %p188 = scmp.eq.s32.totalorder %s19, 1
      %p189 = scmp.ne.s32.totalorder %s184, %s186
      %p190 = scmp.eq.s32.totalorder %s19, 0
      %p191 = por %p189, %p190
      %p192 = scmp.ne.s32.totalorder %s184, %s186
      %p193 = scmp.eq.s32.totalorder %s24, 1
      %p194 = por %p192, %p193
      %p195 = scmp.ne.s32.totalorder %s186, %s187
      %p196 = scmp.eq.s32.totalorder %s24, 0
      %p197 = por %p195, %p196
      %p198 = scmp.ne.s32.totalorder %s186, %s187
      %p199 = scmp.eq.s32.totalorder %s25, 1
      %p200 = por %p198, %p199
      %p202 = scmp.ne.s32.totalorder %s187, %s201
      %p203 = scmp.eq.s32.totalorder %s25, 0
      %p204 = por %p202, %p203
      %s206 = sadd.s32 %s205, 1
      %p209 = scmp.eq.s32.totalorder %s19, 1
      %p210 = scmp.ne.s32.totalorder %s205, %s207
      %p211 = scmp.eq.s32.totalorder %s19, 0
      %p212 = por %p210, %p211
      %p213 = scmp.ne.s32.totalorder %s205, %s207
      %p214 = scmp.eq.s32.totalorder %s24, 1
      %p215 = por %p213, %p214
      %p216 = scmp.ne.s32.totalorder %s207, %s208
      %p217 = scmp.eq.s32.totalorder %s24, 0
      %p218 = por %p216, %p217
      %p219 = scmp.ne.s32.totalorder %s207, %s208
      %p220 = scmp.eq.s32.totalorder %s25, 1
      %p221 = por %p219, %p220
      %p223 = scmp.ne.s32.totalorder %s208, %s222
      %p224 = scmp.eq.s32.totalorder %s25, 0
      %p225 = por %p223, %p224
      %s227 = sadd.s32 %s226, 1
      %p230 = scmp.eq.s32.totalorder %s19, 1
      %p231 = scmp.ne.s32.totalorder %s226, %s228
      %p232 = scmp.eq.s32.totalorder %s19, 0
      %p233 = por %p231, %p232
      %p234 = scmp.ne.s32.totalorder %s226, %s228
      %p235 = scmp.eq.s32.totalorder %s24, 1
      %p236 = por %p234, %p235
      %p237 = scmp.ne.s32.totalorder %s228, %s229
      %p238 = scmp.eq.s32.totalorder %s24, 0
      %p239 = por %p237, %p238
      %p240 = scmp.ne.s32.totalorder %s228, %s229
      %p241 = scmp.eq.s32.totalorder %s25, 1
      %p242 = por %p240, %p241
      %p244 = scmp.ne.s32.totalorder %s229, %s243
      %p245 = scmp.eq.s32.totalorder %s25, 0
      %p246 = por %p244, %p245
      %s248 = sadd.s32 %s247, 1
      %p251 = scmp.eq.s32.totalorder %s19, 1
      %p252 = scmp.ne.s32.totalorder %s247, %s249
      %p253 = scmp.eq.s32.totalorder %s19, 0
      %p254 = por %p252, %p253
      %p255 = scmp.ne.s32.totalorder %s247, %s249
      %p256 = scmp.eq.s32.totalorder %s24, 1
      %p257 = por %p255, %p256
      %p258 = scmp.ne.s32.totalorder %s249, %s250
      %p259 = scmp.eq.s32.totalorder %s24, 0
      %p260 = por %p258, %p259
      %p261 = scmp.ne.s32.totalorder %s249, %s250
      %p262 = scmp.eq.s32.totalorder %s25, 1
      %p263 = por %p261, %p262
      %p265 = scmp.ne.s32.totalorder %s250, %s264
      %p266 = scmp.eq.s32.totalorder %s25, 0
      %p267 = por %p265, %p266
      %s268 = ssub.s32 %s19, %s26
      %p269 = scmp.eq.s32.totalorder %s268, 0
      %s271 = sadd.s32 %s270, 1
      %s272 = scalar_select %p269, %s270, %s271
      %p275 = pneg %p269
      %p276 = scmp.eq.s32.totalorder %s19, 1
      %p277 = por %p275, %p276
      %p278 = scmp.ne.s32.totalorder %s270, %s273
      %p279 = scmp.eq.s32.totalorder %s19, 0
      %p280 = por %p278, %p279
      %p281 = scmp.ne.s32.totalorder %s270, %s273
      %p282 = scmp.eq.s32.totalorder %s24, 1
      %p283 = por %p281, %p282
      %p284 = scmp.ne.s32.totalorder %s273, %s274
      %p285 = scmp.eq.s32.totalorder %s24, 0
      %p286 = por %p284, %p285
      %p287 = scmp.ne.s32.totalorder %s273, %s274
      %p288 = scmp.eq.s32.totalorder %s25, 1
      %p289 = por %p287, %p288
      %p291 = scmp.ne.s32.totalorder %s274, %s290
      %p292 = scmp.eq.s32.totalorder %s25, 0
      %p293 = por %p291, %p292
      %p294 = scmp.le.s32.totalorder 1, %s19
      %p295 = scmp.lt.s32.totalorder %s19, 3
      %p296 = pnand %p294, %p295
      %p297 = pneg %p296
      // Predicated region
      $region9: #{tpu_custom_call.1} parent=5 // pred_check
        _
      $region10: #{tpu_custom_call.1} parent=5 // pred_check_branch
        %299 = sbr.rel (%p296) target = $region12
      $region11: #{tpu_custom_call.1} parent=5 // pred_region
        %s300 = ssub.s32 %s19, 1
        // Predicated region
        $region13: #{tpu_custom_call.1} parent=11 // pred_check
          %p301 = pneg %p92
        $region14: #{tpu_custom_call.1} parent=11 // pred_check_branch
          %303 = sbr.rel (%p301) target = $region16
        $region15: #{tpu_custom_call.1} parent=11 // pred_region
          _
        $region16: #{tpu_custom_call.1} parent=11 // pred_fallthru
          _
        // Predicated region
        $region17: #{tpu_custom_call.1} parent=11 // pred_check
          %p304 = pneg %p113
        $region18: #{tpu_custom_call.1} parent=11 // pred_check_branch
          %306 = sbr.rel (%p304) target = $region20
        $region19: #{tpu_custom_call.1} parent=11 // pred_region
          _
        $region20: #{tpu_custom_call.1} parent=11 // pred_fallthru
          _
        // Predicated region
        $region21: #{tpu_custom_call.1} parent=11 // pred_check
          %p307 = pneg %p134
        $region22: #{tpu_custom_call.1} parent=11 // pred_check_branch
          %309 = sbr.rel (%p307) target = $region24
        $region23: #{tpu_custom_call.1} parent=11 // pred_region
          %311 = vsyncadd [#allocation3], 0
          %s312 = sshll.u32 %s4, 4
          %s313 = int_to_ptr.hbm [resolvable:$true] %s312
          %s314 = sshll.u32 [#allocation2], 4
          %s315 = int_to_ptr.vmem [resolvable:$true] %s314
          %320 = dma.hbm_to_vmem [thread:$0]  %s313, 32768, %s315, [#allocation3], 512, 512, 32
        $region24: #{tpu_custom_call.1} parent=11 // pred_fallthru
          _
        // Predicated region
        $region25: #{tpu_custom_call.1} parent=11 // pred_check
          %p321 = pneg %p155
        $region26: #{tpu_custom_call.1} parent=11 // pred_check_branch
          %323 = sbr.rel (%p321) target = $region28
        $region27: #{tpu_custom_call.1} parent=11 // pred_region
          _
        $region28: #{tpu_custom_call.1} parent=11 // pred_fallthru
          _
        // Predicated region
        $region29: #{tpu_custom_call.1} parent=11 // pred_check
          %p324 = pneg %p176
        $region30: #{tpu_custom_call.1} parent=11 // pred_check_branch
          %326 = sbr.rel (%p324) target = $region32
        $region31: #{tpu_custom_call.1} parent=11 // pred_region
          %328 = vsyncadd [#allocation5], 0
          %s329 = sshll.u32 %s6, 4
          %s330 = int_to_ptr.hbm [resolvable:$true] %s329
          %s331 = sshll.u32 [#allocation4], 4
          %s332 = int_to_ptr.vmem [resolvable:$true] %s331
          %337 = dma.hbm_to_vmem [thread:$0]  %s330, 16384, %s332, [#allocation5], 256, 256, 16
        $region32: #{tpu_custom_call.1} parent=11 // pred_fallthru
          _
        // Predicated region
        $region33: #{tpu_custom_call.1} parent=11 // pred_check
          %p338 = pneg %p197
        $region34: #{tpu_custom_call.1} parent=11 // pred_check_branch
          %340 = sbr.rel (%p338) target = $region36
        $region35: #{tpu_custom_call.1} parent=11 // pred_region
          %342 = vsyncadd [#allocation5], 0
          %s343 = sshll.u32 %s7, 4
          %s344 = int_to_ptr.hbm [resolvable:$true] %s343
          %s345 = sshll.u32 [#allocation6], 4
          %s346 = int_to_ptr.vmem [resolvable:$true] %s345
          %351 = dma.hbm_to_vmem [thread:$0]  %s344, 16384, %s346, [#allocation5], 256, 256, 16
        $region36: #{tpu_custom_call.1} parent=11 // pred_fallthru
          _
        // Predicated region
        $region37: #{tpu_custom_call.1} parent=11 // pred_check
          %p352 = pneg %p218
        $region38: #{tpu_custom_call.1} parent=11 // pred_check_branch
          %354 = sbr.rel (%p352) target = $region40
        $region39: #{tpu_custom_call.1} parent=11 // pred_region
          _
        $region40: #{tpu_custom_call.1} parent=11 // pred_fallthru
          _
        // Predicated region
        $region41: #{tpu_custom_call.1} parent=11 // pred_check
          %p355 = pneg %p239
        $region42: #{tpu_custom_call.1} parent=11 // pred_check_branch
          %357 = sbr.rel (%p355) target = $region44
        $region43: #{tpu_custom_call.1} parent=11 // pred_region
          _
        $region44: #{tpu_custom_call.1} parent=11 // pred_fallthru
          _
        // Predicated region
        $region45: #{tpu_custom_call.1} parent=11 // pred_check
          %p358 = pneg %p260
        $region46: #{tpu_custom_call.1} parent=11 // pred_check_branch
          %360 = sbr.rel (%p358) target = $region48
        $region47: #{tpu_custom_call.1} parent=11 // pred_region
          _
        $region48: #{tpu_custom_call.1} parent=11 // pred_fallthru
          _
      $region12: #{tpu_custom_call.1} parent=5 // pred_fallthru
        _
      %p361 = scmp.lt.s32.totalorder %s19, 2
      // Predicated region
      $region49: #{tpu_custom_call.1} parent=5 // pred_check
        %p362 = pneg %p361
      $region50: #{tpu_custom_call.1} parent=5 // pred_check_branch
        %364 = sbr.rel (%p362) target = $region52
      $region51: #{tpu_custom_call.1} parent=5 // pred_region
        // Predicated region
        $region53: #{tpu_custom_call.1} parent=51 // pred_check
          %p365 = pneg %p39
        $region54: #{tpu_custom_call.1} parent=51 // pred_check_branch
          %367 = sbr.rel (%p365) target = $region56
        $region55: #{tpu_custom_call.1} parent=51 // pred_region
          %s368 = smul.u32 8, %s19
          %p369 = scmp.lt.s32.totalorder %s368, 15
          %s370 = scalar_select %p369, %s368, 15
          %s371 = smul.addr %s370, 8
          %s372 = scalar_lea.vmem %s0, %s371
          %s373 = smul.u32 8, %s19
        $region56: #{tpu_custom_call.1} parent=51 // pred_fallthru
          _
        // Predicated region
        $region57: #{tpu_custom_call.1} parent=51 // pred_check
          %p374 = pneg %p65
        $region58: #{tpu_custom_call.1} parent=51 // pred_check_branch
          %376 = sbr.rel (%p374) target = $region60
        $region59: #{tpu_custom_call.1} parent=51 // pred_region
          %s377 = smul.u32 8, %s19
          %p378 = scmp.lt.s32.totalorder %s377, 15
          %s379 = scalar_select %p378, %s377, 15
          %s380 = smul.addr %s379, 8
          %s381 = scalar_lea.vmem %s1, %s380
          %s382 = smul.u32 8, %s19
        $region60: #{tpu_custom_call.1} parent=51 // pred_fallthru
          _
      $region52: #{tpu_custom_call.1} parent=5 // pred_fallthru
        _
      %p383 = scmp.le.s32.totalorder 1, %s19
      %p384 = scmp.lt.s32.totalorder %s19, 3
      %p385 = pnand %p383, %p384
      %p386 = pneg %p385
      // Predicated region
      $region61: #{tpu_custom_call.1} parent=5 // pred_check
        _
      $region62: #{tpu_custom_call.1} parent=5 // pred_check_branch
        %388 = sbr.rel (%p385) target = $region64
      $region63: #{tpu_custom_call.1} parent=5 // pred_region
        %s389 = ssub.s32 %s19, 1
        // Predicated region
        $region65: #{tpu_custom_call.1} parent=63 // pred_check
          %p390 = pneg %p134
        $region66: #{tpu_custom_call.1} parent=63 // pred_check_branch
          %392 = sbr.rel (%p390) target = $region68
        $region67: #{tpu_custom_call.1} parent=63 // pred_region
          %394 = dma.done [#allocation3], 32768
        $region68: #{tpu_custom_call.1} parent=63 // pred_fallthru
          _
        // Predicated region
        $region69: #{tpu_custom_call.1} parent=63 // pred_check
          %p395 = pneg %p176
        $region70: #{tpu_custom_call.1} parent=63 // pred_check_branch
          %397 = sbr.rel (%p395) target = $region72
        $region71: #{tpu_custom_call.1} parent=63 // pred_region
          %399 = dma.done [#allocation5], 16384
        $region72: #{tpu_custom_call.1} parent=63 // pred_fallthru
          _
        // Predicated region
        $region73: #{tpu_custom_call.1} parent=63 // pred_check
          %p400 = pneg %p197
        $region74: #{tpu_custom_call.1} parent=63 // pred_check_branch
          %402 = sbr.rel (%p400) target = $region76
        $region75: #{tpu_custom_call.1} parent=63 // pred_region
          %404 = dma.done [#allocation5], 16384
        $region76: #{tpu_custom_call.1} parent=63 // pred_fallthru
          _
        %s405 = smul.u32 8, %s24
        %p406 = scmp.lt.s32.totalorder %s405, 15
        %s407 = scalar_select %p406, %s405, 15
        %s408 = smul.addr %s407, 8
        %s409 = scalar_lea.vmem %s0, %s408
        %p410 = pneg %p45
        %p411 = pneg %p42
        %s412 = smul.u32 8, %s24
        %p413 = scmp.lt.s32.totalorder %s412, 15
        %s414 = scalar_select %p413, %s412, 15
        %s415 = smul.addr %s414, 8
        %s416 = scalar_lea.vmem %s1, %s415
        %p417 = pneg %p71
        %p418 = pneg %p68
        %p419 = pneg %p92
        %p420 = pneg %p89
        %p421 = pneg %p113
        %p422 = pneg %p110
        %p423 = pneg %p134
        %p424 = pneg %p131
        %p425 = pneg %p155
        %p426 = pneg %p152
        %p427 = pneg %p176
        %p428 = pneg %p173
        %p429 = pneg %p197
        %p430 = pneg %p194
        %p431 = pneg %p218
        %p432 = pneg %p215
        %p433 = pneg %p239
        %p434 = pneg %p236
        %p435 = pneg %p260
        %p436 = pneg %p257
        %p437 = pneg %p286
        %p438 = pneg %p283
        %s439 = smul.u32 8, %s24
        %p440 = scmp.lt.s32.totalorder %s439, 15
        %s441 = scalar_select %p440, %s439, 15
        %s442 = smul.addr %s441, 8
        %s443 = scalar_lea.vmem %s11, %s442
        %s444 = smul.u32 8, %s24
        %p445 = scmp.lt.s32.totalorder %s444, 15
        %s446 = scalar_select %p445, %s444, 15
        %s447 = smul.addr %s446, 8
        %s448 = scalar_lea.vmem %s0, %s447
        %s449 = smul.u32 8, %s24
        %s450 = smul.u32 8, %s24
        %p451 = scmp.lt.s32.totalorder %s450, 15
        %s452 = scalar_select %p451, %s450, 15
        %s453 = smul.addr %s452, 8
        %s454 = scalar_lea.vmem %s1, %s453
        %s455 = smul.u32 8, %s24
        %s456 = smul.u32 8, %s24
        %p457 = scmp.lt.s32.totalorder %s456, 15
        %s458 = scalar_select %p457, %s456, 15
        %s459 = smul.addr %s458, 8
        %s460 = scalar_lea.vmem %s11, %s459
        %s461 = smul.u32 8, %s24
        %v463 = vld [vmem:[%s448] sm:$0xff]
        %v464 = vld [vmem:[%s448 + $0x8] sm:$0xff]
        %v465 = vld [vmem:[%s448 + $0x10] sm:$0xff]
        %v466 = vld [vmem:[%s448 + $0x18] sm:$0xff]
        %v467 = vld [vmem:[%s448 + $0x20] sm:$0xff]
        %v468 = vld [vmem:[%s448 + $0x28] sm:$0xff]
        %v469 = vld [vmem:[%s448 + $0x30] sm:$0xff]
        %v470 = vld [vmem:[%s448 + $0x38] sm:$0xff]
        %v471 = vld [vmem:[%s454] sm:$0xff]
        %v472 = vld [vmem:[%s454 + $0x8] sm:$0xff]
        %v473 = vld [vmem:[%s454 + $0x10] sm:$0xff]
        %v474 = vld [vmem:[%s454 + $0x18] sm:$0xff]
        %v475 = vld [vmem:[%s454 + $0x20] sm:$0xff]
        %v476 = vld [vmem:[%s454 + $0x28] sm:$0xff]
        %v477 = vld [vmem:[%s454 + $0x30] sm:$0xff]
        %v478 = vld [vmem:[%s454 + $0x38] sm:$0xff]
        %v479 = vpack.c.bf16 %v464, %v463
        %v480 = vpack.c.bf16 %v466, %v465
        %v481 = vpack.c.bf16 %v468, %v467
        %v482 = vpack.c.bf16 %v470, %v469
        %v483 = vpack.c.bf16 %v472, %v471
        %v484 = vpack.c.bf16 %v474, %v473
        %v485 = vpack.c.bf16 %v476, %v475
        %v486 = vpack.c.bf16 %v478, %v477
        %v487 = vld [vmem:[%s2] sm:$0xff]
        %v488 = vld [vmem:[%s2 + $0x8] sm:$0xff]
        %v489 = vld [vmem:[%s2 + $0x10] sm:$0xff]
        %v490 = vld [vmem:[%s2 + $0x18] sm:$0xff]
        %v491 = vld [vmem:[%s2 + $0x20] sm:$0xff]
        %v492 = vld [vmem:[%s2 + $0x28] sm:$0xff]
        %v493 = vld [vmem:[%s2 + $0x30] sm:$0xff]
        %v494 = vld [vmem:[%s2 + $0x38] sm:$0xff]
        %v495 = vld [vmem:[%s2 + $0x40] sm:$0xff]
        %v496 = vld [vmem:[%s2 + $0x48] sm:$0xff]
        %v497 = vld [vmem:[%s2 + $0x50] sm:$0xff]
        %v498 = vld [vmem:[%s2 + $0x58] sm:$0xff]
        %v499 = vld [vmem:[%s2 + $0x60] sm:$0xff]
        %v500 = vld [vmem:[%s2 + $0x68] sm:$0xff]
        %v501 = vld [vmem:[%s2 + $0x70] sm:$0xff]
        %v502 = vld [vmem:[%s2 + $0x78] sm:$0xff]
        %v503 = vld [vmem:[%s2 + $0x80] sm:$0xff]
        %v504 = vld [vmem:[%s2 + $0x88] sm:$0xff]
        %v505 = vld [vmem:[%s2 + $0x90] sm:$0xff]
        %v506 = vld [vmem:[%s2 + $0x98] sm:$0xff]
        %v507 = vld [vmem:[%s2 + $0xa0] sm:$0xff]
        %v508 = vld [vmem:[%s2 + $0xa8] sm:$0xff]
        %v509 = vld [vmem:[%s2 + $0xb0] sm:$0xff]
        %v510 = vld [vmem:[%s2 + $0xb8] sm:$0xff]
        %v511 = vld [vmem:[%s2 + $0xc0] sm:$0xff]
        %v512 = vld [vmem:[%s2 + $0xc8] sm:$0xff]
        %v513 = vld [vmem:[%s2 + $0xd0] sm:$0xff]
        %v514 = vld [vmem:[%s2 + $0xd8] sm:$0xff]
        %v515 = vld [vmem:[%s2 + $0xe0] sm:$0xff]
        %v516 = vld [vmem:[%s2 + $0xe8] sm:$0xff]
        %v517 = vld [vmem:[%s2 + $0xf0] sm:$0xff]
        %v518 = vld [vmem:[%s2 + $0xf8] sm:$0xff]
        %v519 = vld [vmem:[%s3] sm:$0xff]
        %v521 = vperm.slane %v519, 0
        %v522 = vperm.slane %v519, 1
        %v523 = vperm.slane %v519, 2
        %v524 = vperm.slane %v519, 3
        %v525 = vperm.slane %v519, 4
        %v526 = vperm.slane %v519, 5
        %v527 = vperm.slane %v519, 6
        %v528 = vperm.slane %v519, 7
        %v569 = vunpack.c.l.b16 %v487
        %v570 = vunpack.c.h.b16 %v487
        %v571 = vunpack.c.l.b16 %v488
        %v572 = vunpack.c.h.b16 %v488
        %v573 = vunpack.c.l.b16 %v489
        %v574 = vunpack.c.h.b16 %v489
        %v575 = vunpack.c.l.b16 %v490
        %v576 = vunpack.c.h.b16 %v490
        %v577 = vunpack.c.l.b16 %v491
        %v578 = vunpack.c.h.b16 %v491
        %v579 = vunpack.c.l.b16 %v492
        %v580 = vunpack.c.h.b16 %v492
        %v581 = vunpack.c.l.b16 %v493
        %v582 = vunpack.c.h.b16 %v493
        %v583 = vunpack.c.l.b16 %v494
        %v584 = vunpack.c.h.b16 %v494
        %v585 = vunpack.c.l.b16 %v495
        %v586 = vunpack.c.h.b16 %v495
        %v587 = vunpack.c.l.b16 %v496
        %v588 = vunpack.c.h.b16 %v496
        %v589 = vunpack.c.l.b16 %v497
        %v590 = vunpack.c.h.b16 %v497
        %v591 = vunpack.c.l.b16 %v498
        %v592 = vunpack.c.h.b16 %v498
        %v593 = vunpack.c.l.b16 %v499
        %v594 = vunpack.c.h.b16 %v499
        %v595 = vunpack.c.l.b16 %v500
        %v596 = vunpack.c.h.b16 %v500
        %v597 = vunpack.c.l.b16 %v501
        %v598 = vunpack.c.h.b16 %v501
        %v599 = vunpack.c.l.b16 %v502
        %v600 = vunpack.c.h.b16 %v502
        %v601 = vunpack.c.l.b16 %v503
        %v602 = vunpack.c.h.b16 %v503
        %v603 = vunpack.c.l.b16 %v504
        %v604 = vunpack.c.h.b16 %v504
        %v605 = vunpack.c.l.b16 %v505
        %v606 = vunpack.c.h.b16 %v505
        %v607 = vunpack.c.l.b16 %v506
        %v608 = vunpack.c.h.b16 %v506
        %v609 = vunpack.c.l.b16 %v507
        %v610 = vunpack.c.h.b16 %v507
        %v611 = vunpack.c.l.b16 %v508
        %v612 = vunpack.c.h.b16 %v508
        %v613 = vunpack.c.l.b16 %v509
        %v614 = vunpack.c.h.b16 %v509
        %v615 = vunpack.c.l.b16 %v510
        %v616 = vunpack.c.h.b16 %v510
        %v617 = vunpack.c.l.b16 %v511
        %v618 = vunpack.c.h.b16 %v511
        %v619 = vunpack.c.l.b16 %v512
        %v620 = vunpack.c.h.b16 %v512
        %v621 = vunpack.c.l.b16 %v513
        %v622 = vunpack.c.h.b16 %v513
        %v623 = vunpack.c.l.b16 %v514
        %v624 = vunpack.c.h.b16 %v514
        %v625 = vunpack.c.l.b16 %v515
        %v626 = vunpack.c.h.b16 %v515
        %v627 = vunpack.c.l.b16 %v516
        %v628 = vunpack.c.h.b16 %v516
        %v629 = vunpack.c.l.b16 %v517
        %v630 = vunpack.c.h.b16 %v517
        %v631 = vunpack.c.l.b16 %v518
        %v632 = vunpack.c.h.b16 %v518
        %v633 = vpack.c.b16 %v577, %v569
        %v634 = vpack.c.b16 %v578, %v570
        %v635 = vpack.c.b16 %v579, %v571
        %v636 = vpack.c.b16 %v580, %v572
        %v637 = vpack.c.b16 %v581, %v573
        %v638 = vpack.c.b16 %v582, %v574
        %v639 = vpack.c.b16 %v583, %v575
        %v640 = vpack.c.b16 %v584, %v576
        %v641 = vpack.c.b16 %v593, %v585
        %v642 = vpack.c.b16 %v594, %v586
        %v643 = vpack.c.b16 %v595, %v587
        %v644 = vpack.c.b16 %v596, %v588
        %v645 = vpack.c.b16 %v597, %v589
        %v646 = vpack.c.b16 %v598, %v590
        %v647 = vpack.c.b16 %v599, %v591
        %v648 = vpack.c.b16 %v600, %v592
        %v649 = vpack.c.b16 %v609, %v601
        %v650 = vpack.c.b16 %v610, %v602
        %v651 = vpack.c.b16 %v611, %v603
        %v652 = vpack.c.b16 %v612, %v604
        %v653 = vpack.c.b16 %v613, %v605
        %v654 = vpack.c.b16 %v614, %v606
        %v655 = vpack.c.b16 %v615, %v607
        %v656 = vpack.c.b16 %v616, %v608
        %v657 = vpack.c.b16 %v625, %v617
        %v658 = vpack.c.b16 %v626, %v618
        %v659 = vpack.c.b16 %v627, %v619
        %v660 = vpack.c.b16 %v628, %v620
        %v661 = vpack.c.b16 %v629, %v621
        %v662 = vpack.c.b16 %v630, %v622
        %v663 = vpack.c.b16 %v631, %v623
        %v664 = vpack.c.b16 %v632, %v624
        %vm697 = vcmask 523264
        %v699 = vsel %vm697, %v479, 0
        %v702 = vsel %vm697, %v480, 0
        %v705 = vsel %vm697, %v481, 0
        %v708 = vsel %vm697, %v482, 0
        %v711 = vsel %vm697, %v483, 0
        %v714 = vsel %vm697, %v484, 0
        %v717 = vsel %vm697, %v485, 0
        %v720 = vsel %vm697, %v486, 0
        %722 = vmatpush.bf16.msra.mxu0 0
        %723 = vmatpush.bf16.msra.mxu0 0
        %724 = vmatpush.bf16.msra.mxu0 0
        %725 = vmatpush.bf16.msra.mxu0 0
        %726 = vmatpush.bf16.msra.mxu0 %v657
        %727 = vmatpush.bf16.msra.mxu0 %v649
        %728 = vmatpush.bf16.msra.mxu0 %v641
        %729 = vmatpush.bf16.msra.mxu0 %v633
        %730 = vmatmul.bf16.gmra.mxu0 %v699
        %v731 = vpop.f32.mrf.mxu0
        %v732 = vadd.f32 %v521, %v731
        %v733 = vpop.f32.mrf.mxu0
        %v734 = vadd.f32 %v521, %v733
        %735 = vmatmul.bf16.gmra.mxu0 %v702
        %v736 = vpop.f32.mrf.mxu0
        %v737 = vadd.f32 %v521, %v736
        %v738 = vpop.f32.mrf.mxu0
        %v739 = vadd.f32 %v521, %v738
        %740 = vmatmul.bf16.gmra.mxu0 %v705
        %v741 = vpop.f32.mrf.mxu0
        %v742 = vadd.f32 %v521, %v741
        %v743 = vpop.f32.mrf.mxu0
        %v744 = vadd.f32 %v521, %v743
        %745 = vmatmul.bf16.gmra.mxu0 %v708
        %v746 = vpop.f32.mrf.mxu0
        %v747 = vadd.f32 %v521, %v746
        %v748 = vpop.f32.mrf.mxu0
        %v749 = vadd.f32 %v521, %v748
        %750 = vmatmul.bf16.gmra.mxu0 %v711
        %v751 = vpop.f32.mrf.mxu0
        %v752 = vpop.f32.mrf.mxu0
        %753 = vmatmul.bf16.gmra.mxu0 %v714
        %v754 = vpop.f32.mrf.mxu0
        %v755 = vpop.f32.mrf.mxu0
        %756 = vmatmul.bf16.gmra.mxu0 %v717
        %v757 = vpop.f32.mrf.mxu0
        %v758 = vpop.f32.mrf.mxu0
        %759 = vmatmul.bf16.gmra.mxu0 %v720
        %v760 = vpop.f32.mrf.mxu0
        %v761 = vpop.f32.mrf.mxu0
        %762 = vdwg.mxu0
        %763 = vmatpush.bf16.msra.mxu0 0
        %764 = vmatpush.bf16.msra.mxu0 0
        %765 = vmatpush.bf16.msra.mxu0 0
        %766 = vmatpush.bf16.msra.mxu0 0
        %767 = vmatpush.bf16.msra.mxu0 %v658
        %768 = vmatpush.bf16.msra.mxu0 %v650
        %769 = vmatpush.bf16.msra.mxu0 %v642
        %770 = vmatpush.bf16.msra.mxu0 %v634
        %771 = vmatmul.bf16.gmra.mxu0 %v699
        %v772 = vpop.f32.mrf.mxu0
        %v773 = vadd.f32 %v522, %v772
        %v774 = vpop.f32.mrf.mxu0
        %v775 = vadd.f32 %v522, %v774
        %776 = vmatmul.bf16.gmra.mxu0 %v702
        %v777 = vpop.f32.mrf.mxu0
        %v778 = vadd.f32 %v522, %v777
        %v779 = vpop.f32.mrf.mxu0
        %v780 = vadd.f32 %v522, %v779
        %781 = vmatmul.bf16.gmra.mxu0 %v705
        %v782 = vpop.f32.mrf.mxu0
        %v783 = vadd.f32 %v522, %v782
        %v784 = vpop.f32.mrf.mxu0
        %v785 = vadd.f32 %v522, %v784
        %786 = vmatmul.bf16.gmra.mxu0 %v708
        %v787 = vpop.f32.mrf.mxu0
        %v788 = vadd.f32 %v522, %v787
        %v789 = vpop.f32.mrf.mxu0
        %v790 = vadd.f32 %v522, %v789
        %791 = vmatmul.bf16.gmra.mxu0 %v711
        %v792 = vpop.f32.mrf.mxu0
        %v793 = vpop.f32.mrf.mxu0
        %794 = vmatmul.bf16.gmra.mxu0 %v714
        %v795 = vpop.f32.mrf.mxu0
        %v796 = vpop.f32.mrf.mxu0
        %797 = vmatmul.bf16.gmra.mxu0 %v717
        %v798 = vpop.f32.mrf.mxu0
        %v799 = vpop.f32.mrf.mxu0
        %800 = vmatmul.bf16.gmra.mxu0 %v720
        %v801 = vpop.f32.mrf.mxu0
        %v802 = vpop.f32.mrf.mxu0
        %803 = vdwg.mxu0
        %804 = vmatpush.bf16.msra.mxu0 0
        %805 = vmatpush.bf16.msra.mxu0 0
        %806 = vmatpush.bf16.msra.mxu0 0
        %807 = vmatpush.bf16.msra.mxu0 0
        %808 = vmatpush.bf16.msra.mxu0 %v659
        %809 = vmatpush.bf16.msra.mxu0 %v651
        %810 = vmatpush.bf16.msra.mxu0 %v643
        %811 = vmatpush.bf16.msra.mxu0 %v635
        %812 = vmatmul.bf16.gmra.mxu0 %v699
        %v813 = vpop.f32.mrf.mxu0
        %v814 = vadd.f32 %v523, %v813
        %v815 = vpop.f32.mrf.mxu0
        %v816 = vadd.f32 %v523, %v815
        %817 = vmatmul.bf16.gmra.mxu0 %v702
        %v818 = vpop.f32.mrf.mxu0
        %v819 = vadd.f32 %v523, %v818
        %v820 = vpop.f32.mrf.mxu0
        %v821 = vadd.f32 %v523, %v820
        %822 = vmatmul.bf16.gmra.mxu0 %v705
        %v823 = vpop.f32.mrf.mxu0
        %v824 = vadd.f32 %v523, %v823
        %v825 = vpop.f32.mrf.mxu0
        %v826 = vadd.f32 %v523, %v825
        %827 = vmatmul.bf16.gmra.mxu0 %v708
        %v828 = vpop.f32.mrf.mxu0
        %v829 = vadd.f32 %v523, %v828
        %v830 = vpop.f32.mrf.mxu0
        %v831 = vadd.f32 %v523, %v830
        %832 = vmatmul.bf16.gmra.mxu0 %v711
        %v833 = vpop.f32.mrf.mxu0
        %v834 = vpop.f32.mrf.mxu0
        %835 = vmatmul.bf16.gmra.mxu0 %v714
        %v836 = vpop.f32.mrf.mxu0
        %v837 = vpop.f32.mrf.mxu0
        %838 = vmatmul.bf16.gmra.mxu0 %v717
        %v839 = vpop.f32.mrf.mxu0
        %v840 = vpop.f32.mrf.mxu0
        %841 = vmatmul.bf16.gmra.mxu0 %v720
        %v842 = vpop.f32.mrf.mxu0
        %v843 = vpop.f32.mrf.mxu0
        %844 = vdwg.mxu0
        %845 = vmatpush.bf16.msra.mxu0 0
        %846 = vmatpush.bf16.msra.mxu0 0
        %847 = vmatpush.bf16.msra.mxu0 0
        %848 = vmatpush.bf16.msra.mxu0 0
        %849 = vmatpush.bf16.msra.mxu0 %v660
        %850 = vmatpush.bf16.msra.mxu0 %v652
        %851 = vmatpush.bf16.msra.mxu0 %v644
        %852 = vmatpush.bf16.msra.mxu0 %v636
        %853 = vmatmul.bf16.gmra.mxu0 %v699
        %v854 = vpop.f32.mrf.mxu0
        %v855 = vadd.f32 %v524, %v854
        %v856 = vpop.f32.mrf.mxu0
        %v857 = vadd.f32 %v524, %v856
        %858 = vmatmul.bf16.gmra.mxu0 %v702
        %v859 = vpop.f32.mrf.mxu0
        %v860 = vadd.f32 %v524, %v859
        %v861 = vpop.f32.mrf.mxu0
        %v862 = vadd.f32 %v524, %v861
        %863 = vmatmul.bf16.gmra.mxu0 %v705
        %v864 = vpop.f32.mrf.mxu0
        %v865 = vadd.f32 %v524, %v864
        %v866 = vpop.f32.mrf.mxu0
        %v867 = vadd.f32 %v524, %v866
        %868 = vmatmul.bf16.gmra.mxu0 %v708
        %v869 = vpop.f32.mrf.mxu0
        %v870 = vadd.f32 %v524, %v869
        %v871 = vpop.f32.mrf.mxu0
        %v872 = vadd.f32 %v524, %v871
        %873 = vmatmul.bf16.gmra.mxu0 %v711
        %v874 = vpop.f32.mrf.mxu0
        %v875 = vpop.f32.mrf.mxu0
        %876 = vmatmul.bf16.gmra.mxu0 %v714
        %v877 = vpop.f32.mrf.mxu0
        %v878 = vpop.f32.mrf.mxu0
        %879 = vmatmul.bf16.gmra.mxu0 %v717
        %v880 = vpop.f32.mrf.mxu0
        %v881 = vpop.f32.mrf.mxu0
        %882 = vmatmul.bf16.gmra.mxu0 %v720
        %v883 = vpop.f32.mrf.mxu0
        %v884 = vpop.f32.mrf.mxu0
        %885 = vdwg.mxu0
        %886 = vmatpush.bf16.msra.mxu0 0
        %887 = vmatpush.bf16.msra.mxu0 0
        %888 = vmatpush.bf16.msra.mxu0 0
        %889 = vmatpush.bf16.msra.mxu0 0
        %890 = vmatpush.bf16.msra.mxu0 %v661
        %891 = vmatpush.bf16.msra.mxu0 %v653
        %892 = vmatpush.bf16.msra.mxu0 %v645
        %893 = vmatpush.bf16.msra.mxu0 %v637
        %894 = vmatmul.bf16.gmra.mxu0 %v699
        %v895 = vpop.f32.mrf.mxu0
        %v896 = vpop.f32.mrf.mxu0
        %897 = vmatmul.bf16.gmra.mxu0 %v702
        %v898 = vpop.f32.mrf.mxu0
        %v899 = vpop.f32.mrf.mxu0
        %900 = vmatmul.bf16.gmra.mxu0 %v705
        %v901 = vpop.f32.mrf.mxu0
        %v902 = vpop.f32.mrf.mxu0
        %903 = vmatmul.bf16.gmra.mxu0 %v708
        %v904 = vpop.f32.mrf.mxu0
        %v905 = vpop.f32.mrf.mxu0
        %906 = vmatmul.bf16.gmra.mxu0 %v711
        %v907 = vpop.f32.mrf.mxu0
        %v908 = vadd.f32 %v525, %v907
        %v909 = vpop.f32.mrf.mxu0
        %v910 = vadd.f32 %v525, %v909
        %911 = vmatmul.bf16.gmra.mxu0 %v714
        %v912 = vpop.f32.mrf.mxu0
        %v913 = vadd.f32 %v525, %v912
        %v914 = vpop.f32.mrf.mxu0
        %v915 = vadd.f32 %v525, %v914
        %916 = vmatmul.bf16.gmra.mxu0 %v717
        %v917 = vpop.f32.mrf.mxu0
        %v918 = vadd.f32 %v525, %v917
        %v919 = vpop.f32.mrf.mxu0
        %v920 = vadd.f32 %v525, %v919
        %921 = vmatmul.bf16.gmra.mxu0 %v720
        %v922 = vpop.f32.mrf.mxu0
        %v923 = vadd.f32 %v525, %v922
        %v924 = vpop.f32.mrf.mxu0
        %v925 = vadd.f32 %v525, %v924
        %926 = vdwg.mxu0
        %927 = vmatpush.bf16.msra.mxu0 0
        %928 = vmatpush.bf16.msra.mxu0 0
        %929 = vmatpush.bf16.msra.mxu0 0
        %930 = vmatpush.bf16.msra.mxu0 0
        %931 = vmatpush.bf16.msra.mxu0 %v662
        %932 = vmatpush.bf16.msra.mxu0 %v654
        %933 = vmatpush.bf16.msra.mxu0 %v646
        %934 = vmatpush.bf16.msra.mxu0 %v638
        %935 = vmatmul.bf16.gmra.mxu0 %v699
        %v936 = vpop.f32.mrf.mxu0
        %v937 = vpop.f32.mrf.mxu0
        %938 = vmatmul.bf16.gmra.mxu0 %v702
        %v939 = vpop.f32.mrf.mxu0
        %v940 = vpop.f32.mrf.mxu0
        %941 = vmatmul.bf16.gmra.mxu0 %v705
        %v942 = vpop.f32.mrf.mxu0
        %v943 = vpop.f32.mrf.mxu0
        %944 = vmatmul.bf16.gmra.mxu0 %v708
        %v945 = vpop.f32.mrf.mxu0
        %v946 = vpop.f32.mrf.mxu0
        %947 = vmatmul.bf16.gmra.mxu0 %v711
        %v948 = vpop.f32.mrf.mxu0
        %v949 = vadd.f32 %v526, %v948
        %v950 = vpop.f32.mrf.mxu0
        %v951 = vadd.f32 %v526, %v950
        %952 = vmatmul.bf16.gmra.mxu0 %v714
        %v953 = vpop.f32.mrf.mxu0
        %v954 = vadd.f32 %v526, %v953
        %v955 = vpop.f32.mrf.mxu0
        %v956 = vadd.f32 %v526, %v955
        %957 = vmatmul.bf16.gmra.mxu0 %v717
        %v958 = vpop.f32.mrf.mxu0
        %v959 = vadd.f32 %v526, %v958
        %v960 = vpop.f32.mrf.mxu0
        %v961 = vadd.f32 %v526, %v960
        %962 = vmatmul.bf16.gmra.mxu0 %v720
        %v963 = vpop.f32.mrf.mxu0
        %v964 = vadd.f32 %v526, %v963
        %v965 = vpop.f32.mrf.mxu0
        %v966 = vadd.f32 %v526, %v965
        %967 = vdwg.mxu0
        %968 = vmatpush.bf16.msra.mxu0 0
        %969 = vmatpush.bf16.msra.mxu0 0
        %970 = vmatpush.bf16.msra.mxu0 0
        %971 = vmatpush.bf16.msra.mxu0 0
        %972 = vmatpush.bf16.msra.mxu0 %v663
        %973 = vmatpush.bf16.msra.mxu0 %v655
        %974 = vmatpush.bf16.msra.mxu0 %v647
        %975 = vmatpush.bf16.msra.mxu0 %v639
        %976 = vmatmul.bf16.gmra.mxu0 %v699
        %v977 = vpop.f32.mrf.mxu0
        %v978 = vpop.f32.mrf.mxu0
        %979 = vmatmul.bf16.gmra.mxu0 %v702
        %v980 = vpop.f32.mrf.mxu0
        %v981 = vpop.f32.mrf.mxu0
        %982 = vmatmul.bf16.gmra.mxu0 %v705
        %v983 = vpop.f32.mrf.mxu0
        %v984 = vpop.f32.mrf.mxu0
        %985 = vmatmul.bf16.gmra.mxu0 %v708
        %v986 = vpop.f32.mrf.mxu0
        %v987 = vpop.f32.mrf.mxu0
        %988 = vmatmul.bf16.gmra.mxu0 %v711
        %v989 = vpop.f32.mrf.mxu0
        %v990 = vadd.f32 %v527, %v989
        %v991 = vpop.f32.mrf.mxu0
        %v992 = vadd.f32 %v527, %v991
        %993 = vmatmul.bf16.gmra.mxu0 %v714
        %v994 = vpop.f32.mrf.mxu0
        %v995 = vadd.f32 %v527, %v994
        %v996 = vpop.f32.mrf.mxu0
        %v997 = vadd.f32 %v527, %v996
        %998 = vmatmul.bf16.gmra.mxu0 %v717
        %v999 = vpop.f32.mrf.mxu0
        %v1000 = vadd.f32 %v527, %v999
        %v1001 = vpop.f32.mrf.mxu0
        %v1002 = vadd.f32 %v527, %v1001
        %1003 = vmatmul.bf16.gmra.mxu0 %v720
        %v1004 = vpop.f32.mrf.mxu0
        %v1005 = vadd.f32 %v527, %v1004
        %v1006 = vpop.f32.mrf.mxu0
        %v1007 = vadd.f32 %v527, %v1006
        %1008 = vdwg.mxu0
        %1009 = vmatpush.bf16.msra.mxu0 0
        %1010 = vmatpush.bf16.msra.mxu0 0
        %1011 = vmatpush.bf16.msra.mxu0 0
        %1012 = vmatpush.bf16.msra.mxu0 0
        %1013 = vmatpush.bf16.msra.mxu0 %v664
        %1014 = vmatpush.bf16.msra.mxu0 %v656
        %1015 = vmatpush.bf16.msra.mxu0 %v648
        %1016 = vmatpush.bf16.msra.mxu0 %v640
        %1017 = vmatmul.bf16.gmra.mxu0 %v699
        %v1018 = vpop.f32.mrf.mxu0
        %v1019 = vpop.f32.mrf.mxu0
        %1020 = vmatmul.bf16.gmra.mxu0 %v702
        %v1021 = vpop.f32.mrf.mxu0
        %v1022 = vpop.f32.mrf.mxu0
        %1023 = vmatmul.bf16.gmra.mxu0 %v705
        %v1024 = vpop.f32.mrf.mxu0
        %v1025 = vpop.f32.mrf.mxu0
        %1026 = vmatmul.bf16.gmra.mxu0 %v708
        %v1027 = vpop.f32.mrf.mxu0
        %v1028 = vpop.f32.mrf.mxu0
        %1029 = vmatmul.bf16.gmra.mxu0 %v711
        %v1030 = vpop.f32.mrf.mxu0
        %v1031 = vadd.f32 %v528, %v1030
        %v1032 = vpop.f32.mrf.mxu0
        %v1033 = vadd.f32 %v528, %v1032
        %1034 = vmatmul.bf16.gmra.mxu0 %v714
        %v1035 = vpop.f32.mrf.mxu0
        %v1036 = vadd.f32 %v528, %v1035
        %v1037 = vpop.f32.mrf.mxu0
        %v1038 = vadd.f32 %v528, %v1037
        %1039 = vmatmul.bf16.gmra.mxu0 %v717
        %v1040 = vpop.f32.mrf.mxu0
        %v1041 = vadd.f32 %v528, %v1040
        %v1042 = vpop.f32.mrf.mxu0
        %v1043 = vadd.f32 %v528, %v1042
        %1044 = vmatmul.bf16.gmra.mxu0 %v720
        %v1045 = vpop.f32.mrf.mxu0
        %v1046 = vadd.f32 %v528, %v1045
        %v1047 = vpop.f32.mrf.mxu0
        %v1048 = vadd.f32 %v528, %v1047
        %1049 = vdwg.mxu0
        %v1050 = vmax.f32 %v732, 0.0
        %v1051 = vmax.f32 %v773, 0.0
        %v1052 = vmax.f32 %v814, 0.0
        %v1053 = vmax.f32 %v855, 0.0
        %v1054 = vmax.f32 %v734, 0.0
        %v1055 = vmax.f32 %v775, 0.0
        %v1056 = vmax.f32 %v816, 0.0
        %v1057 = vmax.f32 %v857, 0.0
        %v1058 = vmax.f32 %v737, 0.0
        %v1059 = vmax.f32 %v778, 0.0
        %v1060 = vmax.f32 %v819, 0.0
        %v1061 = vmax.f32 %v860, 0.0
        %v1062 = vmax.f32 %v739, 0.0
        %v1063 = vmax.f32 %v780, 0.0
        %v1064 = vmax.f32 %v821, 0.0
        %v1065 = vmax.f32 %v862, 0.0
        %v1066 = vmax.f32 %v742, 0.0
        %v1067 = vmax.f32 %v783, 0.0
        %v1068 = vmax.f32 %v824, 0.0
        %v1069 = vmax.f32 %v865, 0.0
        %v1070 = vmax.f32 %v744, 0.0
        %v1071 = vmax.f32 %v785, 0.0
        %v1072 = vmax.f32 %v826, 0.0
        %v1073 = vmax.f32 %v867, 0.0
        %v1074 = vmax.f32 %v747, 0.0
        %v1075 = vmax.f32 %v788, 0.0
        %v1076 = vmax.f32 %v829, 0.0
        %v1077 = vmax.f32 %v870, 0.0
        %v1078 = vmax.f32 %v749, 0.0
        %v1079 = vmax.f32 %v790, 0.0
        %v1080 = vmax.f32 %v831, 0.0
        %v1081 = vmax.f32 %v872, 0.0
        %v1082 = vmax.f32 %v908, 0.0
        %v1083 = vmax.f32 %v949, 0.0
        %v1084 = vmax.f32 %v990, 0.0
        %v1085 = vmax.f32 %v1031, 0.0
        %v1086 = vmax.f32 %v910, 0.0
        %v1087 = vmax.f32 %v951, 0.0
        %v1088 = vmax.f32 %v992, 0.0
        %v1089 = vmax.f32 %v1033, 0.0
        %v1090 = vmax.f32 %v913, 0.0
        %v1091 = vmax.f32 %v954, 0.0
        %v1092 = vmax.f32 %v995, 0.0
        %v1093 = vmax.f32 %v1036, 0.0
        %v1094 = vmax.f32 %v915, 0.0
        %v1095 = vmax.f32 %v956, 0.0
        %v1096 = vmax.f32 %v997, 0.0
        %v1097 = vmax.f32 %v1038, 0.0
        %v1098 = vmax.f32 %v918, 0.0
        %v1099 = vmax.f32 %v959, 0.0
        %v1100 = vmax.f32 %v1000, 0.0
        %v1101 = vmax.f32 %v1041, 0.0
        %v1102 = vmax.f32 %v920, 0.0
        %v1103 = vmax.f32 %v961, 0.0
        %v1104 = vmax.f32 %v1002, 0.0
        %v1105 = vmax.f32 %v1043, 0.0
        %v1106 = vmax.f32 %v923, 0.0
        %v1107 = vmax.f32 %v964, 0.0
        %v1108 = vmax.f32 %v1005, 0.0
        %v1109 = vmax.f32 %v1046, 0.0
        %v1110 = vmax.f32 %v925, 0.0
        %v1111 = vmax.f32 %v966, 0.0
        %v1112 = vmax.f32 %v1007, 0.0
        %v1113 = vmax.f32 %v1048, 0.0
        %v1114 = vpack.c.bf16 %v1054, %v1050
        %v1115 = vpack.c.bf16 %v1055, %v1051
        %v1116 = vpack.c.bf16 %v1056, %v1052
        %v1117 = vpack.c.bf16 %v1057, %v1053
        %v1118 = vpack.c.bf16 %v1062, %v1058
        %v1119 = vpack.c.bf16 %v1063, %v1059
        %v1120 = vpack.c.bf16 %v1064, %v1060
        %v1121 = vpack.c.bf16 %v1065, %v1061
        %v1122 = vpack.c.bf16 %v1070, %v1066
        %v1123 = vpack.c.bf16 %v1071, %v1067
        %v1124 = vpack.c.bf16 %v1072, %v1068
        %v1125 = vpack.c.bf16 %v1073, %v1069
        %v1126 = vpack.c.bf16 %v1078, %v1074
        %v1127 = vpack.c.bf16 %v1079, %v1075
        %v1128 = vpack.c.bf16 %v1080, %v1076
        %v1129 = vpack.c.bf16 %v1081, %v1077
        %v1130 = vpack.c.bf16 %v1086, %v1082
        %v1131 = vpack.c.bf16 %v1087, %v1083
        %v1132 = vpack.c.bf16 %v1088, %v1084
        %v1133 = vpack.c.bf16 %v1089, %v1085
        %v1134 = vpack.c.bf16 %v1094, %v1090
        %v1135 = vpack.c.bf16 %v1095, %v1091
        %v1136 = vpack.c.bf16 %v1096, %v1092
        %v1137 = vpack.c.bf16 %v1097, %v1093
        %v1138 = vpack.c.bf16 %v1102, %v1098
        %v1139 = vpack.c.bf16 %v1103, %v1099
        %v1140 = vpack.c.bf16 %v1104, %v1100
        %v1141 = vpack.c.bf16 %v1105, %v1101
        %v1142 = vpack.c.bf16 %v1110, %v1106
        %v1143 = vpack.c.bf16 %v1111, %v1107
        %v1144 = vpack.c.bf16 %v1112, %v1108
        %v1145 = vpack.c.bf16 %v1113, %v1109
        %v1146 = vld [vmem:[#allocation2] sm:$0xff]
        %v1147 = vld [vmem:[#allocation2 + $0x8] sm:$0xff]
        %v1148 = vld [vmem:[#allocation2 + $0x10] sm:$0xff]
        %v1149 = vld [vmem:[#allocation2 + $0x18] sm:$0xff]
        %v1150 = vld [vmem:[#allocation2 + $0x20] sm:$0xff]
        %v1151 = vld [vmem:[#allocation2 + $0x28] sm:$0xff]
        %v1152 = vld [vmem:[#allocation2 + $0x30] sm:$0xff]
        %v1153 = vld [vmem:[#allocation2 + $0x38] sm:$0xff]
        %v1154 = vld [vmem:[#allocation2 + $0x40] sm:$0xff]
        %v1155 = vld [vmem:[#allocation2 + $0x48] sm:$0xff]
        %v1156 = vld [vmem:[#allocation2 + $0x50] sm:$0xff]
        %v1157 = vld [vmem:[#allocation2 + $0x58] sm:$0xff]
        %v1158 = vld [vmem:[#allocation2 + $0x60] sm:$0xff]
        %v1159 = vld [vmem:[#allocation2 + $0x68] sm:$0xff]
        %v1160 = vld [vmem:[#allocation2 + $0x70] sm:$0xff]
        %v1161 = vld [vmem:[#allocation2 + $0x78] sm:$0xff]
        %v1162 = vld [vmem:[#allocation2 + $0x80] sm:$0xff]
        %v1163 = vld [vmem:[#allocation2 + $0x88] sm:$0xff]
        %v1164 = vld [vmem:[#allocation2 + $0x90] sm:$0xff]
        %v1165 = vld [vmem:[#allocation2 + $0x98] sm:$0xff]
        %v1166 = vld [vmem:[#allocation2 + $0xa0] sm:$0xff]
        %v1167 = vld [vmem:[#allocation2 + $0xa8] sm:$0xff]
        %v1168 = vld [vmem:[#allocation2 + $0xb0] sm:$0xff]
        %v1169 = vld [vmem:[#allocation2 + $0xb8] sm:$0xff]
        %v1170 = vld [vmem:[#allocation2 + $0xc0] sm:$0xff]
        %v1171 = vld [vmem:[#allocation2 + $0xc8] sm:$0xff]
        %v1172 = vld [vmem:[#allocation2 + $0xd0] sm:$0xff]
        %v1173 = vld [vmem:[#allocation2 + $0xd8] sm:$0xff]
        %v1174 = vld [vmem:[#allocation2 + $0xe0] sm:$0xff]
        %v1175 = vld [vmem:[#allocation2 + $0xe8] sm:$0xff]
        %v1176 = vld [vmem:[#allocation2 + $0xf0] sm:$0xff]
        %v1177 = vld [vmem:[#allocation2 + $0xf8] sm:$0xff]
        %v1178 = vld [vmem:[#allocation2 + $0x100] sm:$0xff]
        %v1179 = vld [vmem:[#allocation2 + $0x108] sm:$0xff]
        %v1180 = vld [vmem:[#allocation2 + $0x110] sm:$0xff]
        %v1181 = vld [vmem:[#allocation2 + $0x118] sm:$0xff]
        %v1182 = vld [vmem:[#allocation2 + $0x120] sm:$0xff]
        %v1183 = vld [vmem:[#allocation2 + $0x128] sm:$0xff]
        %v1184 = vld [vmem:[#allocation2 + $0x130] sm:$0xff]
        %v1185 = vld [vmem:[#allocation2 + $0x138] sm:$0xff]
        %v1186 = vld [vmem:[#allocation2 + $0x140] sm:$0xff]
        %v1187 = vld [vmem:[#allocation2 + $0x148] sm:$0xff]
        %v1188 = vld [vmem:[#allocation2 + $0x150] sm:$0xff]
        %v1189 = vld [vmem:[#allocation2 + $0x158] sm:$0xff]
        %v1190 = vld [vmem:[#allocation2 + $0x160] sm:$0xff]
        %v1191 = vld [vmem:[#allocation2 + $0x168] sm:$0xff]
        %v1192 = vld [vmem:[#allocation2 + $0x170] sm:$0xff]
        %v1193 = vld [vmem:[#allocation2 + $0x178] sm:$0xff]
        %v1194 = vld [vmem:[#allocation2 + $0x180] sm:$0xff]
        %v1195 = vld [vmem:[#allocation2 + $0x188] sm:$0xff]
        %v1196 = vld [vmem:[#allocation2 + $0x190] sm:$0xff]
        %v1197 = vld [vmem:[#allocation2 + $0x198] sm:$0xff]
        %v1198 = vld [vmem:[#allocation2 + $0x1a0] sm:$0xff]
        %v1199 = vld [vmem:[#allocation2 + $0x1a8] sm:$0xff]
        %v1200 = vld [vmem:[#allocation2 + $0x1b0] sm:$0xff]
        %v1201 = vld [vmem:[#allocation2 + $0x1b8] sm:$0xff]
        %v1202 = vld [vmem:[#allocation2 + $0x1c0] sm:$0xff]
        %v1203 = vld [vmem:[#allocation2 + $0x1c8] sm:$0xff]
        %v1204 = vld [vmem:[#allocation2 + $0x1d0] sm:$0xff]
        %v1205 = vld [vmem:[#allocation2 + $0x1d8] sm:$0xff]
        %v1206 = vld [vmem:[#allocation2 + $0x1e0] sm:$0xff]
        %v1207 = vld [vmem:[#allocation2 + $0x1e8] sm:$0xff]
        %v1208 = vld [vmem:[#allocation2 + $0x1f0] sm:$0xff]
        %v1209 = vld [vmem:[#allocation2 + $0x1f8] sm:$0xff]
        %v1210 = vld [vmem:[#allocation2 + $0x200] sm:$0xff]
        %v1211 = vld [vmem:[#allocation2 + $0x208] sm:$0xff]
        %v1212 = vld [vmem:[#allocation2 + $0x210] sm:$0xff]
        %v1213 = vld [vmem:[#allocation2 + $0x218] sm:$0xff]
        %v1214 = vld [vmem:[#allocation2 + $0x220] sm:$0xff]
        %v1215 = vld [vmem:[#allocation2 + $0x228] sm:$0xff]
        %v1216 = vld [vmem:[#allocation2 + $0x230] sm:$0xff]
        %v1217 = vld [vmem:[#allocation2 + $0x238] sm:$0xff]
        %v1218 = vld [vmem:[#allocation2 + $0x240] sm:$0xff]
        %v1219 = vld [vmem:[#allocation2 + $0x248] sm:$0xff]
        %v1220 = vld [vmem:[#allocation2 + $0x250] sm:$0xff]
        %v1221 = vld [vmem:[#allocation2 + $0x258] sm:$0xff]
        %v1222 = vld [vmem:[#allocation2 + $0x260] sm:$0xff]
        %v1223 = vld [vmem:[#allocation2 + $0x268] sm:$0xff]
        %v1224 = vld [vmem:[#allocation2 + $0x270] sm:$0xff]
        %v1225 = vld [vmem:[#allocation2 + $0x278] sm:$0xff]
        %v1226 = vld [vmem:[#allocation2 + $0x280] sm:$0xff]
        %v1227 = vld [vmem:[#allocation2 + $0x288] sm:$0xff]
        %v1228 = vld [vmem:[#allocation2 + $0x290] sm:$0xff]
        %v1229 = vld [vmem:[#allocation2 + $0x298] sm:$0xff]
        %v1230 = vld [vmem:[#allocation2 + $0x2a0] sm:$0xff]
        %v1231 = vld [vmem:[#allocation2 + $0x2a8] sm:$0xff]
        %v1232 = vld [vmem:[#allocation2 + $0x2b0] sm:$0xff]
        %v1233 = vld [vmem:[#allocation2 + $0x2b8] sm:$0xff]
        %v1234 = vld [vmem:[#allocation2 + $0x2c0] sm:$0xff]
        %v1235 = vld [vmem:[#allocation2 + $0x2c8] sm:$0xff]
        %v1236 = vld [vmem:[#allocation2 + $0x2d0] sm:$0xff]
        %v1237 = vld [vmem:[#allocation2 + $0x2d8] sm:$0xff]
        %v1238 = vld [vmem:[#allocation2 + $0x2e0] sm:$0xff]
        %v1239 = vld [vmem:[#allocation2 + $0x2e8] sm:$0xff]
        %v1240 = vld [vmem:[#allocation2 + $0x2f0] sm:$0xff]
        %v1241 = vld [vmem:[#allocation2 + $0x2f8] sm:$0xff]
        %v1242 = vld [vmem:[#allocation2 + $0x300] sm:$0xff]
        %v1243 = vld [vmem:[#allocation2 + $0x308] sm:$0xff]
        %v1244 = vld [vmem:[#allocation2 + $0x310] sm:$0xff]
        %v1245 = vld [vmem:[#allocation2 + $0x318] sm:$0xff]
        %v1246 = vld [vmem:[#allocation2 + $0x320] sm:$0xff]
        %v1247 = vld [vmem:[#allocation2 + $0x328] sm:$0xff]
        %v1248 = vld [vmem:[#allocation2 + $0x330] sm:$0xff]
        %v1249 = vld [vmem:[#allocation2 + $0x338] sm:$0xff]
        %v1250 = vld [vmem:[#allocation2 + $0x340] sm:$0xff]
        %v1251 = vld [vmem:[#allocation2 + $0x348] sm:$0xff]
        %v1252 = vld [vmem:[#allocation2 + $0x350] sm:$0xff]
        %v1253 = vld [vmem:[#allocation2 + $0x358] sm:$0xff]
        %v1254 = vld [vmem:[#allocation2 + $0x360] sm:$0xff]
        %v1255 = vld [vmem:[#allocation2 + $0x368] sm:$0xff]
        %v1256 = vld [vmem:[#allocation2 + $0x370] sm:$0xff]
        %v1257 = vld [vmem:[#allocation2 + $0x378] sm:$0xff]
        %v1258 = vld [vmem:[#allocation2 + $0x380] sm:$0xff]
        %v1259 = vld [vmem:[#allocation2 + $0x388] sm:$0xff]
        %v1260 = vld [vmem:[#allocation2 + $0x390] sm:$0xff]
        %v1261 = vld [vmem:[#allocation2 + $0x398] sm:$0xff]
        %v1262 = vld [vmem:[#allocation2 + $0x3a0] sm:$0xff]
        %v1263 = vld [vmem:[#allocation2 + $0x3a8] sm:$0xff]
        %v1264 = vld [vmem:[#allocation2 + $0x3b0] sm:$0xff]
        %v1265 = vld [vmem:[#allocation2 + $0x3b8] sm:$0xff]
        %v1266 = vld [vmem:[#allocation2 + $0x3c0] sm:$0xff]
        %v1267 = vld [vmem:[#allocation2 + $0x3c8] sm:$0xff]
        %v1268 = vld [vmem:[#allocation2 + $0x3d0] sm:$0xff]
        %v1269 = vld [vmem:[#allocation2 + $0x3d8] sm:$0xff]
        %v1270 = vld [vmem:[#allocation2 + $0x3e0] sm:$0xff]
        %v1271 = vld [vmem:[#allocation2 + $0x3e8] sm:$0xff]
        %v1272 = vld [vmem:[#allocation2 + $0x3f0] sm:$0xff]
        %v1273 = vld [vmem:[#allocation2 + $0x3f8] sm:$0xff]
        %v1274 = vld [vmem:[#allocation2 + $0x400] sm:$0xff]
        %v1275 = vld [vmem:[#allocation2 + $0x408] sm:$0xff]
        %v1276 = vld [vmem:[#allocation2 + $0x410] sm:$0xff]
        %v1277 = vld [vmem:[#allocation2 + $0x418] sm:$0xff]
        %v1278 = vld [vmem:[#allocation2 + $0x420] sm:$0xff]
        %v1279 = vld [vmem:[#allocation2 + $0x428] sm:$0xff]
        %v1280 = vld [vmem:[#allocation2 + $0x430] sm:$0xff]
        %v1281 = vld [vmem:[#allocation2 + $0x438] sm:$0xff]
        %v1282 = vld [vmem:[#allocation2 + $0x440] sm:$0xff]
        %v1283 = vld [vmem:[#allocation2 + $0x448] sm:$0xff]
        %v1284 = vld [vmem:[#allocation2 + $0x450] sm:$0xff]
        %v1285 = vld [vmem:[#allocation2 + $0x458] sm:$0xff]
        %v1286 = vld [vmem:[#allocation2 + $0x460] sm:$0xff]
        %v1287 = vld [vmem:[#allocation2 + $0x468] sm:$0xff]
        %v1288 = vld [vmem:[#allocation2 + $0x470] sm:$0xff]
        %v1289 = vld [vmem:[#allocation2 + $0x478] sm:$0xff]
        %v1290 = vld [vmem:[#allocation2 + $0x480] sm:$0xff]
        %v1291 = vld [vmem:[#allocation2 + $0x488] sm:$0xff]
        %v1292 = vld [vmem:[#allocation2 + $0x490] sm:$0xff]
        %v1293 = vld [vmem:[#allocation2 + $0x498] sm:$0xff]
        %v1294 = vld [vmem:[#allocation2 + $0x4a0] sm:$0xff]
        %v1295 = vld [vmem:[#allocation2 + $0x4a8] sm:$0xff]
        %v1296 = vld [vmem:[#allocation2 + $0x4b0] sm:$0xff]
        %v1297 = vld [vmem:[#allocation2 + $0x4b8] sm:$0xff]
        %v1298 = vld [vmem:[#allocation2 + $0x4c0] sm:$0xff]
        %v1299 = vld [vmem:[#allocation2 + $0x4c8] sm:$0xff]
        %v1300 = vld [vmem:[#allocation2 + $0x4d0] sm:$0xff]
        %v1301 = vld [vmem:[#allocation2 + $0x4d8] sm:$0xff]
        %v1302 = vld [vmem:[#allocation2 + $0x4e0] sm:$0xff]
        %v1303 = vld [vmem:[#allocation2 + $0x4e8] sm:$0xff]
        %v1304 = vld [vmem:[#allocation2 + $0x4f0] sm:$0xff]
        %v1305 = vld [vmem:[#allocation2 + $0x4f8] sm:$0xff]
        %v1306 = vld [vmem:[#allocation2 + $0x500] sm:$0xff]
        %v1307 = vld [vmem:[#allocation2 + $0x508] sm:$0xff]
        %v1308 = vld [vmem:[#allocation2 + $0x510] sm:$0xff]
        %v1309 = vld [vmem:[#allocation2 + $0x518] sm:$0xff]
        %v1310 = vld [vmem:[#allocation2 + $0x520] sm:$0xff]
        %v1311 = vld [vmem:[#allocation2 + $0x528] sm:$0xff]
        %v1312 = vld [vmem:[#allocation2 + $0x530] sm:$0xff]
        %v1313 = vld [vmem:[#allocation2 + $0x538] sm:$0xff]
        %v1314 = vld [vmem:[#allocation2 + $0x540] sm:$0xff]
        %v1315 = vld [vmem:[#allocation2 + $0x548] sm:$0xff]
        %v1316 = vld [vmem:[#allocation2 + $0x550] sm:$0xff]
        %v1317 = vld [vmem:[#allocation2 + $0x558] sm:$0xff]
        %v1318 = vld [vmem:[#allocation2 + $0x560] sm:$0xff]
        %v1319 = vld [vmem:[#allocation2 + $0x568] sm:$0xff]
        %v1320 = vld [vmem:[#allocation2 + $0x570] sm:$0xff]
        %v1321 = vld [vmem:[#allocation2 + $0x578] sm:$0xff]
        %v1322 = vld [vmem:[#allocation2 + $0x580] sm:$0xff]
        %v1323 = vld [vmem:[#allocation2 + $0x588] sm:$0xff]
        %v1324 = vld [vmem:[#allocation2 + $0x590] sm:$0xff]
        %v1325 = vld [vmem:[#allocation2 + $0x598] sm:$0xff]
        %v1326 = vld [vmem:[#allocation2 + $0x5a0] sm:$0xff]
        %v1327 = vld [vmem:[#allocation2 + $0x5a8] sm:$0xff]
        %v1328 = vld [vmem:[#allocation2 + $0x5b0] sm:$0xff]
        %v1329 = vld [vmem:[#allocation2 + $0x5b8] sm:$0xff]
        %v1330 = vld [vmem:[#allocation2 + $0x5c0] sm:$0xff]
        %v1331 = vld [vmem:[#allocation2 + $0x5c8] sm:$0xff]
        %v1332 = vld [vmem:[#allocation2 + $0x5d0] sm:$0xff]
        %v1333 = vld [vmem:[#allocation2 + $0x5d8] sm:$0xff]
        %v1334 = vld [vmem:[#allocation2 + $0x5e0] sm:$0xff]
        %v1335 = vld [vmem:[#allocation2 + $0x5e8] sm:$0xff]
        %v1336 = vld [vmem:[#allocation2 + $0x5f0] sm:$0xff]
        %v1337 = vld [vmem:[#allocation2 + $0x5f8] sm:$0xff]
        %v1338 = vld [vmem:[#allocation2 + $0x600] sm:$0xff]
        %v1339 = vld [vmem:[#allocation2 + $0x608] sm:$0xff]
        %v1340 = vld [vmem:[#allocation2 + $0x610] sm:$0xff]
        %v1341 = vld [vmem:[#allocation2 + $0x618] sm:$0xff]
        %v1342 = vld [vmem:[#allocation2 + $0x620] sm:$0xff]
        %v1343 = vld [vmem:[#allocation2 + $0x628] sm:$0xff]
        %v1344 = vld [vmem:[#allocation2 + $0x630] sm:$0xff]
        %v1345 = vld [vmem:[#allocation2 + $0x638] sm:$0xff]
        %v1346 = vld [vmem:[#allocation2 + $0x640] sm:$0xff]
        %v1347 = vld [vmem:[#allocation2 + $0x648] sm:$0xff]
        %v1348 = vld [vmem:[#allocation2 + $0x650] sm:$0xff]
        %v1349 = vld [vmem:[#allocation2 + $0x658] sm:$0xff]
        %v1350 = vld [vmem:[#allocation2 + $0x660] sm:$0xff]
        %v1351 = vld [vmem:[#allocation2 + $0x668] sm:$0xff]
        %v1352 = vld [vmem:[#allocation2 + $0x670] sm:$0xff]
        %v1353 = vld [vmem:[#allocation2 + $0x678] sm:$0xff]
        %v1354 = vld [vmem:[#allocation2 + $0x680] sm:$0xff]
        %v1355 = vld [vmem:[#allocation2 + $0x688] sm:$0xff]
        %v1356 = vld [vmem:[#allocation2 + $0x690] sm:$0xff]
        %v1357 = vld [vmem:[#allocation2 + $0x698] sm:$0xff]
        %v1358 = vld [vmem:[#allocation2 + $0x6a0] sm:$0xff]
        %v1359 = vld [vmem:[#allocation2 + $0x6a8] sm:$0xff]
        %v1360 = vld [vmem:[#allocation2 + $0x6b0] sm:$0xff]
        %v1361 = vld [vmem:[#allocation2 + $0x6b8] sm:$0xff]
        %v1362 = vld [vmem:[#allocation2 + $0x6c0] sm:$0xff]
        %v1363 = vld [vmem:[#allocation2 + $0x6c8] sm:$0xff]
        %v1364 = vld [vmem:[#allocation2 + $0x6d0] sm:$0xff]
        %v1365 = vld [vmem:[#allocation2 + $0x6d8] sm:$0xff]
        %v1366 = vld [vmem:[#allocation2 + $0x6e0] sm:$0xff]
        %v1367 = vld [vmem:[#allocation2 + $0x6e8] sm:$0xff]
        %v1368 = vld [vmem:[#allocation2 + $0x6f0] sm:$0xff]
        %v1369 = vld [vmem:[#allocation2 + $0x6f8] sm:$0xff]
        %v1370 = vld [vmem:[#allocation2 + $0x700] sm:$0xff]
        %v1371 = vld [vmem:[#allocation2 + $0x708] sm:$0xff]
        %v1372 = vld [vmem:[#allocation2 + $0x710] sm:$0xff]
        %v1373 = vld [vmem:[#allocation2 + $0x718] sm:$0xff]
        %v1374 = vld [vmem:[#allocation2 + $0x720] sm:$0xff]
        %v1375 = vld [vmem:[#allocation2 + $0x728] sm:$0xff]
        %v1376 = vld [vmem:[#allocation2 + $0x730] sm:$0xff]
        %v1377 = vld [vmem:[#allocation2 + $0x738] sm:$0xff]
        %v1378 = vld [vmem:[#allocation2 + $0x740] sm:$0xff]
        %v1379 = vld [vmem:[#allocation2 + $0x748] sm:$0xff]
        %v1380 = vld [vmem:[#allocation2 + $0x750] sm:$0xff]
        %v1381 = vld [vmem:[#allocation2 + $0x758] sm:$0xff]
        %v1382 = vld [vmem:[#allocation2 + $0x760] sm:$0xff]
        %v1383 = vld [vmem:[#allocation2 + $0x768] sm:$0xff]
        %v1384 = vld [vmem:[#allocation2 + $0x770] sm:$0xff]
        %v1385 = vld [vmem:[#allocation2 + $0x778] sm:$0xff]
        %v1386 = vld [vmem:[#allocation2 + $0x780] sm:$0xff]
        %v1387 = vld [vmem:[#allocation2 + $0x788] sm:$0xff]
        %v1388 = vld [vmem:[#allocation2 + $0x790] sm:$0xff]
        %v1389 = vld [vmem:[#allocation2 + $0x798] sm:$0xff]
        %v1390 = vld [vmem:[#allocation2 + $0x7a0] sm:$0xff]
        %v1391 = vld [vmem:[#allocation2 + $0x7a8] sm:$0xff]
        %v1392 = vld [vmem:[#allocation2 + $0x7b0] sm:$0xff]
        %v1393 = vld [vmem:[#allocation2 + $0x7b8] sm:$0xff]
        %v1394 = vld [vmem:[#allocation2 + $0x7c0] sm:$0xff]
        %v1395 = vld [vmem:[#allocation2 + $0x7c8] sm:$0xff]
        %v1396 = vld [vmem:[#allocation2 + $0x7d0] sm:$0xff]
        %v1397 = vld [vmem:[#allocation2 + $0x7d8] sm:$0xff]
        %v1398 = vld [vmem:[#allocation2 + $0x7e0] sm:$0xff]
        %v1399 = vld [vmem:[#allocation2 + $0x7e8] sm:$0xff]
        %v1400 = vld [vmem:[#allocation2 + $0x7f0] sm:$0xff]
        %v1401 = vld [vmem:[#allocation2 + $0x7f8] sm:$0xff]
        %v1402 = vld [vmem:[%s5] sm:$0xff]
        %v1404 = vperm.slane %v1402, 0
        %v1405 = vperm.slane %v1402, 1
        %v1406 = vperm.slane %v1402, 2
        %v1407 = vperm.slane %v1402, 3
        %v1408 = vperm.slane %v1402, 4
        %v1409 = vperm.slane %v1402, 5
        %v1410 = vperm.slane %v1402, 6
        %v1411 = vperm.slane %v1402, 7
        %v1676 = vunpack.c.l.b16 %v1146
        %v1677 = vunpack.c.h.b16 %v1146
        %v1678 = vunpack.c.l.b16 %v1147
        %v1679 = vunpack.c.h.b16 %v1147
        %v1680 = vunpack.c.l.b16 %v1148
        %v1681 = vunpack.c.h.b16 %v1148
        %v1682 = vunpack.c.l.b16 %v1149
        %v1683 = vunpack.c.h.b16 %v1149
        %v1684 = vunpack.c.l.b16 %v1150
        %v1685 = vunpack.c.h.b16 %v1150
        %v1686 = vunpack.c.l.b16 %v1151
        %v1687 = vunpack.c.h.b16 %v1151
        %v1688 = vunpack.c.l.b16 %v1152
        %v1689 = vunpack.c.h.b16 %v1152
        %v1690 = vunpack.c.l.b16 %v1153
        %v1691 = vunpack.c.h.b16 %v1153
        %v1692 = vunpack.c.l.b16 %v1154
        %v1693 = vunpack.c.h.b16 %v1154
        %v1694 = vunpack.c.l.b16 %v1155
        %v1695 = vunpack.c.h.b16 %v1155
        %v1696 = vunpack.c.l.b16 %v1156
        %v1697 = vunpack.c.h.b16 %v1156
        %v1698 = vunpack.c.l.b16 %v1157
        %v1699 = vunpack.c.h.b16 %v1157
        %v1700 = vunpack.c.l.b16 %v1158
        %v1701 = vunpack.c.h.b16 %v1158
        %v1702 = vunpack.c.l.b16 %v1159
        %v1703 = vunpack.c.h.b16 %v1159
        %v1704 = vunpack.c.l.b16 %v1160
        %v1705 = vunpack.c.h.b16 %v1160
        %v1706 = vunpack.c.l.b16 %v1161
        %v1707 = vunpack.c.h.b16 %v1161
        %v1708 = vunpack.c.l.b16 %v1162
        %v1709 = vunpack.c.h.b16 %v1162
        %v1710 = vunpack.c.l.b16 %v1163
        %v1711 = vunpack.c.h.b16 %v1163
        %v1712 = vunpack.c.l.b16 %v1164
        %v1713 = vunpack.c.h.b16 %v1164
        %v1714 = vunpack.c.l.b16 %v1165
        %v1715 = vunpack.c.h.b16 %v1165
        %v1716 = vunpack.c.l.b16 %v1166
        %v1717 = vunpack.c.h.b16 %v1166
        %v1718 = vunpack.c.l.b16 %v1167
        %v1719 = vunpack.c.h.b16 %v1167
        %v1720 = vunpack.c.l.b16 %v1168
        %v1721 = vunpack.c.h.b16 %v1168
        %v1722 = vunpack.c.l.b16 %v1169
        %v1723 = vunpack.c.h.b16 %v1169
        %v1724 = vunpack.c.l.b16 %v1170
        %v1725 = vunpack.c.h.b16 %v1170
        %v1726 = vunpack.c.l.b16 %v1171
        %v1727 = vunpack.c.h.b16 %v1171
        %v1728 = vunpack.c.l.b16 %v1172
        %v1729 = vunpack.c.h.b16 %v1172
        %v1730 = vunpack.c.l.b16 %v1173
        %v1731 = vunpack.c.h.b16 %v1173
        %v1732 = vunpack.c.l.b16 %v1174
        %v1733 = vunpack.c.h.b16 %v1174
        %v1734 = vunpack.c.l.b16 %v1175
        %v1735 = vunpack.c.h.b16 %v1175
        %v1736 = vunpack.c.l.b16 %v1176
        %v1737 = vunpack.c.h.b16 %v1176
        %v1738 = vunpack.c.l.b16 %v1177
        %v1739 = vunpack.c.h.b16 %v1177
        %v1740 = vunpack.c.l.b16 %v1178
        %v1741 = vunpack.c.h.b16 %v1178
        %v1742 = vunpack.c.l.b16 %v1179
        %v1743 = vunpack.c.h.b16 %v1179
        %v1744 = vunpack.c.l.b16 %v1180
        %v1745 = vunpack.c.h.b16 %v1180
        %v1746 = vunpack.c.l.b16 %v1181
        %v1747 = vunpack.c.h.b16 %v1181
        %v1748 = vunpack.c.l.b16 %v1182
        %v1749 = vunpack.c.h.b16 %v1182
        %v1750 = vunpack.c.l.b16 %v1183
        %v1751 = vunpack.c.h.b16 %v1183
        %v1752 = vunpack.c.l.b16 %v1184
        %v1753 = vunpack.c.h.b16 %v1184
        %v1754 = vunpack.c.l.b16 %v1185
        %v1755 = vunpack.c.h.b16 %v1185
        %v1756 = vunpack.c.l.b16 %v1186
        %v1757 = vunpack.c.h.b16 %v1186
        %v1758 = vunpack.c.l.b16 %v1187
        %v1759 = vunpack.c.h.b16 %v1187
        %v1760 = vunpack.c.l.b16 %v1188
        %v1761 = vunpack.c.h.b16 %v1188
        %v1762 = vunpack.c.l.b16 %v1189
        %v1763 = vunpack.c.h.b16 %v1189
        %v1764 = vunpack.c.l.b16 %v1190
        %v1765 = vunpack.c.h.b16 %v1190
        %v1766 = vunpack.c.l.b16 %v1191
        %v1767 = vunpack.c.h.b16 %v1191
        %v1768 = vunpack.c.l.b16 %v1192
        %v1769 = vunpack.c.h.b16 %v1192
        %v1770 = vunpack.c.l.b16 %v1193
        %v1771 = vunpack.c.h.b16 %v1193
        %v1772 = vunpack.c.l.b16 %v1194
        %v1773 = vunpack.c.h.b16 %v1194
        %v1774 = vunpack.c.l.b16 %v1195
        %v1775 = vunpack.c.h.b16 %v1195
        %v1776 = vunpack.c.l.b16 %v1196
        %v1777 = vunpack.c.h.b16 %v1196
        %v1778 = vunpack.c.l.b16 %v1197
        %v1779 = vunpack.c.h.b16 %v1197
        %v1780 = vunpack.c.l.b16 %v1198
        %v1781 = vunpack.c.h.b16 %v1198
        %v1782 = vunpack.c.l.b16 %v1199
        %v1783 = vunpack.c.h.b16 %v1199
        %v1784 = vunpack.c.l.b16 %v1200
        %v1785 = vunpack.c.h.b16 %v1200
        %v1786 = vunpack.c.l.b16 %v1201
        %v1787 = vunpack.c.h.b16 %v1201
        %v1788 = vunpack.c.l.b16 %v1202
        %v1789 = vunpack.c.h.b16 %v1202
        %v1790 = vunpack.c.l.b16 %v1203
        %v1791 = vunpack.c.h.b16 %v1203
        %v1792 = vunpack.c.l.b16 %v1204
        %v1793 = vunpack.c.h.b16 %v1204
        %v1794 = vunpack.c.l.b16 %v1205
        %v1795 = vunpack.c.h.b16 %v1205
        %v1796 = vunpack.c.l.b16 %v1206
        %v1797 = vunpack.c.h.b16 %v1206
        %v1798 = vunpack.c.l.b16 %v1207
        %v1799 = vunpack.c.h.b16 %v1207
        %v1800 = vunpack.c.l.b16 %v1208
        %v1801 = vunpack.c.h.b16 %v1208
        %v1802 = vunpack.c.l.b16 %v1209
        %v1803 = vunpack.c.h.b16 %v1209
        %v1804 = vunpack.c.l.b16 %v1210
        %v1805 = vunpack.c.h.b16 %v1210
        %v1806 = vunpack.c.l.b16 %v1211
        %v1807 = vunpack.c.h.b16 %v1211
        %v1808 = vunpack.c.l.b16 %v1212
        %v1809 = vunpack.c.h.b16 %v1212
        %v1810 = vunpack.c.l.b16 %v1213
        %v1811 = vunpack.c.h.b16 %v1213
        %v1812 = vunpack.c.l.b16 %v1214
        %v1813 = vunpack.c.h.b16 %v1214
        %v1814 = vunpack.c.l.b16 %v1215
        %v1815 = vunpack.c.h.b16 %v1215
        %v1816 = vunpack.c.l.b16 %v1216
        %v1817 = vunpack.c.h.b16 %v1216
        %v1818 = vunpack.c.l.b16 %v1217
        %v1819 = vunpack.c.h.b16 %v1217
        %v1820 = vunpack.c.l.b16 %v1218
        %v1821 = vunpack.c.h.b16 %v1218
        %v1822 = vunpack.c.l.b16 %v1219
        %v1823 = vunpack.c.h.b16 %v1219
        %v1824 = vunpack.c.l.b16 %v1220
        %v1825 = vunpack.c.h.b16 %v1220
        %v1826 = vunpack.c.l.b16 %v1221
        %v1827 = vunpack.c.h.b16 %v1221
        %v1828 = vunpack.c.l.b16 %v1222
        %v1829 = vunpack.c.h.b16 %v1222
        %v1830 = vunpack.c.l.b16 %v1223
        %v1831 = vunpack.c.h.b16 %v1223
        %v1832 = vunpack.c.l.b16 %v1224
        %v1833 = vunpack.c.h.b16 %v1224
        %v1834 = vunpack.c.l.b16 %v1225
        %v1835 = vunpack.c.h.b16 %v1225
        %v1836 = vunpack.c.l.b16 %v1226
        %v1837 = vunpack.c.h.b16 %v1226
        %v1838 = vunpack.c.l.b16 %v1227
        %v1839 = vunpack.c.h.b16 %v1227
        %v1840 = vunpack.c.l.b16 %v1228
        %v1841 = vunpack.c.h.b16 %v1228
        %v1842 = vunpack.c.l.b16 %v1229
        %v1843 = vunpack.c.h.b16 %v1229
        %v1844 = vunpack.c.l.b16 %v1230
        %v1845 = vunpack.c.h.b16 %v1230
        %v1846 = vunpack.c.l.b16 %v1231
        %v1847 = vunpack.c.h.b16 %v1231
        %v1848 = vunpack.c.l.b16 %v1232
        %v1849 = vunpack.c.h.b16 %v1232
        %v1850 = vunpack.c.l.b16 %v1233
        %v1851 = vunpack.c.h.b16 %v1233
        %v1852 = vunpack.c.l.b16 %v1234
        %v1853 = vunpack.c.h.b16 %v1234
        %v1854 = vunpack.c.l.b16 %v1235
        %v1855 = vunpack.c.h.b16 %v1235
        %v1856 = vunpack.c.l.b16 %v1236
        %v1857 = vunpack.c.h.b16 %v1236
        %v1858 = vunpack.c.l.b16 %v1237
        %v1859 = vunpack.c.h.b16 %v1237
        %v1860 = vunpack.c.l.b16 %v1238
        %v1861 = vunpack.c.h.b16 %v1238
        %v1862 = vunpack.c.l.b16 %v1239
        %v1863 = vunpack.c.h.b16 %v1239
        %v1864 = vunpack.c.l.b16 %v1240
        %v1865 = vunpack.c.h.b16 %v1240
        %v1866 = vunpack.c.l.b16 %v1241
        %v1867 = vunpack.c.h.b16 %v1241
        %v1868 = vunpack.c.l.b16 %v1242
        %v1869 = vunpack.c.h.b16 %v1242
        %v1870 = vunpack.c.l.b16 %v1243
        %v1871 = vunpack.c.h.b16 %v1243
        %v1872 = vunpack.c.l.b16 %v1244
        %v1873 = vunpack.c.h.b16 %v1244
        %v1874 = vunpack.c.l.b16 %v1245
        %v1875 = vunpack.c.h.b16 %v1245
        %v1876 = vunpack.c.l.b16 %v1246
        %v1877 = vunpack.c.h.b16 %v1246
        %v1878 = vunpack.c.l.b16 %v1247
        %v1879 = vunpack.c.h.b16 %v1247
        %v1880 = vunpack.c.l.b16 %v1248
        %v1881 = vunpack.c.h.b16 %v1248
        %v1882 = vunpack.c.l.b16 %v1249
        %v1883 = vunpack.c.h.b16 %v1249
        %v1884 = vunpack.c.l.b16 %v1250
        %v1885 = vunpack.c.h.b16 %v1250
        %v1886 = vunpack.c.l.b16 %v1251
        %v1887 = vunpack.c.h.b16 %v1251
        %v1888 = vunpack.c.l.b16 %v1252
        %v1889 = vunpack.c.h.b16 %v1252
        %v1890 = vunpack.c.l.b16 %v1253
        %v1891 = vunpack.c.h.b16 %v1253
        %v1892 = vunpack.c.l.b16 %v1254
        %v1893 = vunpack.c.h.b16 %v1254
        %v1894 = vunpack.c.l.b16 %v1255
        %v1895 = vunpack.c.h.b16 %v1255
        %v1896 = vunpack.c.l.b16 %v1256
        %v1897 = vunpack.c.h.b16 %v1256
        %v1898 = vunpack.c.l.b16 %v1257
        %v1899 = vunpack.c.h.b16 %v1257
        %v1900 = vunpack.c.l.b16 %v1258
        %v1901 = vunpack.c.h.b16 %v1258
        %v1902 = vunpack.c.l.b16 %v1259
        %v1903 = vunpack.c.h.b16 %v1259
        %v1904 = vunpack.c.l.b16 %v1260
        %v1905 = vunpack.c.h.b16 %v1260
        %v1906 = vunpack.c.l.b16 %v1261
        %v1907 = vunpack.c.h.b16 %v1261
        %v1908 = vunpack.c.l.b16 %v1262
        %v1909 = vunpack.c.h.b16 %v1262
        %v1910 = vunpack.c.l.b16 %v1263
        %v1911 = vunpack.c.h.b16 %v1263
        %v1912 = vunpack.c.l.b16 %v1264
        %v1913 = vunpack.c.h.b16 %v1264
        %v1914 = vunpack.c.l.b16 %v1265
        %v1915 = vunpack.c.h.b16 %v1265
        %v1916 = vunpack.c.l.b16 %v1266
        %v1917 = vunpack.c.h.b16 %v1266
        %v1918 = vunpack.c.l.b16 %v1267
        %v1919 = vunpack.c.h.b16 %v1267
        %v1920 = vunpack.c.l.b16 %v1268
        %v1921 = vunpack.c.h.b16 %v1268
        %v1922 = vunpack.c.l.b16 %v1269
        %v1923 = vunpack.c.h.b16 %v1269
        %v1924 = vunpack.c.l.b16 %v1270
        %v1925 = vunpack.c.h.b16 %v1270
        %v1926 = vunpack.c.l.b16 %v1271
        %v1927 = vunpack.c.h.b16 %v1271
        %v1928 = vunpack.c.l.b16 %v1272
        %v1929 = vunpack.c.h.b16 %v1272
        %v1930 = vunpack.c.l.b16 %v1273
        %v1931 = vunpack.c.h.b16 %v1273
        %v1932 = vunpack.c.l.b16 %v1274
        %v1933 = vunpack.c.h.b16 %v1274
        %v1934 = vunpack.c.l.b16 %v1275
        %v1935 = vunpack.c.h.b16 %v1275
        %v1936 = vunpack.c.l.b16 %v1276
        %v1937 = vunpack.c.h.b16 %v1276
        %v1938 = vunpack.c.l.b16 %v1277
        %v1939 = vunpack.c.h.b16 %v1277
        %v1940 = vunpack.c.l.b16 %v1278
        %v1941 = vunpack.c.h.b16 %v1278
        %v1942 = vunpack.c.l.b16 %v1279
        %v1943 = vunpack.c.h.b16 %v1279
        %v1944 = vunpack.c.l.b16 %v1280
        %v1945 = vunpack.c.h.b16 %v1280
        %v1946 = vunpack.c.l.b16 %v1281
        %v1947 = vunpack.c.h.b16 %v1281
        %v1948 = vunpack.c.l.b16 %v1282
        %v1949 = vunpack.c.h.b16 %v1282
        %v1950 = vunpack.c.l.b16 %v1283
        %v1951 = vunpack.c.h.b16 %v1283
        %v1952 = vunpack.c.l.b16 %v1284
        %v1953 = vunpack.c.h.b16 %v1284
        %v1954 = vunpack.c.l.b16 %v1285
        %v1955 = vunpack.c.h.b16 %v1285
        %v1956 = vunpack.c.l.b16 %v1286
        %v1957 = vunpack.c.h.b16 %v1286
        %v1958 = vunpack.c.l.b16 %v1287
        %v1959 = vunpack.c.h.b16 %v1287
        %v1960 = vunpack.c.l.b16 %v1288
        %v1961 = vunpack.c.h.b16 %v1288
        %v1962 = vunpack.c.l.b16 %v1289
        %v1963 = vunpack.c.h.b16 %v1289
        %v1964 = vunpack.c.l.b16 %v1290
        %v1965 = vunpack.c.h.b16 %v1290
        %v1966 = vunpack.c.l.b16 %v1291
        %v1967 = vunpack.c.h.b16 %v1291
        %v1968 = vunpack.c.l.b16 %v1292
        %v1969 = vunpack.c.h.b16 %v1292
        %v1970 = vunpack.c.l.b16 %v1293
        %v1971 = vunpack.c.h.b16 %v1293
        %v1972 = vunpack.c.l.b16 %v1294
        %v1973 = vunpack.c.h.b16 %v1294
        %v1974 = vunpack.c.l.b16 %v1295
        %v1975 = vunpack.c.h.b16 %v1295
        %v1976 = vunpack.c.l.b16 %v1296
        %v1977 = vunpack.c.h.b16 %v1296
        %v1978 = vunpack.c.l.b16 %v1297
        %v1979 = vunpack.c.h.b16 %v1297
        %v1980 = vunpack.c.l.b16 %v1298
        %v1981 = vunpack.c.h.b16 %v1298
        %v1982 = vunpack.c.l.b16 %v1299
        %v1983 = vunpack.c.h.b16 %v1299
        %v1984 = vunpack.c.l.b16 %v1300
        %v1985 = vunpack.c.h.b16 %v1300
        %v1986 = vunpack.c.l.b16 %v1301
        %v1987 = vunpack.c.h.b16 %v1301
        %v1988 = vunpack.c.l.b16 %v1302
        %v1989 = vunpack.c.h.b16 %v1302
        %v1990 = vunpack.c.l.b16 %v1303
        %v1991 = vunpack.c.h.b16 %v1303
        %v1992 = vunpack.c.l.b16 %v1304
        %v1993 = vunpack.c.h.b16 %v1304
        %v1994 = vunpack.c.l.b16 %v1305
        %v1995 = vunpack.c.h.b16 %v1305
        %v1996 = vunpack.c.l.b16 %v1306
        %v1997 = vunpack.c.h.b16 %v1306
        %v1998 = vunpack.c.l.b16 %v1307
        %v1999 = vunpack.c.h.b16 %v1307
        %v2000 = vunpack.c.l.b16 %v1308
        %v2001 = vunpack.c.h.b16 %v1308
        %v2002 = vunpack.c.l.b16 %v1309
        %v2003 = vunpack.c.h.b16 %v1309
        %v2004 = vunpack.c.l.b16 %v1310
        %v2005 = vunpack.c.h.b16 %v1310
        %v2006 = vunpack.c.l.b16 %v1311
        %v2007 = vunpack.c.h.b16 %v1311
        %v2008 = vunpack.c.l.b16 %v1312
        %v2009 = vunpack.c.h.b16 %v1312
        %v2010 = vunpack.c.l.b16 %v1313
        %v2011 = vunpack.c.h.b16 %v1313
        %v2012 = vunpack.c.l.b16 %v1314
        %v2013 = vunpack.c.h.b16 %v1314
        %v2014 = vunpack.c.l.b16 %v1315
        %v2015 = vunpack.c.h.b16 %v1315
        %v2016 = vunpack.c.l.b16 %v1316
        %v2017 = vunpack.c.h.b16 %v1316
        %v2018 = vunpack.c.l.b16 %v1317
        %v2019 = vunpack.c.h.b16 %v1317
        %v2020 = vunpack.c.l.b16 %v1318
        %v2021 = vunpack.c.h.b16 %v1318
        %v2022 = vunpack.c.l.b16 %v1319
        %v2023 = vunpack.c.h.b16 %v1319
        %v2024 = vunpack.c.l.b16 %v1320
        %v2025 = vunpack.c.h.b16 %v1320
        %v2026 = vunpack.c.l.b16 %v1321
        %v2027 = vunpack.c.h.b16 %v1321
        %v2028 = vunpack.c.l.b16 %v1322
        %v2029 = vunpack.c.h.b16 %v1322
        %v2030 = vunpack.c.l.b16 %v1323
        %v2031 = vunpack.c.h.b16 %v1323
        %v2032 = vunpack.c.l.b16 %v1324
        %v2033 = vunpack.c.h.b16 %v1324
        %v2034 = vunpack.c.l.b16 %v1325
        %v2035 = vunpack.c.h.b16 %v1325
        %v2036 = vunpack.c.l.b16 %v1326
        %v2037 = vunpack.c.h.b16 %v1326
        %v2038 = vunpack.c.l.b16 %v1327
        %v2039 = vunpack.c.h.b16 %v1327
        %v2040 = vunpack.c.l.b16 %v1328
        %v2041 = vunpack.c.h.b16 %v1328
        %v2042 = vunpack.c.l.b16 %v1329
        %v2043 = vunpack.c.h.b16 %v1329
        %v2044 = vunpack.c.l.b16 %v1330
        %v2045 = vunpack.c.h.b16 %v1330
        %v2046 = vunpack.c.l.b16 %v1331
        %v2047 = vunpack.c.h.b16 %v1331
        %v2048 = vunpack.c.l.b16 %v1332
        %v2049 = vunpack.c.h.b16 %v1332
        %v2050 = vunpack.c.l.b16 %v1333
        %v2051 = vunpack.c.h.b16 %v1333
        %v2052 = vunpack.c.l.b16 %v1334
        %v2053 = vunpack.c.h.b16 %v1334
        %v2054 = vunpack.c.l.b16 %v1335
        %v2055 = vunpack.c.h.b16 %v1335
        %v2056 = vunpack.c.l.b16 %v1336
        %v2057 = vunpack.c.h.b16 %v1336
        %v2058 = vunpack.c.l.b16 %v1337
        %v2059 = vunpack.c.h.b16 %v1337
        %v2060 = vunpack.c.l.b16 %v1338
        %v2061 = vunpack.c.h.b16 %v1338
        %v2062 = vunpack.c.l.b16 %v1339
        %v2063 = vunpack.c.h.b16 %v1339
        %v2064 = vunpack.c.l.b16 %v1340
        %v2065 = vunpack.c.h.b16 %v1340
        %v2066 = vunpack.c.l.b16 %v1341
        %v2067 = vunpack.c.h.b16 %v1341
        %v2068 = vunpack.c.l.b16 %v1342
        %v2069 = vunpack.c.h.b16 %v1342
        %v2070 = vunpack.c.l.b16 %v1343
        %v2071 = vunpack.c.h.b16 %v1343
        %v2072 = vunpack.c.l.b16 %v1344
        %v2073 = vunpack.c.h.b16 %v1344
        %v2074 = vunpack.c.l.b16 %v1345
        %v2075 = vunpack.c.h.b16 %v1345
        %v2076 = vunpack.c.l.b16 %v1346
        %v2077 = vunpack.c.h.b16 %v1346
        %v2078 = vunpack.c.l.b16 %v1347
        %v2079 = vunpack.c.h.b16 %v1347
        %v2080 = vunpack.c.l.b16 %v1348
        %v2081 = vunpack.c.h.b16 %v1348
        %v2082 = vunpack.c.l.b16 %v1349
        %v2083 = vunpack.c.h.b16 %v1349
        %v2084 = vunpack.c.l.b16 %v1350
        %v2085 = vunpack.c.h.b16 %v1350
        %v2086 = vunpack.c.l.b16 %v1351
        %v2087 = vunpack.c.h.b16 %v1351
        %v2088 = vunpack.c.l.b16 %v1352
        %v2089 = vunpack.c.h.b16 %v1352
        %v2090 = vunpack.c.l.b16 %v1353
        %v2091 = vunpack.c.h.b16 %v1353
        %v2092 = vunpack.c.l.b16 %v1354
        %v2093 = vunpack.c.h.b16 %v1354
        %v2094 = vunpack.c.l.b16 %v1355
        %v2095 = vunpack.c.h.b16 %v1355
        %v2096 = vunpack.c.l.b16 %v1356
        %v2097 = vunpack.c.h.b16 %v1356
        %v2098 = vunpack.c.l.b16 %v1357
        %v2099 = vunpack.c.h.b16 %v1357
        %v2100 = vunpack.c.l.b16 %v1358
        %v2101 = vunpack.c.h.b16 %v1358
        %v2102 = vunpack.c.l.b16 %v1359
        %v2103 = vunpack.c.h.b16 %v1359
        %v2104 = vunpack.c.l.b16 %v1360
        %v2105 = vunpack.c.h.b16 %v1360
        %v2106 = vunpack.c.l.b16 %v1361
        %v2107 = vunpack.c.h.b16 %v1361
        %v2108 = vunpack.c.l.b16 %v1362
        %v2109 = vunpack.c.h.b16 %v1362
        %v2110 = vunpack.c.l.b16 %v1363
        %v2111 = vunpack.c.h.b16 %v1363
        %v2112 = vunpack.c.l.b16 %v1364
        %v2113 = vunpack.c.h.b16 %v1364
        %v2114 = vunpack.c.l.b16 %v1365
        %v2115 = vunpack.c.h.b16 %v1365
        %v2116 = vunpack.c.l.b16 %v1366
        %v2117 = vunpack.c.h.b16 %v1366
        %v2118 = vunpack.c.l.b16 %v1367
        %v2119 = vunpack.c.h.b16 %v1367
        %v2120 = vunpack.c.l.b16 %v1368
        %v2121 = vunpack.c.h.b16 %v1368
        %v2122 = vunpack.c.l.b16 %v1369
        %v2123 = vunpack.c.h.b16 %v1369
        %v2124 = vunpack.c.l.b16 %v1370
        %v2125 = vunpack.c.h.b16 %v1370
        %v2126 = vunpack.c.l.b16 %v1371
        %v2127 = vunpack.c.h.b16 %v1371
        %v2128 = vunpack.c.l.b16 %v1372
        %v2129 = vunpack.c.h.b16 %v1372
        %v2130 = vunpack.c.l.b16 %v1373
        %v2131 = vunpack.c.h.b16 %v1373
        %v2132 = vunpack.c.l.b16 %v1374
        %v2133 = vunpack.c.h.b16 %v1374
        %v2134 = vunpack.c.l.b16 %v1375
        %v2135 = vunpack.c.h.b16 %v1375
        %v2136 = vunpack.c.l.b16 %v1376
        %v2137 = vunpack.c.h.b16 %v1376
        %v2138 = vunpack.c.l.b16 %v1377
        %v2139 = vunpack.c.h.b16 %v1377
        %v2140 = vunpack.c.l.b16 %v1378
        %v2141 = vunpack.c.h.b16 %v1378
        %v2142 = vunpack.c.l.b16 %v1379
        %v2143 = vunpack.c.h.b16 %v1379
        %v2144 = vunpack.c.l.b16 %v1380
        %v2145 = vunpack.c.h.b16 %v1380
        %v2146 = vunpack.c.l.b16 %v1381
        %v2147 = vunpack.c.h.b16 %v1381
        %v2148 = vunpack.c.l.b16 %v1382
        %v2149 = vunpack.c.h.b16 %v1382
        %v2150 = vunpack.c.l.b16 %v1383
        %v2151 = vunpack.c.h.b16 %v1383
        %v2152 = vunpack.c.l.b16 %v1384
        %v2153 = vunpack.c.h.b16 %v1384
        %v2154 = vunpack.c.l.b16 %v1385
        %v2155 = vunpack.c.h.b16 %v1385
        %v2156 = vunpack.c.l.b16 %v1386
        %v2157 = vunpack.c.h.b16 %v1386
        %v2158 = vunpack.c.l.b16 %v1387
        %v2159 = vunpack.c.h.b16 %v1387
        %v2160 = vunpack.c.l.b16 %v1388
        %v2161 = vunpack.c.h.b16 %v1388
        %v2162 = vunpack.c.l.b16 %v1389
        %v2163 = vunpack.c.h.b16 %v1389
        %v2164 = vunpack.c.l.b16 %v1390
        %v2165 = vunpack.c.h.b16 %v1390
        %v2166 = vunpack.c.l.b16 %v1391
        %v2167 = vunpack.c.h.b16 %v1391
        %v2168 = vunpack.c.l.b16 %v1392
        %v2169 = vunpack.c.h.b16 %v1392
        %v2170 = vunpack.c.l.b16 %v1393
        %v2171 = vunpack.c.h.b16 %v1393
        %v2172 = vunpack.c.l.b16 %v1394
        %v2173 = vunpack.c.h.b16 %v1394
        %v2174 = vunpack.c.l.b16 %v1395
        %v2175 = vunpack.c.h.b16 %v1395
        %v2176 = vunpack.c.l.b16 %v1396
        %v2177 = vunpack.c.h.b16 %v1396
        %v2178 = vunpack.c.l.b16 %v1397
        %v2179 = vunpack.c.h.b16 %v1397
        %v2180 = vunpack.c.l.b16 %v1398
        %v2181 = vunpack.c.h.b16 %v1398
        %v2182 = vunpack.c.l.b16 %v1399
        %v2183 = vunpack.c.h.b16 %v1399
        %v2184 = vunpack.c.l.b16 %v1400
        %v2185 = vunpack.c.h.b16 %v1400
        %v2186 = vunpack.c.l.b16 %v1401
        %v2187 = vunpack.c.h.b16 %v1401
        %v2188 = vpack.c.b16 %v1684, %v1676
        %v2189 = vpack.c.b16 %v1685, %v1677
        %v2190 = vpack.c.b16 %v1686, %v1678
        %v2191 = vpack.c.b16 %v1687, %v1679
        %v2192 = vpack.c.b16 %v1688, %v1680
        %v2193 = vpack.c.b16 %v1689, %v1681
        %v2194 = vpack.c.b16 %v1690, %v1682
        %v2195 = vpack.c.b16 %v1691, %v1683
        %v2196 = vpack.c.b16 %v1700, %v1692
        %v2197 = vpack.c.b16 %v1701, %v1693
        %v2198 = vpack.c.b16 %v1702, %v1694
        %v2199 = vpack.c.b16 %v1703, %v1695
        %v2200 = vpack.c.b16 %v1704, %v1696
        %v2201 = vpack.c.b16 %v1705, %v1697
        %v2202 = vpack.c.b16 %v1706, %v1698
        %v2203 = vpack.c.b16 %v1707, %v1699
        %v2204 = vpack.c.b16 %v1716, %v1708
        %v2205 = vpack.c.b16 %v1717, %v1709
        %v2206 = vpack.c.b16 %v1718, %v1710
        %v2207 = vpack.c.b16 %v1719, %v1711
        %v2208 = vpack.c.b16 %v1720, %v1712
        %v2209 = vpack.c.b16 %v1721, %v1713
        %v2210 = vpack.c.b16 %v1722, %v1714
        %v2211 = vpack.c.b16 %v1723, %v1715
        %v2212 = vpack.c.b16 %v1732, %v1724
        %v2213 = vpack.c.b16 %v1733, %v1725
        %v2214 = vpack.c.b16 %v1734, %v1726
        %v2215 = vpack.c.b16 %v1735, %v1727
        %v2216 = vpack.c.b16 %v1736, %v1728
        %v2217 = vpack.c.b16 %v1737, %v1729
        %v2218 = vpack.c.b16 %v1738, %v1730
        %v2219 = vpack.c.b16 %v1739, %v1731
        %v2220 = vpack.c.b16 %v1748, %v1740
        %v2221 = vpack.c.b16 %v1749, %v1741
        %v2222 = vpack.c.b16 %v1750, %v1742
        %v2223 = vpack.c.b16 %v1751, %v1743
        %v2224 = vpack.c.b16 %v1752, %v1744
        %v2225 = vpack.c.b16 %v1753, %v1745
        %v2226 = vpack.c.b16 %v1754, %v1746
        %v2227 = vpack.c.b16 %v1755, %v1747
        %v2228 = vpack.c.b16 %v1764, %v1756
        %v2229 = vpack.c.b16 %v1765, %v1757
        %v2230 = vpack.c.b16 %v1766, %v1758
        %v2231 = vpack.c.b16 %v1767, %v1759
        %v2232 = vpack.c.b16 %v1768, %v1760
        %v2233 = vpack.c.b16 %v1769, %v1761
        %v2234 = vpack.c.b16 %v1770, %v1762
        %v2235 = vpack.c.b16 %v1771, %v1763
        %v2236 = vpack.c.b16 %v1780, %v1772
        %v2237 = vpack.c.b16 %v1781, %v1773
        %v2238 = vpack.c.b16 %v1782, %v1774
        %v2239 = vpack.c.b16 %v1783, %v1775
        %v2240 = vpack.c.b16 %v1784, %v1776
        %v2241 = vpack.c.b16 %v1785, %v1777
        %v2242 = vpack.c.b16 %v1786, %v1778
        %v2243 = vpack.c.b16 %v1787, %v1779
        %v2244 = vpack.c.b16 %v1796, %v1788
        %v2245 = vpack.c.b16 %v1797, %v1789
        %v2246 = vpack.c.b16 %v1798, %v1790
        %v2247 = vpack.c.b16 %v1799, %v1791
        %v2248 = vpack.c.b16 %v1800, %v1792
        %v2249 = vpack.c.b16 %v1801, %v1793
        %v2250 = vpack.c.b16 %v1802, %v1794
        %v2251 = vpack.c.b16 %v1803, %v1795
        %v2252 = vpack.c.b16 %v1812, %v1804
        %v2253 = vpack.c.b16 %v1813, %v1805
        %v2254 = vpack.c.b16 %v1814, %v1806
        %v2255 = vpack.c.b16 %v1815, %v1807
        %v2256 = vpack.c.b16 %v1816, %v1808
        %v2257 = vpack.c.b16 %v1817, %v1809
        %v2258 = vpack.c.b16 %v1818, %v1810
        %v2259 = vpack.c.b16 %v1819, %v1811
        %v2260 = vpack.c.b16 %v1828, %v1820
        %v2261 = vpack.c.b16 %v1829, %v1821
        %v2262 = vpack.c.b16 %v1830, %v1822
        %v2263 = vpack.c.b16 %v1831, %v1823
        %v2264 = vpack.c.b16 %v1832, %v1824
        %v2265 = vpack.c.b16 %v1833, %v1825
        %v2266 = vpack.c.b16 %v1834, %v1826
        %v2267 = vpack.c.b16 %v1835, %v1827
        %v2268 = vpack.c.b16 %v1844, %v1836
        %v2269 = vpack.c.b16 %v1845, %v1837
        %v2270 = vpack.c.b16 %v1846, %v1838
        %v2271 = vpack.c.b16 %v1847, %v1839
        %v2272 = vpack.c.b16 %v1848, %v1840
        %v2273 = vpack.c.b16 %v1849, %v1841
        %v2274 = vpack.c.b16 %v1850, %v1842
        %v2275 = vpack.c.b16 %v1851, %v1843
        %v2276 = vpack.c.b16 %v1860, %v1852
        %v2277 = vpack.c.b16 %v1861, %v1853
        %v2278 = vpack.c.b16 %v1862, %v1854
        %v2279 = vpack.c.b16 %v1863, %v1855
        %v2280 = vpack.c.b16 %v1864, %v1856
        %v2281 = vpack.c.b16 %v1865, %v1857
        %v2282 = vpack.c.b16 %v1866, %v1858
        %v2283 = vpack.c.b16 %v1867, %v1859
        %v2284 = vpack.c.b16 %v1876, %v1868
        %v2285 = vpack.c.b16 %v1877, %v1869
        %v2286 = vpack.c.b16 %v1878, %v1870
        %v2287 = vpack.c.b16 %v1879, %v1871
        %v2288 = vpack.c.b16 %v1880, %v1872
        %v2289 = vpack.c.b16 %v1881, %v1873
        %v2290 = vpack.c.b16 %v1882, %v1874
        %v2291 = vpack.c.b16 %v1883, %v1875
        %v2292 = vpack.c.b16 %v1892, %v1884
        %v2293 = vpack.c.b16 %v1893, %v1885
        %v2294 = vpack.c.b16 %v1894, %v1886
        %v2295 = vpack.c.b16 %v1895, %v1887
        %v2296 = vpack.c.b16 %v1896, %v1888
        %v2297 = vpack.c.b16 %v1897, %v1889
        %v2298 = vpack.c.b16 %v1898, %v1890
        %v2299 = vpack.c.b16 %v1899, %v1891
        %v2300 = vpack.c.b16 %v1908, %v1900
        %v2301 = vpack.c.b16 %v1909, %v1901
        %v2302 = vpack.c.b16 %v1910, %v1902
        %v2303 = vpack.c.b16 %v1911, %v1903
        %v2304 = vpack.c.b16 %v1912, %v1904
        %v2305 = vpack.c.b16 %v1913, %v1905
        %v2306 = vpack.c.b16 %v1914, %v1906
        %v2307 = vpack.c.b16 %v1915, %v1907
        %v2308 = vpack.c.b16 %v1924, %v1916
        %v2309 = vpack.c.b16 %v1925, %v1917
        %v2310 = vpack.c.b16 %v1926, %v1918
        %v2311 = vpack.c.b16 %v1927, %v1919
        %v2312 = vpack.c.b16 %v1928, %v1920
        %v2313 = vpack.c.b16 %v1929, %v1921
        %v2314 = vpack.c.b16 %v1930, %v1922
        %v2315 = vpack.c.b16 %v1931, %v1923
        %v2316 = vpack.c.b16 %v1940, %v1932
        %v2317 = vpack.c.b16 %v1941, %v1933
        %v2318 = vpack.c.b16 %v1942, %v1934
        %v2319 = vpack.c.b16 %v1943, %v1935
        %v2320 = vpack.c.b16 %v1944, %v1936
        %v2321 = vpack.c.b16 %v1945, %v1937
        %v2322 = vpack.c.b16 %v1946, %v1938
        %v2323 = vpack.c.b16 %v1947, %v1939
        %v2324 = vpack.c.b16 %v1956, %v1948
        %v2325 = vpack.c.b16 %v1957, %v1949
        %v2326 = vpack.c.b16 %v1958, %v1950
        %v2327 = vpack.c.b16 %v1959, %v1951
        %v2328 = vpack.c.b16 %v1960, %v1952
        %v2329 = vpack.c.b16 %v1961, %v1953
        %v2330 = vpack.c.b16 %v1962, %v1954
        %v2331 = vpack.c.b16 %v1963, %v1955
        %v2332 = vpack.c.b16 %v1972, %v1964
        %v2333 = vpack.c.b16 %v1973, %v1965
        %v2334 = vpack.c.b16 %v1974, %v1966
        %v2335 = vpack.c.b16 %v1975, %v1967
        %v2336 = vpack.c.b16 %v1976, %v1968
        %v2337 = vpack.c.b16 %v1977, %v1969
        %v2338 = vpack.c.b16 %v1978, %v1970
        %v2339 = vpack.c.b16 %v1979, %v1971
        %v2340 = vpack.c.b16 %v1988, %v1980
        %v2341 = vpack.c.b16 %v1989, %v1981
        %v2342 = vpack.c.b16 %v1990, %v1982
        %v2343 = vpack.c.b16 %v1991, %v1983
        %v2344 = vpack.c.b16 %v1992, %v1984
        %v2345 = vpack.c.b16 %v1993, %v1985
        %v2346 = vpack.c.b16 %v1994, %v1986
        %v2347 = vpack.c.b16 %v1995, %v1987
        %v2348 = vpack.c.b16 %v2004, %v1996
        %v2349 = vpack.c.b16 %v2005, %v1997
        %v2350 = vpack.c.b16 %v2006, %v1998
        %v2351 = vpack.c.b16 %v2007, %v1999
        %v2352 = vpack.c.b16 %v2008, %v2000
        %v2353 = vpack.c.b16 %v2009, %v2001
        %v2354 = vpack.c.b16 %v2010, %v2002
        %v2355 = vpack.c.b16 %v2011, %v2003
        %v2356 = vpack.c.b16 %v2020, %v2012
        %v2357 = vpack.c.b16 %v2021, %v2013
        %v2358 = vpack.c.b16 %v2022, %v2014
        %v2359 = vpack.c.b16 %v2023, %v2015
        %v2360 = vpack.c.b16 %v2024, %v2016
        %v2361 = vpack.c.b16 %v2025, %v2017
        %v2362 = vpack.c.b16 %v2026, %v2018
        %v2363 = vpack.c.b16 %v2027, %v2019
        %v2364 = vpack.c.b16 %v2036, %v2028
        %v2365 = vpack.c.b16 %v2037, %v2029
        %v2366 = vpack.c.b16 %v2038, %v2030
        %v2367 = vpack.c.b16 %v2039, %v2031
        %v2368 = vpack.c.b16 %v2040, %v2032
        %v2369 = vpack.c.b16 %v2041, %v2033
        %v2370 = vpack.c.b16 %v2042, %v2034
        %v2371 = vpack.c.b16 %v2043, %v2035
        %v2372 = vpack.c.b16 %v2052, %v2044
        %v2373 = vpack.c.b16 %v2053, %v2045
        %v2374 = vpack.c.b16 %v2054, %v2046
        %v2375 = vpack.c.b16 %v2055, %v2047
        %v2376 = vpack.c.b16 %v2056, %v2048
        %v2377 = vpack.c.b16 %v2057, %v2049
        %v2378 = vpack.c.b16 %v2058, %v2050
        %v2379 = vpack.c.b16 %v2059, %v2051
        %v2380 = vpack.c.b16 %v2068, %v2060
        %v2381 = vpack.c.b16 %v2069, %v2061
        %v2382 = vpack.c.b16 %v2070, %v2062
        %v2383 = vpack.c.b16 %v2071, %v2063
        %v2384 = vpack.c.b16 %v2072, %v2064
        %v2385 = vpack.c.b16 %v2073, %v2065
        %v2386 = vpack.c.b16 %v2074, %v2066
        %v2387 = vpack.c.b16 %v2075, %v2067
        %v2388 = vpack.c.b16 %v2084, %v2076
        %v2389 = vpack.c.b16 %v2085, %v2077
        %v2390 = vpack.c.b16 %v2086, %v2078
        %v2391 = vpack.c.b16 %v2087, %v2079
        %v2392 = vpack.c.b16 %v2088, %v2080
        %v2393 = vpack.c.b16 %v2089, %v2081
        %v2394 = vpack.c.b16 %v2090, %v2082
        %v2395 = vpack.c.b16 %v2091, %v2083
        %v2396 = vpack.c.b16 %v2100, %v2092
        %v2397 = vpack.c.b16 %v2101, %v2093
        %v2398 = vpack.c.b16 %v2102, %v2094
        %v2399 = vpack.c.b16 %v2103, %v2095
        %v2400 = vpack.c.b16 %v2104, %v2096
        %v2401 = vpack.c.b16 %v2105, %v2097
        %v2402 = vpack.c.b16 %v2106, %v2098
        %v2403 = vpack.c.b16 %v2107, %v2099
        %v2404 = vpack.c.b16 %v2116, %v2108
        %v2405 = vpack.c.b16 %v2117, %v2109
        %v2406 = vpack.c.b16 %v2118, %v2110
        %v2407 = vpack.c.b16 %v2119, %v2111
        %v2408 = vpack.c.b16 %v2120, %v2112
        %v2409 = vpack.c.b16 %v2121, %v2113
        %v2410 = vpack.c.b16 %v2122, %v2114
        %v2411 = vpack.c.b16 %v2123, %v2115
        %v2412 = vpack.c.b16 %v2132, %v2124
        %v2413 = vpack.c.b16 %v2133, %v2125
        %v2414 = vpack.c.b16 %v2134, %v2126
        %v2415 = vpack.c.b16 %v2135, %v2127
        %v2416 = vpack.c.b16 %v2136, %v2128
        %v2417 = vpack.c.b16 %v2137, %v2129
        %v2418 = vpack.c.b16 %v2138, %v2130
        %v2419 = vpack.c.b16 %v2139, %v2131
        %v2420 = vpack.c.b16 %v2148, %v2140
        %v2421 = vpack.c.b16 %v2149, %v2141
        %v2422 = vpack.c.b16 %v2150, %v2142
        %v2423 = vpack.c.b16 %v2151, %v2143
        %v2424 = vpack.c.b16 %v2152, %v2144
        %v2425 = vpack.c.b16 %v2153, %v2145
        %v2426 = vpack.c.b16 %v2154, %v2146
        %v2427 = vpack.c.b16 %v2155, %v2147
        %v2428 = vpack.c.b16 %v2164, %v2156
        %v2429 = vpack.c.b16 %v2165, %v2157
        %v2430 = vpack.c.b16 %v2166, %v2158
        %v2431 = vpack.c.b16 %v2167, %v2159
        %v2432 = vpack.c.b16 %v2168, %v2160
        %v2433 = vpack.c.b16 %v2169, %v2161
        %v2434 = vpack.c.b16 %v2170, %v2162
        %v2435 = vpack.c.b16 %v2171, %v2163
        %v2436 = vpack.c.b16 %v2180, %v2172
        %v2437 = vpack.c.b16 %v2181, %v2173
        %v2438 = vpack.c.b16 %v2182, %v2174
        %v2439 = vpack.c.b16 %v2183, %v2175
        %v2440 = vpack.c.b16 %v2184, %v2176
        %v2441 = vpack.c.b16 %v2185, %v2177
        %v2442 = vpack.c.b16 %v2186, %v2178
        %v2443 = vpack.c.b16 %v2187, %v2179
        %2700 = vmatpush.bf16.msra.mxu0 %v2244
        %2701 = vmatpush.bf16.msra.mxu0 %v2236
        %2702 = vmatpush.bf16.msra.mxu0 %v2228
        %2703 = vmatpush.bf16.msra.mxu0 %v2220
        %2704 = vmatpush.bf16.msra.mxu0 %v2212
        %2705 = vmatpush.bf16.msra.mxu0 %v2204
        %2706 = vmatpush.bf16.msra.mxu0 %v2196
        %2707 = vmatpush.bf16.msra.mxu0 %v2188
        %2708 = vmatmul.bf16.gmra.mxu0 %v1114
        %v2709 = vpop.f32.mrf.mxu0
        %v2710 = vadd.f32 %v1404, %v2709
        %v2711 = vpop.f32.mrf.mxu0
        %v2712 = vadd.f32 %v1404, %v2711
        %2713 = vmatmul.bf16.gmra.mxu0 %v1118
        %v2714 = vpop.f32.mrf.mxu0
        %v2715 = vadd.f32 %v1404, %v2714
        %v2716 = vpop.f32.mrf.mxu0
        %v2717 = vadd.f32 %v1404, %v2716
        %2718 = vmatmul.bf16.gmra.mxu0 %v1122
        %v2719 = vpop.f32.mrf.mxu0
        %v2720 = vadd.f32 %v1404, %v2719
        %v2721 = vpop.f32.mrf.mxu0
        %v2722 = vadd.f32 %v1404, %v2721
        %2723 = vmatmul.bf16.gmra.mxu0 %v1126
        %v2724 = vpop.f32.mrf.mxu0
        %v2725 = vadd.f32 %v1404, %v2724
        %v2726 = vpop.f32.mrf.mxu0
        %v2727 = vadd.f32 %v1404, %v2726
        %2728 = vmatmul.bf16.gmra.mxu0 %v1130
        %v2729 = vpop.f32.mrf.mxu0
        %v2730 = vpop.f32.mrf.mxu0
        %2731 = vmatmul.bf16.gmra.mxu0 %v1134
        %v2732 = vpop.f32.mrf.mxu0
        %v2733 = vpop.f32.mrf.mxu0
        %2734 = vmatmul.bf16.gmra.mxu0 %v1138
        %v2735 = vpop.f32.mrf.mxu0
        %v2736 = vpop.f32.mrf.mxu0
        %2737 = vmatmul.bf16.gmra.mxu0 %v1142
        %v2738 = vpop.f32.mrf.mxu0
        %v2739 = vpop.f32.mrf.mxu0
        %2740 = vdwg.mxu0
        %2741 = vmatpush.bf16.msra.mxu0 %v2308
        %2742 = vmatpush.bf16.msra.mxu0 %v2300
        %2743 = vmatpush.bf16.msra.mxu0 %v2292
        %2744 = vmatpush.bf16.msra.mxu0 %v2284
        %2745 = vmatpush.bf16.msra.mxu0 %v2276
        %2746 = vmatpush.bf16.msra.mxu0 %v2268
        %2747 = vmatpush.bf16.msra.mxu0 %v2260
        %2748 = vmatpush.bf16.msra.mxu0 %v2252
        %2749 = vmatmul.bf16.gmra.mxu0 %v1115
        %v2750 = vpop.f32.mrf.mxu0
        %v2751 = vadd.f32 %v2710, %v2750
        %v2752 = vpop.f32.mrf.mxu0
        %v2753 = vadd.f32 %v2712, %v2752
        %2754 = vmatmul.bf16.gmra.mxu0 %v1119
        %v2755 = vpop.f32.mrf.mxu0
        %v2756 = vadd.f32 %v2715, %v2755
        %v2757 = vpop.f32.mrf.mxu0
        %v2758 = vadd.f32 %v2717, %v2757
        %2759 = vmatmul.bf16.gmra.mxu0 %v1123
        %v2760 = vpop.f32.mrf.mxu0
        %v2761 = vadd.f32 %v2720, %v2760
        %v2762 = vpop.f32.mrf.mxu0
        %v2763 = vadd.f32 %v2722, %v2762
        %2764 = vmatmul.bf16.gmra.mxu0 %v1127
        %v2765 = vpop.f32.mrf.mxu0
        %v2766 = vadd.f32 %v2725, %v2765
        %v2767 = vpop.f32.mrf.mxu0
        %v2768 = vadd.f32 %v2727, %v2767
        %2769 = vmatmul.bf16.gmra.mxu0 %v1131
        %v2770 = vpop.f32.mrf.mxu0
        %v2771 = vpop.f32.mrf.mxu0
        %2772 = vmatmul.bf16.gmra.mxu0 %v1135
        %v2773 = vpop.f32.mrf.mxu0
        %v2774 = vpop.f32.mrf.mxu0
        %2775 = vmatmul.bf16.gmra.mxu0 %v1139
        %v2776 = vpop.f32.mrf.mxu0
        %v2777 = vpop.f32.mrf.mxu0
        %2778 = vmatmul.bf16.gmra.mxu0 %v1143
        %v2779 = vpop.f32.mrf.mxu0
        %v2780 = vpop.f32.mrf.mxu0
        %2781 = vdwg.mxu0
        %2782 = vmatpush.bf16.msra.mxu0 %v2372
        %2783 = vmatpush.bf16.msra.mxu0 %v2364
        %2784 = vmatpush.bf16.msra.mxu0 %v2356
        %2785 = vmatpush.bf16.msra.mxu0 %v2348
        %2786 = vmatpush.bf16.msra.mxu0 %v2340
        %2787 = vmatpush.bf16.msra.mxu0 %v2332
        %2788 = vmatpush.bf16.msra.mxu0 %v2324
        %2789 = vmatpush.bf16.msra.mxu0 %v2316
        %2790 = vmatmul.bf16.gmra.mxu0 %v1116
        %v2791 = vpop.f32.mrf.mxu0
        %v2792 = vadd.f32 %v2751, %v2791
        %v2793 = vpop.f32.mrf.mxu0
        %v2794 = vadd.f32 %v2753, %v2793
        %2795 = vmatmul.bf16.gmra.mxu0 %v1120
        %v2796 = vpop.f32.mrf.mxu0
        %v2797 = vadd.f32 %v2756, %v2796
        %v2798 = vpop.f32.mrf.mxu0
        %v2799 = vadd.f32 %v2758, %v2798
        %2800 = vmatmul.bf16.gmra.mxu0 %v1124
        %v2801 = vpop.f32.mrf.mxu0
        %v2802 = vadd.f32 %v2761, %v2801
        %v2803 = vpop.f32.mrf.mxu0
        %v2804 = vadd.f32 %v2763, %v2803
        %2805 = vmatmul.bf16.gmra.mxu0 %v1128
        %v2806 = vpop.f32.mrf.mxu0
        %v2807 = vadd.f32 %v2766, %v2806
        %v2808 = vpop.f32.mrf.mxu0
        %v2809 = vadd.f32 %v2768, %v2808
        %2810 = vmatmul.bf16.gmra.mxu0 %v1132
        %v2811 = vpop.f32.mrf.mxu0
        %v2812 = vpop.f32.mrf.mxu0
        %2813 = vmatmul.bf16.gmra.mxu0 %v1136
        %v2814 = vpop.f32.mrf.mxu0
        %v2815 = vpop.f32.mrf.mxu0
        %2816 = vmatmul.bf16.gmra.mxu0 %v1140
        %v2817 = vpop.f32.mrf.mxu0
        %v2818 = vpop.f32.mrf.mxu0
        %2819 = vmatmul.bf16.gmra.mxu0 %v1144
        %v2820 = vpop.f32.mrf.mxu0
        %v2821 = vpop.f32.mrf.mxu0
        %2822 = vdwg.mxu0
        %2823 = vmatpush.bf16.msra.mxu0 %v2436
        %2824 = vmatpush.bf16.msra.mxu0 %v2428
        %2825 = vmatpush.bf16.msra.mxu0 %v2420
        %2826 = vmatpush.bf16.msra.mxu0 %v2412
        %2827 = vmatpush.bf16.msra.mxu0 %v2404
        %2828 = vmatpush.bf16.msra.mxu0 %v2396
        %2829 = vmatpush.bf16.msra.mxu0 %v2388
        %2830 = vmatpush.bf16.msra.mxu0 %v2380
        %2831 = vmatmul.bf16.gmra.mxu0 %v1117
        %v2832 = vpop.f32.mrf.mxu0
        %v2833 = vadd.f32 %v2792, %v2832
        %v2834 = vpop.f32.mrf.mxu0
        %v2835 = vadd.f32 %v2794, %v2834
        %2836 = vmatmul.bf16.gmra.mxu0 %v1121
        %v2837 = vpop.f32.mrf.mxu0
        %v2838 = vadd.f32 %v2797, %v2837
        %v2839 = vpop.f32.mrf.mxu0
        %v2840 = vadd.f32 %v2799, %v2839
        %2841 = vmatmul.bf16.gmra.mxu0 %v1125
        %v2842 = vpop.f32.mrf.mxu0
        %v2843 = vadd.f32 %v2802, %v2842
        %v2844 = vpop.f32.mrf.mxu0
        %v2845 = vadd.f32 %v2804, %v2844
        %2846 = vmatmul.bf16.gmra.mxu0 %v1129
        %v2847 = vpop.f32.mrf.mxu0
        %v2848 = vadd.f32 %v2807, %v2847
        %v2849 = vpop.f32.mrf.mxu0
        %v2850 = vadd.f32 %v2809, %v2849
        %2851 = vmatmul.bf16.gmra.mxu0 %v1133
        %v2852 = vpop.f32.mrf.mxu0
        %v2853 = vpop.f32.mrf.mxu0
        %2854 = vmatmul.bf16.gmra.mxu0 %v1137
        %v2855 = vpop.f32.mrf.mxu0
        %v2856 = vpop.f32.mrf.mxu0
        %2857 = vmatmul.bf16.gmra.mxu0 %v1141
        %v2858 = vpop.f32.mrf.mxu0
        %v2859 = vpop.f32.mrf.mxu0
        %2860 = vmatmul.bf16.gmra.mxu0 %v1145
        %v2861 = vpop.f32.mrf.mxu0
        %v2862 = vpop.f32.mrf.mxu0
        %2863 = vdwg.mxu0
        %2864 = vmatpush.bf16.msra.mxu0 %v2245
        %2865 = vmatpush.bf16.msra.mxu0 %v2237
        %2866 = vmatpush.bf16.msra.mxu0 %v2229
        %2867 = vmatpush.bf16.msra.mxu0 %v2221
        %2868 = vmatpush.bf16.msra.mxu0 %v2213
        %2869 = vmatpush.bf16.msra.mxu0 %v2205
        %2870 = vmatpush.bf16.msra.mxu0 %v2197
        %2871 = vmatpush.bf16.msra.mxu0 %v2189
        %2872 = vmatmul.bf16.gmra.mxu0 %v1114
        %v2873 = vpop.f32.mrf.mxu0
        %v2874 = vadd.f32 %v1405, %v2873
        %v2875 = vpop.f32.mrf.mxu0
        %v2876 = vadd.f32 %v1405, %v2875
        %2877 = vmatmul.bf16.gmra.mxu0 %v1118
        %v2878 = vpop.f32.mrf.mxu0
        %v2879 = vadd.f32 %v1405, %v2878
        %v2880 = vpop.f32.mrf.mxu0
        %v2881 = vadd.f32 %v1405, %v2880
        %2882 = vmatmul.bf16.gmra.mxu0 %v1122
        %v2883 = vpop.f32.mrf.mxu0
        %v2884 = vadd.f32 %v1405, %v2883
        %v2885 = vpop.f32.mrf.mxu0
        %v2886 = vadd.f32 %v1405, %v2885
        %2887 = vmatmul.bf16.gmra.mxu0 %v1126
        %v2888 = vpop.f32.mrf.mxu0
        %v2889 = vadd.f32 %v1405, %v2888
        %v2890 = vpop.f32.mrf.mxu0
        %v2891 = vadd.f32 %v1405, %v2890
        %2892 = vmatmul.bf16.gmra.mxu0 %v1130
        %v2893 = vpop.f32.mrf.mxu0
        %v2894 = vpop.f32.mrf.mxu0
        %2895 = vmatmul.bf16.gmra.mxu0 %v1134
        %v2896 = vpop.f32.mrf.mxu0
        %v2897 = vpop.f32.mrf.mxu0
        %2898 = vmatmul.bf16.gmra.mxu0 %v1138
        %v2899 = vpop.f32.mrf.mxu0
        %v2900 = vpop.f32.mrf.mxu0
        %2901 = vmatmul.bf16.gmra.mxu0 %v1142
        %v2902 = vpop.f32.mrf.mxu0
        %v2903 = vpop.f32.mrf.mxu0
        %2904 = vdwg.mxu0
        %2905 = vmatpush.bf16.msra.mxu0 %v2309
        %2906 = vmatpush.bf16.msra.mxu0 %v2301
        %2907 = vmatpush.bf16.msra.mxu0 %v2293
        %2908 = vmatpush.bf16.msra.mxu0 %v2285
        %2909 = vmatpush.bf16.msra.mxu0 %v2277
        %2910 = vmatpush.bf16.msra.mxu0 %v2269
        %2911 = vmatpush.bf16.msra.mxu0 %v2261
        %2912 = vmatpush.bf16.msra.mxu0 %v2253
        %2913 = vmatmul.bf16.gmra.mxu0 %v1115
        %v2914 = vpop.f32.mrf.mxu0
        %v2915 = vadd.f32 %v2874, %v2914
        %v2916 = vpop.f32.mrf.mxu0
        %v2917 = vadd.f32 %v2876, %v2916
        %2918 = vmatmul.bf16.gmra.mxu0 %v1119
        %v2919 = vpop.f32.mrf.mxu0
        %v2920 = vadd.f32 %v2879, %v2919
        %v2921 = vpop.f32.mrf.mxu0
        %v2922 = vadd.f32 %v2881, %v2921
        %2923 = vmatmul.bf16.gmra.mxu0 %v1123
        %v2924 = vpop.f32.mrf.mxu0
        %v2925 = vadd.f32 %v2884, %v2924
        %v2926 = vpop.f32.mrf.mxu0
        %v2927 = vadd.f32 %v2886, %v2926
        %2928 = vmatmul.bf16.gmra.mxu0 %v1127
        %v2929 = vpop.f32.mrf.mxu0
        %v2930 = vadd.f32 %v2889, %v2929
        %v2931 = vpop.f32.mrf.mxu0
        %v2932 = vadd.f32 %v2891, %v2931
        %2933 = vmatmul.bf16.gmra.mxu0 %v1131
        %v2934 = vpop.f32.mrf.mxu0
        %v2935 = vpop.f32.mrf.mxu0
        %2936 = vmatmul.bf16.gmra.mxu0 %v1135
        %v2937 = vpop.f32.mrf.mxu0
        %v2938 = vpop.f32.mrf.mxu0
        %2939 = vmatmul.bf16.gmra.mxu0 %v1139
        %v2940 = vpop.f32.mrf.mxu0
        %v2941 = vpop.f32.mrf.mxu0
        %2942 = vmatmul.bf16.gmra.mxu0 %v1143
        %v2943 = vpop.f32.mrf.mxu0
        %v2944 = vpop.f32.mrf.mxu0
        %2945 = vdwg.mxu0
        %2946 = vmatpush.bf16.msra.mxu0 %v2373
        %2947 = vmatpush.bf16.msra.mxu0 %v2365
        %2948 = vmatpush.bf16.msra.mxu0 %v2357
        %2949 = vmatpush.bf16.msra.mxu0 %v2349
        %2950 = vmatpush.bf16.msra.mxu0 %v2341
        %2951 = vmatpush.bf16.msra.mxu0 %v2333
        %2952 = vmatpush.bf16.msra.mxu0 %v2325
        %2953 = vmatpush.bf16.msra.mxu0 %v2317
        %2954 = vmatmul.bf16.gmra.mxu0 %v1116
        %v2955 = vpop.f32.mrf.mxu0
        %v2956 = vadd.f32 %v2915, %v2955
        %v2957 = vpop.f32.mrf.mxu0
        %v2958 = vadd.f32 %v2917, %v2957
        %2959 = vmatmul.bf16.gmra.mxu0 %v1120
        %v2960 = vpop.f32.mrf.mxu0
        %v2961 = vadd.f32 %v2920, %v2960
        %v2962 = vpop.f32.mrf.mxu0
        %v2963 = vadd.f32 %v2922, %v2962
        %2964 = vmatmul.bf16.gmra.mxu0 %v1124
        %v2965 = vpop.f32.mrf.mxu0
        %v2966 = vadd.f32 %v2925, %v2965
        %v2967 = vpop.f32.mrf.mxu0
        %v2968 = vadd.f32 %v2927, %v2967
        %2969 = vmatmul.bf16.gmra.mxu0 %v1128
        %v2970 = vpop.f32.mrf.mxu0
        %v2971 = vadd.f32 %v2930, %v2970
        %v2972 = vpop.f32.mrf.mxu0
        %v2973 = vadd.f32 %v2932, %v2972
        %2974 = vmatmul.bf16.gmra.mxu0 %v1132
        %v2975 = vpop.f32.mrf.mxu0
        %v2976 = vpop.f32.mrf.mxu0
        %2977 = vmatmul.bf16.gmra.mxu0 %v1136
        %v2978 = vpop.f32.mrf.mxu0
        %v2979 = vpop.f32.mrf.mxu0
        %2980 = vmatmul.bf16.gmra.mxu0 %v1140
        %v2981 = vpop.f32.mrf.mxu0
        %v2982 = vpop.f32.mrf.mxu0
        %2983 = vmatmul.bf16.gmra.mxu0 %v1144
        %v2984 = vpop.f32.mrf.mxu0
        %v2985 = vpop.f32.mrf.mxu0
        %2986 = vdwg.mxu0
        %2987 = vmatpush.bf16.msra.mxu0 %v2437
        %2988 = vmatpush.bf16.msra.mxu0 %v2429
        %2989 = vmatpush.bf16.msra.mxu0 %v2421
        %2990 = vmatpush.bf16.msra.mxu0 %v2413
        %2991 = vmatpush.bf16.msra.mxu0 %v2405
        %2992 = vmatpush.bf16.msra.mxu0 %v2397
        %2993 = vmatpush.bf16.msra.mxu0 %v2389
        %2994 = vmatpush.bf16.msra.mxu0 %v2381
        %2995 = vmatmul.bf16.gmra.mxu0 %v1117
        %v2996 = vpop.f32.mrf.mxu0
        %v2997 = vadd.f32 %v2956, %v2996
        %v2998 = vpop.f32.mrf.mxu0
        %v2999 = vadd.f32 %v2958, %v2998
        %3000 = vmatmul.bf16.gmra.mxu0 %v1121
        %v3001 = vpop.f32.mrf.mxu0
        %v3002 = vadd.f32 %v2961, %v3001
        %v3003 = vpop.f32.mrf.mxu0
        %v3004 = vadd.f32 %v2963, %v3003
        %3005 = vmatmul.bf16.gmra.mxu0 %v1125
        %v3006 = vpop.f32.mrf.mxu0
        %v3007 = vadd.f32 %v2966, %v3006
        %v3008 = vpop.f32.mrf.mxu0
        %v3009 = vadd.f32 %v2968, %v3008
        %3010 = vmatmul.bf16.gmra.mxu0 %v1129
        %v3011 = vpop.f32.mrf.mxu0
        %v3012 = vadd.f32 %v2971, %v3011
        %v3013 = vpop.f32.mrf.mxu0
        %v3014 = vadd.f32 %v2973, %v3013
        %3015 = vmatmul.bf16.gmra.mxu0 %v1133
        %v3016 = vpop.f32.mrf.mxu0
        %v3017 = vpop.f32.mrf.mxu0
        %3018 = vmatmul.bf16.gmra.mxu0 %v1137
        %v3019 = vpop.f32.mrf.mxu0
        %v3020 = vpop.f32.mrf.mxu0
        %3021 = vmatmul.bf16.gmra.mxu0 %v1141
        %v3022 = vpop.f32.mrf.mxu0
        %v3023 = vpop.f32.mrf.mxu0
        %3024 = vmatmul.bf16.gmra.mxu0 %v1145
        %v3025 = vpop.f32.mrf.mxu0
        %v3026 = vpop.f32.mrf.mxu0
        %3027 = vdwg.mxu0
        %3028 = vmatpush.bf16.msra.mxu0 %v2246
        %3029 = vmatpush.bf16.msra.mxu0 %v2238
        %3030 = vmatpush.bf16.msra.mxu0 %v2230
        %3031 = vmatpush.bf16.msra.mxu0 %v2222
        %3032 = vmatpush.bf16.msra.mxu0 %v2214
        %3033 = vmatpush.bf16.msra.mxu0 %v2206
        %3034 = vmatpush.bf16.msra.mxu0 %v2198
        %3035 = vmatpush.bf16.msra.mxu0 %v2190
        %3036 = vmatmul.bf16.gmra.mxu0 %v1114
        %v3037 = vpop.f32.mrf.mxu0
        %v3038 = vadd.f32 %v1406, %v3037
        %v3039 = vpop.f32.mrf.mxu0
        %v3040 = vadd.f32 %v1406, %v3039
        %3041 = vmatmul.bf16.gmra.mxu0 %v1118
        %v3042 = vpop.f32.mrf.mxu0
        %v3043 = vadd.f32 %v1406, %v3042
        %v3044 = vpop.f32.mrf.mxu0
        %v3045 = vadd.f32 %v1406, %v3044
        %3046 = vmatmul.bf16.gmra.mxu0 %v1122
        %v3047 = vpop.f32.mrf.mxu0
        %v3048 = vadd.f32 %v1406, %v3047
        %v3049 = vpop.f32.mrf.mxu0
        %v3050 = vadd.f32 %v1406, %v3049
        %3051 = vmatmul.bf16.gmra.mxu0 %v1126
        %v3052 = vpop.f32.mrf.mxu0
        %v3053 = vadd.f32 %v1406, %v3052
        %v3054 = vpop.f32.mrf.mxu0
        %v3055 = vadd.f32 %v1406, %v3054
        %3056 = vmatmul.bf16.gmra.mxu0 %v1130
        %v3057 = vpop.f32.mrf.mxu0
        %v3058 = vpop.f32.mrf.mxu0
        %3059 = vmatmul.bf16.gmra.mxu0 %v1134
        %v3060 = vpop.f32.mrf.mxu0
        %v3061 = vpop.f32.mrf.mxu0
        %3062 = vmatmul.bf16.gmra.mxu0 %v1138
        %v3063 = vpop.f32.mrf.mxu0
        %v3064 = vpop.f32.mrf.mxu0
        %3065 = vmatmul.bf16.gmra.mxu0 %v1142
        %v3066 = vpop.f32.mrf.mxu0
        %v3067 = vpop.f32.mrf.mxu0
        %3068 = vdwg.mxu0
        %3069 = vmatpush.bf16.msra.mxu0 %v2310
        %3070 = vmatpush.bf16.msra.mxu0 %v2302
        %3071 = vmatpush.bf16.msra.mxu0 %v2294
        %3072 = vmatpush.bf16.msra.mxu0 %v2286
        %3073 = vmatpush.bf16.msra.mxu0 %v2278
        %3074 = vmatpush.bf16.msra.mxu0 %v2270
        %3075 = vmatpush.bf16.msra.mxu0 %v2262
        %3076 = vmatpush.bf16.msra.mxu0 %v2254
        %3077 = vmatmul.bf16.gmra.mxu0 %v1115
        %v3078 = vpop.f32.mrf.mxu0
        %v3079 = vadd.f32 %v3038, %v3078
        %v3080 = vpop.f32.mrf.mxu0
        %v3081 = vadd.f32 %v3040, %v3080
        %3082 = vmatmul.bf16.gmra.mxu0 %v1119
        %v3083 = vpop.f32.mrf.mxu0
        %v3084 = vadd.f32 %v3043, %v3083
        %v3085 = vpop.f32.mrf.mxu0
        %v3086 = vadd.f32 %v3045, %v3085
        %3087 = vmatmul.bf16.gmra.mxu0 %v1123
        %v3088 = vpop.f32.mrf.mxu0
        %v3089 = vadd.f32 %v3048, %v3088
        %v3090 = vpop.f32.mrf.mxu0
        %v3091 = vadd.f32 %v3050, %v3090
        %3092 = vmatmul.bf16.gmra.mxu0 %v1127
        %v3093 = vpop.f32.mrf.mxu0
        %v3094 = vadd.f32 %v3053, %v3093
        %v3095 = vpop.f32.mrf.mxu0
        %v3096 = vadd.f32 %v3055, %v3095
        %3097 = vmatmul.bf16.gmra.mxu0 %v1131
        %v3098 = vpop.f32.mrf.mxu0
        %v3099 = vpop.f32.mrf.mxu0
        %3100 = vmatmul.bf16.gmra.mxu0 %v1135
        %v3101 = vpop.f32.mrf.mxu0
        %v3102 = vpop.f32.mrf.mxu0
        %3103 = vmatmul.bf16.gmra.mxu0 %v1139
        %v3104 = vpop.f32.mrf.mxu0
        %v3105 = vpop.f32.mrf.mxu0
        %3106 = vmatmul.bf16.gmra.mxu0 %v1143
        %v3107 = vpop.f32.mrf.mxu0
        %v3108 = vpop.f32.mrf.mxu0
        %3109 = vdwg.mxu0
        %3110 = vmatpush.bf16.msra.mxu0 %v2374
        %3111 = vmatpush.bf16.msra.mxu0 %v2366
        %3112 = vmatpush.bf16.msra.mxu0 %v2358
        %3113 = vmatpush.bf16.msra.mxu0 %v2350
        %3114 = vmatpush.bf16.msra.mxu0 %v2342
        %3115 = vmatpush.bf16.msra.mxu0 %v2334
        %3116 = vmatpush.bf16.msra.mxu0 %v2326
        %3117 = vmatpush.bf16.msra.mxu0 %v2318
        %3118 = vmatmul.bf16.gmra.mxu0 %v1116
        %v3119 = vpop.f32.mrf.mxu0
        %v3120 = vadd.f32 %v3079, %v3119
        %v3121 = vpop.f32.mrf.mxu0
        %v3122 = vadd.f32 %v3081, %v3121
        %3123 = vmatmul.bf16.gmra.mxu0 %v1120
        %v3124 = vpop.f32.mrf.mxu0
        %v3125 = vadd.f32 %v3084, %v3124
        %v3126 = vpop.f32.mrf.mxu0
        %v3127 = vadd.f32 %v3086, %v3126
        %3128 = vmatmul.bf16.gmra.mxu0 %v1124
        %v3129 = vpop.f32.mrf.mxu0
        %v3130 = vadd.f32 %v3089, %v3129
        %v3131 = vpop.f32.mrf.mxu0
        %v3132 = vadd.f32 %v3091, %v3131
        %3133 = vmatmul.bf16.gmra.mxu0 %v1128
        %v3134 = vpop.f32.mrf.mxu0
        %v3135 = vadd.f32 %v3094, %v3134
        %v3136 = vpop.f32.mrf.mxu0
        %v3137 = vadd.f32 %v3096, %v3136
        %3138 = vmatmul.bf16.gmra.mxu0 %v1132
        %v3139 = vpop.f32.mrf.mxu0
        %v3140 = vpop.f32.mrf.mxu0
        %3141 = vmatmul.bf16.gmra.mxu0 %v1136
        %v3142 = vpop.f32.mrf.mxu0
        %v3143 = vpop.f32.mrf.mxu0
        %3144 = vmatmul.bf16.gmra.mxu0 %v1140
        %v3145 = vpop.f32.mrf.mxu0
        %v3146 = vpop.f32.mrf.mxu0
        %3147 = vmatmul.bf16.gmra.mxu0 %v1144
        %v3148 = vpop.f32.mrf.mxu0
        %v3149 = vpop.f32.mrf.mxu0
        %3150 = vdwg.mxu0
        %3151 = vmatpush.bf16.msra.mxu0 %v2438
        %3152 = vmatpush.bf16.msra.mxu0 %v2430
        %3153 = vmatpush.bf16.msra.mxu0 %v2422
        %3154 = vmatpush.bf16.msra.mxu0 %v2414
        %3155 = vmatpush.bf16.msra.mxu0 %v2406
        %3156 = vmatpush.bf16.msra.mxu0 %v2398
        %3157 = vmatpush.bf16.msra.mxu0 %v2390
        %3158 = vmatpush.bf16.msra.mxu0 %v2382
        %3159 = vmatmul.bf16.gmra.mxu0 %v1117
        %v3160 = vpop.f32.mrf.mxu0
        %v3161 = vadd.f32 %v3120, %v3160
        %v3162 = vpop.f32.mrf.mxu0
        %v3163 = vadd.f32 %v3122, %v3162
        %3164 = vmatmul.bf16.gmra.mxu0 %v1121
        %v3165 = vpop.f32.mrf.mxu0
        %v3166 = vadd.f32 %v3125, %v3165
        %v3167 = vpop.f32.mrf.mxu0
        %v3168 = vadd.f32 %v3127, %v3167
        %3169 = vmatmul.bf16.gmra.mxu0 %v1125
        %v3170 = vpop.f32.mrf.mxu0
        %v3171 = vadd.f32 %v3130, %v3170
        %v3172 = vpop.f32.mrf.mxu0
        %v3173 = vadd.f32 %v3132, %v3172
        %3174 = vmatmul.bf16.gmra.mxu0 %v1129
        %v3175 = vpop.f32.mrf.mxu0
        %v3176 = vadd.f32 %v3135, %v3175
        %v3177 = vpop.f32.mrf.mxu0
        %v3178 = vadd.f32 %v3137, %v3177
        %3179 = vmatmul.bf16.gmra.mxu0 %v1133
        %v3180 = vpop.f32.mrf.mxu0
        %v3181 = vpop.f32.mrf.mxu0
        %3182 = vmatmul.bf16.gmra.mxu0 %v1137
        %v3183 = vpop.f32.mrf.mxu0
        %v3184 = vpop.f32.mrf.mxu0
        %3185 = vmatmul.bf16.gmra.mxu0 %v1141
        %v3186 = vpop.f32.mrf.mxu0
        %v3187 = vpop.f32.mrf.mxu0
        %3188 = vmatmul.bf16.gmra.mxu0 %v1145
        %v3189 = vpop.f32.mrf.mxu0
        %v3190 = vpop.f32.mrf.mxu0
        %3191 = vdwg.mxu0
        %3192 = vmatpush.bf16.msra.mxu0 %v2247
        %3193 = vmatpush.bf16.msra.mxu0 %v2239
        %3194 = vmatpush.bf16.msra.mxu0 %v2231
        %3195 = vmatpush.bf16.msra.mxu0 %v2223
        %3196 = vmatpush.bf16.msra.mxu0 %v2215
        %3197 = vmatpush.bf16.msra.mxu0 %v2207
        %3198 = vmatpush.bf16.msra.mxu0 %v2199
        %3199 = vmatpush.bf16.msra.mxu0 %v2191
        %3200 = vmatmul.bf16.gmra.mxu0 %v1114
        %v3201 = vpop.f32.mrf.mxu0
        %v3202 = vadd.f32 %v1407, %v3201
        %v3203 = vpop.f32.mrf.mxu0
        %v3204 = vadd.f32 %v1407, %v3203
        %3205 = vmatmul.bf16.gmra.mxu0 %v1118
        %v3206 = vpop.f32.mrf.mxu0
        %v3207 = vadd.f32 %v1407, %v3206
        %v3208 = vpop.f32.mrf.mxu0
        %v3209 = vadd.f32 %v1407, %v3208
        %3210 = vmatmul.bf16.gmra.mxu0 %v1122
        %v3211 = vpop.f32.mrf.mxu0
        %v3212 = vadd.f32 %v1407, %v3211
        %v3213 = vpop.f32.mrf.mxu0
        %v3214 = vadd.f32 %v1407, %v3213
        %3215 = vmatmul.bf16.gmra.mxu0 %v1126
        %v3216 = vpop.f32.mrf.mxu0
        %v3217 = vadd.f32 %v1407, %v3216
        %v3218 = vpop.f32.mrf.mxu0
        %v3219 = vadd.f32 %v1407, %v3218
        %3220 = vmatmul.bf16.gmra.mxu0 %v1130
        %v3221 = vpop.f32.mrf.mxu0
        %v3222 = vpop.f32.mrf.mxu0
        %3223 = vmatmul.bf16.gmra.mxu0 %v1134
        %v3224 = vpop.f32.mrf.mxu0
        %v3225 = vpop.f32.mrf.mxu0
        %3226 = vmatmul.bf16.gmra.mxu0 %v1138
        %v3227 = vpop.f32.mrf.mxu0
        %v3228 = vpop.f32.mrf.mxu0
        %3229 = vmatmul.bf16.gmra.mxu0 %v1142
        %v3230 = vpop.f32.mrf.mxu0
        %v3231 = vpop.f32.mrf.mxu0
        %3232 = vdwg.mxu0
        %3233 = vmatpush.bf16.msra.mxu0 %v2311
        %3234 = vmatpush.bf16.msra.mxu0 %v2303
        %3235 = vmatpush.bf16.msra.mxu0 %v2295
        %3236 = vmatpush.bf16.msra.mxu0 %v2287
        %3237 = vmatpush.bf16.msra.mxu0 %v2279
        %3238 = vmatpush.bf16.msra.mxu0 %v2271
        %3239 = vmatpush.bf16.msra.mxu0 %v2263
        %3240 = vmatpush.bf16.msra.mxu0 %v2255
        %3241 = vmatmul.bf16.gmra.mxu0 %v1115
        %v3242 = vpop.f32.mrf.mxu0
        %v3243 = vadd.f32 %v3202, %v3242
        %v3244 = vpop.f32.mrf.mxu0
        %v3245 = vadd.f32 %v3204, %v3244
        %3246 = vmatmul.bf16.gmra.mxu0 %v1119
        %v3247 = vpop.f32.mrf.mxu0
        %v3248 = vadd.f32 %v3207, %v3247
        %v3249 = vpop.f32.mrf.mxu0
        %v3250 = vadd.f32 %v3209, %v3249
        %3251 = vmatmul.bf16.gmra.mxu0 %v1123
        %v3252 = vpop.f32.mrf.mxu0
        %v3253 = vadd.f32 %v3212, %v3252
        %v3254 = vpop.f32.mrf.mxu0
        %v3255 = vadd.f32 %v3214, %v3254
        %3256 = vmatmul.bf16.gmra.mxu0 %v1127
        %v3257 = vpop.f32.mrf.mxu0
        %v3258 = vadd.f32 %v3217, %v3257
        %v3259 = vpop.f32.mrf.mxu0
        %v3260 = vadd.f32 %v3219, %v3259
        %3261 = vmatmul.bf16.gmra.mxu0 %v1131
        %v3262 = vpop.f32.mrf.mxu0
        %v3263 = vpop.f32.mrf.mxu0
        %3264 = vmatmul.bf16.gmra.mxu0 %v1135
        %v3265 = vpop.f32.mrf.mxu0
        %v3266 = vpop.f32.mrf.mxu0
        %3267 = vmatmul.bf16.gmra.mxu0 %v1139
        %v3268 = vpop.f32.mrf.mxu0
        %v3269 = vpop.f32.mrf.mxu0
        %3270 = vmatmul.bf16.gmra.mxu0 %v1143
        %v3271 = vpop.f32.mrf.mxu0
        %v3272 = vpop.f32.mrf.mxu0
        %3273 = vdwg.mxu0
        %3274 = vmatpush.bf16.msra.mxu0 %v2375
        %3275 = vmatpush.bf16.msra.mxu0 %v2367
        %3276 = vmatpush.bf16.msra.mxu0 %v2359
        %3277 = vmatpush.bf16.msra.mxu0 %v2351
        %3278 = vmatpush.bf16.msra.mxu0 %v2343
        %3279 = vmatpush.bf16.msra.mxu0 %v2335
        %3280 = vmatpush.bf16.msra.mxu0 %v2327
        %3281 = vmatpush.bf16.msra.mxu0 %v2319
        %3282 = vmatmul.bf16.gmra.mxu0 %v1116
        %v3283 = vpop.f32.mrf.mxu0
        %v3284 = vadd.f32 %v3243, %v3283
        %v3285 = vpop.f32.mrf.mxu0
        %v3286 = vadd.f32 %v3245, %v3285
        %3287 = vmatmul.bf16.gmra.mxu0 %v1120
        %v3288 = vpop.f32.mrf.mxu0
        %v3289 = vadd.f32 %v3248, %v3288
        %v3290 = vpop.f32.mrf.mxu0
        %v3291 = vadd.f32 %v3250, %v3290
        %3292 = vmatmul.bf16.gmra.mxu0 %v1124
        %v3293 = vpop.f32.mrf.mxu0
        %v3294 = vadd.f32 %v3253, %v3293
        %v3295 = vpop.f32.mrf.mxu0
        %v3296 = vadd.f32 %v3255, %v3295
        %3297 = vmatmul.bf16.gmra.mxu0 %v1128
        %v3298 = vpop.f32.mrf.mxu0
        %v3299 = vadd.f32 %v3258, %v3298
        %v3300 = vpop.f32.mrf.mxu0
        %v3301 = vadd.f32 %v3260, %v3300
        %3302 = vmatmul.bf16.gmra.mxu0 %v1132
        %v3303 = vpop.f32.mrf.mxu0
        %v3304 = vpop.f32.mrf.mxu0
        %3305 = vmatmul.bf16.gmra.mxu0 %v1136
        %v3306 = vpop.f32.mrf.mxu0
        %v3307 = vpop.f32.mrf.mxu0
        %3308 = vmatmul.bf16.gmra.mxu0 %v1140
        %v3309 = vpop.f32.mrf.mxu0
        %v3310 = vpop.f32.mrf.mxu0
        %3311 = vmatmul.bf16.gmra.mxu0 %v1144
        %v3312 = vpop.f32.mrf.mxu0
        %v3313 = vpop.f32.mrf.mxu0
        %3314 = vdwg.mxu0
        %3315 = vmatpush.bf16.msra.mxu0 %v2439
        %3316 = vmatpush.bf16.msra.mxu0 %v2431
        %3317 = vmatpush.bf16.msra.mxu0 %v2423
        %3318 = vmatpush.bf16.msra.mxu0 %v2415
        %3319 = vmatpush.bf16.msra.mxu0 %v2407
        %3320 = vmatpush.bf16.msra.mxu0 %v2399
        %3321 = vmatpush.bf16.msra.mxu0 %v2391
        %3322 = vmatpush.bf16.msra.mxu0 %v2383
        %3323 = vmatmul.bf16.gmra.mxu0 %v1117
        %v3324 = vpop.f32.mrf.mxu0
        %v3325 = vadd.f32 %v3284, %v3324
        %v3326 = vpop.f32.mrf.mxu0
        %v3327 = vadd.f32 %v3286, %v3326
        %3328 = vmatmul.bf16.gmra.mxu0 %v1121
        %v3329 = vpop.f32.mrf.mxu0
        %v3330 = vadd.f32 %v3289, %v3329
        %v3331 = vpop.f32.mrf.mxu0
        %v3332 = vadd.f32 %v3291, %v3331
        %3333 = vmatmul.bf16.gmra.mxu0 %v1125
        %v3334 = vpop.f32.mrf.mxu0
        %v3335 = vadd.f32 %v3294, %v3334
        %v3336 = vpop.f32.mrf.mxu0
        %v3337 = vadd.f32 %v3296, %v3336
        %3338 = vmatmul.bf16.gmra.mxu0 %v1129
        %v3339 = vpop.f32.mrf.mxu0
        %v3340 = vadd.f32 %v3299, %v3339
        %v3341 = vpop.f32.mrf.mxu0
        %v3342 = vadd.f32 %v3301, %v3341
        %3343 = vmatmul.bf16.gmra.mxu0 %v1133
        %v3344 = vpop.f32.mrf.mxu0
        %v3345 = vpop.f32.mrf.mxu0
        %3346 = vmatmul.bf16.gmra.mxu0 %v1137
        %v3347 = vpop.f32.mrf.mxu0
        %v3348 = vpop.f32.mrf.mxu0
        %3349 = vmatmul.bf16.gmra.mxu0 %v1141
        %v3350 = vpop.f32.mrf.mxu0
        %v3351 = vpop.f32.mrf.mxu0
        %3352 = vmatmul.bf16.gmra.mxu0 %v1145
        %v3353 = vpop.f32.mrf.mxu0
        %v3354 = vpop.f32.mrf.mxu0
        %3355 = vdwg.mxu0
        %3356 = vmatpush.bf16.msra.mxu0 %v2248
        %3357 = vmatpush.bf16.msra.mxu0 %v2240
        %3358 = vmatpush.bf16.msra.mxu0 %v2232
        %3359 = vmatpush.bf16.msra.mxu0 %v2224
        %3360 = vmatpush.bf16.msra.mxu0 %v2216
        %3361 = vmatpush.bf16.msra.mxu0 %v2208
        %3362 = vmatpush.bf16.msra.mxu0 %v2200
        %3363 = vmatpush.bf16.msra.mxu0 %v2192
        %3364 = vmatmul.bf16.gmra.mxu0 %v1114
        %v3365 = vpop.f32.mrf.mxu0
        %v3366 = vpop.f32.mrf.mxu0
        %3367 = vmatmul.bf16.gmra.mxu0 %v1118
        %v3368 = vpop.f32.mrf.mxu0
        %v3369 = vpop.f32.mrf.mxu0
        %3370 = vmatmul.bf16.gmra.mxu0 %v1122
        %v3371 = vpop.f32.mrf.mxu0
        %v3372 = vpop.f32.mrf.mxu0
        %3373 = vmatmul.bf16.gmra.mxu0 %v1126
        %v3374 = vpop.f32.mrf.mxu0
        %v3375 = vpop.f32.mrf.mxu0
        %3376 = vmatmul.bf16.gmra.mxu0 %v1130
        %v3377 = vpop.f32.mrf.mxu0
        %v3378 = vadd.f32 %v1408, %v3377
        %v3379 = vpop.f32.mrf.mxu0
        %v3380 = vadd.f32 %v1408, %v3379
        %3381 = vmatmul.bf16.gmra.mxu0 %v1134
        %v3382 = vpop.f32.mrf.mxu0
        %v3383 = vadd.f32 %v1408, %v3382
        %v3384 = vpop.f32.mrf.mxu0
        %v3385 = vadd.f32 %v1408, %v3384
        %3386 = vmatmul.bf16.gmra.mxu0 %v1138
        %v3387 = vpop.f32.mrf.mxu0
        %v3388 = vadd.f32 %v1408, %v3387
        %v3389 = vpop.f32.mrf.mxu0
        %v3390 = vadd.f32 %v1408, %v3389
        %3391 = vmatmul.bf16.gmra.mxu0 %v1142
        %v3392 = vpop.f32.mrf.mxu0
        %v3393 = vadd.f32 %v1408, %v3392
        %v3394 = vpop.f32.mrf.mxu0
        %v3395 = vadd.f32 %v1408, %v3394
        %3396 = vdwg.mxu0
        %3397 = vmatpush.bf16.msra.mxu0 %v2312
        %3398 = vmatpush.bf16.msra.mxu0 %v2304
        %3399 = vmatpush.bf16.msra.mxu0 %v2296
        %3400 = vmatpush.bf16.msra.mxu0 %v2288
        %3401 = vmatpush.bf16.msra.mxu0 %v2280
        %3402 = vmatpush.bf16.msra.mxu0 %v2272
        %3403 = vmatpush.bf16.msra.mxu0 %v2264
        %3404 = vmatpush.bf16.msra.mxu0 %v2256
        %3405 = vmatmul.bf16.gmra.mxu0 %v1115
        %v3406 = vpop.f32.mrf.mxu0
        %v3407 = vpop.f32.mrf.mxu0
        %3408 = vmatmul.bf16.gmra.mxu0 %v1119
        %v3409 = vpop.f32.mrf.mxu0
        %v3410 = vpop.f32.mrf.mxu0
        %3411 = vmatmul.bf16.gmra.mxu0 %v1123
        %v3412 = vpop.f32.mrf.mxu0
        %v3413 = vpop.f32.mrf.mxu0
        %3414 = vmatmul.bf16.gmra.mxu0 %v1127
        %v3415 = vpop.f32.mrf.mxu0
        %v3416 = vpop.f32.mrf.mxu0
        %3417 = vmatmul.bf16.gmra.mxu0 %v1131
        %v3418 = vpop.f32.mrf.mxu0
        %v3419 = vadd.f32 %v3378, %v3418
        %v3420 = vpop.f32.mrf.mxu0
        %v3421 = vadd.f32 %v3380, %v3420
        %3422 = vmatmul.bf16.gmra.mxu0 %v1135
        %v3423 = vpop.f32.mrf.mxu0
        %v3424 = vadd.f32 %v3383, %v3423
        %v3425 = vpop.f32.mrf.mxu0
        %v3426 = vadd.f32 %v3385, %v3425
        %3427 = vmatmul.bf16.gmra.mxu0 %v1139
        %v3428 = vpop.f32.mrf.mxu0
        %v3429 = vadd.f32 %v3388, %v3428
        %v3430 = vpop.f32.mrf.mxu0
        %v3431 = vadd.f32 %v3390, %v3430
        %3432 = vmatmul.bf16.gmra.mxu0 %v1143
        %v3433 = vpop.f32.mrf.mxu0
        %v3434 = vadd.f32 %v3393, %v3433
        %v3435 = vpop.f32.mrf.mxu0
        %v3436 = vadd.f32 %v3395, %v3435
        %3437 = vdwg.mxu0
        %3438 = vmatpush.bf16.msra.mxu0 %v2376
        %3439 = vmatpush.bf16.msra.mxu0 %v2368
        %3440 = vmatpush.bf16.msra.mxu0 %v2360
        %3441 = vmatpush.bf16.msra.mxu0 %v2352
        %3442 = vmatpush.bf16.msra.mxu0 %v2344
        %3443 = vmatpush.bf16.msra.mxu0 %v2336
        %3444 = vmatpush.bf16.msra.mxu0 %v2328
        %3445 = vmatpush.bf16.msra.mxu0 %v2320
        %3446 = vmatmul.bf16.gmra.mxu0 %v1116
        %v3447 = vpop.f32.mrf.mxu0
        %v3448 = vpop.f32.mrf.mxu0
        %3449 = vmatmul.bf16.gmra.mxu0 %v1120
        %v3450 = vpop.f32.mrf.mxu0
        %v3451 = vpop.f32.mrf.mxu0
        %3452 = vmatmul.bf16.gmra.mxu0 %v1124
        %v3453 = vpop.f32.mrf.mxu0
        %v3454 = vpop.f32.mrf.mxu0
        %3455 = vmatmul.bf16.gmra.mxu0 %v1128
        %v3456 = vpop.f32.mrf.mxu0
        %v3457 = vpop.f32.mrf.mxu0
        %3458 = vmatmul.bf16.gmra.mxu0 %v1132
        %v3459 = vpop.f32.mrf.mxu0
        %v3460 = vadd.f32 %v3419, %v3459
        %v3461 = vpop.f32.mrf.mxu0
        %v3462 = vadd.f32 %v3421, %v3461
        %3463 = vmatmul.bf16.gmra.mxu0 %v1136
        %v3464 = vpop.f32.mrf.mxu0
        %v3465 = vadd.f32 %v3424, %v3464
        %v3466 = vpop.f32.mrf.mxu0
        %v3467 = vadd.f32 %v3426, %v3466
        %3468 = vmatmul.bf16.gmra.mxu0 %v1140
        %v3469 = vpop.f32.mrf.mxu0
        %v3470 = vadd.f32 %v3429, %v3469
        %v3471 = vpop.f32.mrf.mxu0
        %v3472 = vadd.f32 %v3431, %v3471
        %3473 = vmatmul.bf16.gmra.mxu0 %v1144
        %v3474 = vpop.f32.mrf.mxu0
        %v3475 = vadd.f32 %v3434, %v3474
        %v3476 = vpop.f32.mrf.mxu0
        %v3477 = vadd.f32 %v3436, %v3476
        %3478 = vdwg.mxu0
        %3479 = vmatpush.bf16.msra.mxu0 %v2440
        %3480 = vmatpush.bf16.msra.mxu0 %v2432
        %3481 = vmatpush.bf16.msra.mxu0 %v2424
        %3482 = vmatpush.bf16.msra.mxu0 %v2416
        %3483 = vmatpush.bf16.msra.mxu0 %v2408
        %3484 = vmatpush.bf16.msra.mxu0 %v2400
        %3485 = vmatpush.bf16.msra.mxu0 %v2392
        %3486 = vmatpush.bf16.msra.mxu0 %v2384
        %3487 = vmatmul.bf16.gmra.mxu0 %v1117
        %v3488 = vpop.f32.mrf.mxu0
        %v3489 = vpop.f32.mrf.mxu0
        %3490 = vmatmul.bf16.gmra.mxu0 %v1121
        %v3491 = vpop.f32.mrf.mxu0
        %v3492 = vpop.f32.mrf.mxu0
        %3493 = vmatmul.bf16.gmra.mxu0 %v1125
        %v3494 = vpop.f32.mrf.mxu0
        %v3495 = vpop.f32.mrf.mxu0
        %3496 = vmatmul.bf16.gmra.mxu0 %v1129
        %v3497 = vpop.f32.mrf.mxu0
        %v3498 = vpop.f32.mrf.mxu0
        %3499 = vmatmul.bf16.gmra.mxu0 %v1133
        %v3500 = vpop.f32.mrf.mxu0
        %v3501 = vadd.f32 %v3460, %v3500
        %v3502 = vpop.f32.mrf.mxu0
        %v3503 = vadd.f32 %v3462, %v3502
        %3504 = vmatmul.bf16.gmra.mxu0 %v1137
        %v3505 = vpop.f32.mrf.mxu0
        %v3506 = vadd.f32 %v3465, %v3505
        %v3507 = vpop.f32.mrf.mxu0
        %v3508 = vadd.f32 %v3467, %v3507
        %3509 = vmatmul.bf16.gmra.mxu0 %v1141
        %v3510 = vpop.f32.mrf.mxu0
        %v3511 = vadd.f32 %v3470, %v3510
        %v3512 = vpop.f32.mrf.mxu0
        %v3513 = vadd.f32 %v3472, %v3512
        %3514 = vmatmul.bf16.gmra.mxu0 %v1145
        %v3515 = vpop.f32.mrf.mxu0
        %v3516 = vadd.f32 %v3475, %v3515
        %v3517 = vpop.f32.mrf.mxu0
        %v3518 = vadd.f32 %v3477, %v3517
        %3519 = vdwg.mxu0
        %3520 = vmatpush.bf16.msra.mxu0 %v2249
        %3521 = vmatpush.bf16.msra.mxu0 %v2241
        %3522 = vmatpush.bf16.msra.mxu0 %v2233
        %3523 = vmatpush.bf16.msra.mxu0 %v2225
        %3524 = vmatpush.bf16.msra.mxu0 %v2217
        %3525 = vmatpush.bf16.msra.mxu0 %v2209
        %3526 = vmatpush.bf16.msra.mxu0 %v2201
        %3527 = vmatpush.bf16.msra.mxu0 %v2193
        %3528 = vmatmul.bf16.gmra.mxu0 %v1114
        %v3529 = vpop.f32.mrf.mxu0
        %v3530 = vpop.f32.mrf.mxu0
        %3531 = vmatmul.bf16.gmra.mxu0 %v1118
        %v3532 = vpop.f32.mrf.mxu0
        %v3533 = vpop.f32.mrf.mxu0
        %3534 = vmatmul.bf16.gmra.mxu0 %v1122
        %v3535 = vpop.f32.mrf.mxu0
        %v3536 = vpop.f32.mrf.mxu0
        %3537 = vmatmul.bf16.gmra.mxu0 %v1126
        %v3538 = vpop.f32.mrf.mxu0
        %v3539 = vpop.f32.mrf.mxu0
        %3540 = vmatmul.bf16.gmra.mxu0 %v1130
        %v3541 = vpop.f32.mrf.mxu0
        %v3542 = vadd.f32 %v1409, %v3541
        %v3543 = vpop.f32.mrf.mxu0
        %v3544 = vadd.f32 %v1409, %v3543
        %3545 = vmatmul.bf16.gmra.mxu0 %v1134
        %v3546 = vpop.f32.mrf.mxu0
        %v3547 = vadd.f32 %v1409, %v3546
        %v3548 = vpop.f32.mrf.mxu0
        %v3549 = vadd.f32 %v1409, %v3548
        %3550 = vmatmul.bf16.gmra.mxu0 %v1138
        %v3551 = vpop.f32.mrf.mxu0
        %v3552 = vadd.f32 %v1409, %v3551
        %v3553 = vpop.f32.mrf.mxu0
        %v3554 = vadd.f32 %v1409, %v3553
        %3555 = vmatmul.bf16.gmra.mxu0 %v1142
        %v3556 = vpop.f32.mrf.mxu0
        %v3557 = vadd.f32 %v1409, %v3556
        %v3558 = vpop.f32.mrf.mxu0
        %v3559 = vadd.f32 %v1409, %v3558
        %3560 = vdwg.mxu0
        %3561 = vmatpush.bf16.msra.mxu0 %v2313
        %3562 = vmatpush.bf16.msra.mxu0 %v2305
        %3563 = vmatpush.bf16.msra.mxu0 %v2297
        %3564 = vmatpush.bf16.msra.mxu0 %v2289
        %3565 = vmatpush.bf16.msra.mxu0 %v2281
        %3566 = vmatpush.bf16.msra.mxu0 %v2273
        %3567 = vmatpush.bf16.msra.mxu0 %v2265
        %3568 = vmatpush.bf16.msra.mxu0 %v2257
        %3569 = vmatmul.bf16.gmra.mxu0 %v1115
        %v3570 = vpop.f32.mrf.mxu0
        %v3571 = vpop.f32.mrf.mxu0
        %3572 = vmatmul.bf16.gmra.mxu0 %v1119
        %v3573 = vpop.f32.mrf.mxu0
        %v3574 = vpop.f32.mrf.mxu0
        %3575 = vmatmul.bf16.gmra.mxu0 %v1123
        %v3576 = vpop.f32.mrf.mxu0
        %v3577 = vpop.f32.mrf.mxu0
        %3578 = vmatmul.bf16.gmra.mxu0 %v1127
        %v3579 = vpop.f32.mrf.mxu0
        %v3580 = vpop.f32.mrf.mxu0
        %3581 = vmatmul.bf16.gmra.mxu0 %v1131
        %v3582 = vpop.f32.mrf.mxu0
        %v3583 = vadd.f32 %v3542, %v3582
        %v3584 = vpop.f32.mrf.mxu0
        %v3585 = vadd.f32 %v3544, %v3584
        %3586 = vmatmul.bf16.gmra.mxu0 %v1135
        %v3587 = vpop.f32.mrf.mxu0
        %v3588 = vadd.f32 %v3547, %v3587
        %v3589 = vpop.f32.mrf.mxu0
        %v3590 = vadd.f32 %v3549, %v3589
        %3591 = vmatmul.bf16.gmra.mxu0 %v1139
        %v3592 = vpop.f32.mrf.mxu0
        %v3593 = vadd.f32 %v3552, %v3592
        %v3594 = vpop.f32.mrf.mxu0
        %v3595 = vadd.f32 %v3554, %v3594
        %3596 = vmatmul.bf16.gmra.mxu0 %v1143
        %v3597 = vpop.f32.mrf.mxu0
        %v3598 = vadd.f32 %v3557, %v3597
        %v3599 = vpop.f32.mrf.mxu0
        %v3600 = vadd.f32 %v3559, %v3599
        %3601 = vdwg.mxu0
        %3602 = vmatpush.bf16.msra.mxu0 %v2377
        %3603 = vmatpush.bf16.msra.mxu0 %v2369
        %3604 = vmatpush.bf16.msra.mxu0 %v2361
        %3605 = vmatpush.bf16.msra.mxu0 %v2353
        %3606 = vmatpush.bf16.msra.mxu0 %v2345
        %3607 = vmatpush.bf16.msra.mxu0 %v2337
        %3608 = vmatpush.bf16.msra.mxu0 %v2329
        %3609 = vmatpush.bf16.msra.mxu0 %v2321
        %3610 = vmatmul.bf16.gmra.mxu0 %v1116
        %v3611 = vpop.f32.mrf.mxu0
        %v3612 = vpop.f32.mrf.mxu0
        %3613 = vmatmul.bf16.gmra.mxu0 %v1120
        %v3614 = vpop.f32.mrf.mxu0
        %v3615 = vpop.f32.mrf.mxu0
        %3616 = vmatmul.bf16.gmra.mxu0 %v1124
        %v3617 = vpop.f32.mrf.mxu0
        %v3618 = vpop.f32.mrf.mxu0
        %3619 = vmatmul.bf16.gmra.mxu0 %v1128
        %v3620 = vpop.f32.mrf.mxu0
        %v3621 = vpop.f32.mrf.mxu0
        %3622 = vmatmul.bf16.gmra.mxu0 %v1132
        %v3623 = vpop.f32.mrf.mxu0
        %v3624 = vadd.f32 %v3583, %v3623
        %v3625 = vpop.f32.mrf.mxu0
        %v3626 = vadd.f32 %v3585, %v3625
        %3627 = vmatmul.bf16.gmra.mxu0 %v1136
        %v3628 = vpop.f32.mrf.mxu0
        %v3629 = vadd.f32 %v3588, %v3628
        %v3630 = vpop.f32.mrf.mxu0
        %v3631 = vadd.f32 %v3590, %v3630
        %3632 = vmatmul.bf16.gmra.mxu0 %v1140
        %v3633 = vpop.f32.mrf.mxu0
        %v3634 = vadd.f32 %v3593, %v3633
        %v3635 = vpop.f32.mrf.mxu0
        %v3636 = vadd.f32 %v3595, %v3635
        %3637 = vmatmul.bf16.gmra.mxu0 %v1144
        %v3638 = vpop.f32.mrf.mxu0
        %v3639 = vadd.f32 %v3598, %v3638
        %v3640 = vpop.f32.mrf.mxu0
        %v3641 = vadd.f32 %v3600, %v3640
        %3642 = vdwg.mxu0
        %3643 = vmatpush.bf16.msra.mxu0 %v2441
        %3644 = vmatpush.bf16.msra.mxu0 %v2433
        %3645 = vmatpush.bf16.msra.mxu0 %v2425
        %3646 = vmatpush.bf16.msra.mxu0 %v2417
        %3647 = vmatpush.bf16.msra.mxu0 %v2409
        %3648 = vmatpush.bf16.msra.mxu0 %v2401
        %3649 = vmatpush.bf16.msra.mxu0 %v2393
        %3650 = vmatpush.bf16.msra.mxu0 %v2385
        %3651 = vmatmul.bf16.gmra.mxu0 %v1117
        %v3652 = vpop.f32.mrf.mxu0
        %v3653 = vpop.f32.mrf.mxu0
        %3654 = vmatmul.bf16.gmra.mxu0 %v1121
        %v3655 = vpop.f32.mrf.mxu0
        %v3656 = vpop.f32.mrf.mxu0
        %3657 = vmatmul.bf16.gmra.mxu0 %v1125
        %v3658 = vpop.f32.mrf.mxu0
        %v3659 = vpop.f32.mrf.mxu0
        %3660 = vmatmul.bf16.gmra.mxu0 %v1129
        %v3661 = vpop.f32.mrf.mxu0
        %v3662 = vpop.f32.mrf.mxu0
        %3663 = vmatmul.bf16.gmra.mxu0 %v1133
        %v3664 = vpop.f32.mrf.mxu0
        %v3665 = vadd.f32 %v3624, %v3664
        %v3666 = vpop.f32.mrf.mxu0
        %v3667 = vadd.f32 %v3626, %v3666
        %3668 = vmatmul.bf16.gmra.mxu0 %v1137
        %v3669 = vpop.f32.mrf.mxu0
        %v3670 = vadd.f32 %v3629, %v3669
        %v3671 = vpop.f32.mrf.mxu0
        %v3672 = vadd.f32 %v3631, %v3671
        %3673 = vmatmul.bf16.gmra.mxu0 %v1141
        %v3674 = vpop.f32.mrf.mxu0
        %v3675 = vadd.f32 %v3634, %v3674
        %v3676 = vpop.f32.mrf.mxu0
        %v3677 = vadd.f32 %v3636, %v3676
        %3678 = vmatmul.bf16.gmra.mxu0 %v1145
        %v3679 = vpop.f32.mrf.mxu0
        %v3680 = vadd.f32 %v3639, %v3679
        %v3681 = vpop.f32.mrf.mxu0
        %v3682 = vadd.f32 %v3641, %v3681
        %3683 = vdwg.mxu0
        %3684 = vmatpush.bf16.msra.mxu0 %v2250
        %3685 = vmatpush.bf16.msra.mxu0 %v2242
        %3686 = vmatpush.bf16.msra.mxu0 %v2234
        %3687 = vmatpush.bf16.msra.mxu0 %v2226
        %3688 = vmatpush.bf16.msra.mxu0 %v2218
        %3689 = vmatpush.bf16.msra.mxu0 %v2210
        %3690 = vmatpush.bf16.msra.mxu0 %v2202
        %3691 = vmatpush.bf16.msra.mxu0 %v2194
        %3692 = vmatmul.bf16.gmra.mxu0 %v1114
        %v3693 = vpop.f32.mrf.mxu0
        %v3694 = vpop.f32.mrf.mxu0
        %3695 = vmatmul.bf16.gmra.mxu0 %v1118
        %v3696 = vpop.f32.mrf.mxu0
        %v3697 = vpop.f32.mrf.mxu0
        %3698 = vmatmul.bf16.gmra.mxu0 %v1122
        %v3699 = vpop.f32.mrf.mxu0
        %v3700 = vpop.f32.mrf.mxu0
        %3701 = vmatmul.bf16.gmra.mxu0 %v1126
        %v3702 = vpop.f32.mrf.mxu0
        %v3703 = vpop.f32.mrf.mxu0
        %3704 = vmatmul.bf16.gmra.mxu0 %v1130
        %v3705 = vpop.f32.mrf.mxu0
        %v3706 = vadd.f32 %v1410, %v3705
        %v3707 = vpop.f32.mrf.mxu0
        %v3708 = vadd.f32 %v1410, %v3707
        %3709 = vmatmul.bf16.gmra.mxu0 %v1134
        %v3710 = vpop.f32.mrf.mxu0
        %v3711 = vadd.f32 %v1410, %v3710
        %v3712 = vpop.f32.mrf.mxu0
        %v3713 = vadd.f32 %v1410, %v3712
        %3714 = vmatmul.bf16.gmra.mxu0 %v1138
        %v3715 = vpop.f32.mrf.mxu0
        %v3716 = vadd.f32 %v1410, %v3715
        %v3717 = vpop.f32.mrf.mxu0
        %v3718 = vadd.f32 %v1410, %v3717
        %3719 = vmatmul.bf16.gmra.mxu0 %v1142
        %v3720 = vpop.f32.mrf.mxu0
        %v3721 = vadd.f32 %v1410, %v3720
        %v3722 = vpop.f32.mrf.mxu0
        %v3723 = vadd.f32 %v1410, %v3722
        %3724 = vdwg.mxu0
        %3725 = vmatpush.bf16.msra.mxu0 %v2314
        %3726 = vmatpush.bf16.msra.mxu0 %v2306
        %3727 = vmatpush.bf16.msra.mxu0 %v2298
        %3728 = vmatpush.bf16.msra.mxu0 %v2290
        %3729 = vmatpush.bf16.msra.mxu0 %v2282
        %3730 = vmatpush.bf16.msra.mxu0 %v2274
        %3731 = vmatpush.bf16.msra.mxu0 %v2266
        %3732 = vmatpush.bf16.msra.mxu0 %v2258
        %3733 = vmatmul.bf16.gmra.mxu0 %v1115
        %v3734 = vpop.f32.mrf.mxu0
        %v3735 = vpop.f32.mrf.mxu0
        %3736 = vmatmul.bf16.gmra.mxu0 %v1119
        %v3737 = vpop.f32.mrf.mxu0
        %v3738 = vpop.f32.mrf.mxu0
        %3739 = vmatmul.bf16.gmra.mxu0 %v1123
        %v3740 = vpop.f32.mrf.mxu0
        %v3741 = vpop.f32.mrf.mxu0
        %3742 = vmatmul.bf16.gmra.mxu0 %v1127
        %v3743 = vpop.f32.mrf.mxu0
        %v3744 = vpop.f32.mrf.mxu0
        %3745 = vmatmul.bf16.gmra.mxu0 %v1131
        %v3746 = vpop.f32.mrf.mxu0
        %v3747 = vadd.f32 %v3706, %v3746
        %v3748 = vpop.f32.mrf.mxu0
        %v3749 = vadd.f32 %v3708, %v3748
        %3750 = vmatmul.bf16.gmra.mxu0 %v1135
        %v3751 = vpop.f32.mrf.mxu0
        %v3752 = vadd.f32 %v3711, %v3751
        %v3753 = vpop.f32.mrf.mxu0
        %v3754 = vadd.f32 %v3713, %v3753
        %3755 = vmatmul.bf16.gmra.mxu0 %v1139
        %v3756 = vpop.f32.mrf.mxu0
        %v3757 = vadd.f32 %v3716, %v3756
        %v3758 = vpop.f32.mrf.mxu0
        %v3759 = vadd.f32 %v3718, %v3758
        %3760 = vmatmul.bf16.gmra.mxu0 %v1143
        %v3761 = vpop.f32.mrf.mxu0
        %v3762 = vadd.f32 %v3721, %v3761
        %v3763 = vpop.f32.mrf.mxu0
        %v3764 = vadd.f32 %v3723, %v3763
        %3765 = vdwg.mxu0
        %3766 = vmatpush.bf16.msra.mxu0 %v2378
        %3767 = vmatpush.bf16.msra.mxu0 %v2370
        %3768 = vmatpush.bf16.msra.mxu0 %v2362
        %3769 = vmatpush.bf16.msra.mxu0 %v2354
        %3770 = vmatpush.bf16.msra.mxu0 %v2346
        %3771 = vmatpush.bf16.msra.mxu0 %v2338
        %3772 = vmatpush.bf16.msra.mxu0 %v2330
        %3773 = vmatpush.bf16.msra.mxu0 %v2322
        %3774 = vmatmul.bf16.gmra.mxu0 %v1116
        %v3775 = vpop.f32.mrf.mxu0
        %v3776 = vpop.f32.mrf.mxu0
        %3777 = vmatmul.bf16.gmra.mxu0 %v1120
        %v3778 = vpop.f32.mrf.mxu0
        %v3779 = vpop.f32.mrf.mxu0
        %3780 = vmatmul.bf16.gmra.mxu0 %v1124
        %v3781 = vpop.f32.mrf.mxu0
        %v3782 = vpop.f32.mrf.mxu0
        %3783 = vmatmul.bf16.gmra.mxu0 %v1128
        %v3784 = vpop.f32.mrf.mxu0
        %v3785 = vpop.f32.mrf.mxu0
        %3786 = vmatmul.bf16.gmra.mxu0 %v1132
        %v3787 = vpop.f32.mrf.mxu0
        %v3788 = vadd.f32 %v3747, %v3787
        %v3789 = vpop.f32.mrf.mxu0
        %v3790 = vadd.f32 %v3749, %v3789
        %3791 = vmatmul.bf16.gmra.mxu0 %v1136
        %v3792 = vpop.f32.mrf.mxu0
        %v3793 = vadd.f32 %v3752, %v3792
        %v3794 = vpop.f32.mrf.mxu0
        %v3795 = vadd.f32 %v3754, %v3794
        %3796 = vmatmul.bf16.gmra.mxu0 %v1140
        %v3797 = vpop.f32.mrf.mxu0
        %v3798 = vadd.f32 %v3757, %v3797
        %v3799 = vpop.f32.mrf.mxu0
        %v3800 = vadd.f32 %v3759, %v3799
        %3801 = vmatmul.bf16.gmra.mxu0 %v1144
        %v3802 = vpop.f32.mrf.mxu0
        %v3803 = vadd.f32 %v3762, %v3802
        %v3804 = vpop.f32.mrf.mxu0
        %v3805 = vadd.f32 %v3764, %v3804
        %3806 = vdwg.mxu0
        %3807 = vmatpush.bf16.msra.mxu0 %v2442
        %3808 = vmatpush.bf16.msra.mxu0 %v2434
        %3809 = vmatpush.bf16.msra.mxu0 %v2426
        %3810 = vmatpush.bf16.msra.mxu0 %v2418
        %3811 = vmatpush.bf16.msra.mxu0 %v2410
        %3812 = vmatpush.bf16.msra.mxu0 %v2402
        %3813 = vmatpush.bf16.msra.mxu0 %v2394
        %3814 = vmatpush.bf16.msra.mxu0 %v2386
        %3815 = vmatmul.bf16.gmra.mxu0 %v1117
        %v3816 = vpop.f32.mrf.mxu0
        %v3817 = vpop.f32.mrf.mxu0
        %3818 = vmatmul.bf16.gmra.mxu0 %v1121
        %v3819 = vpop.f32.mrf.mxu0
        %v3820 = vpop.f32.mrf.mxu0
        %3821 = vmatmul.bf16.gmra.mxu0 %v1125
        %v3822 = vpop.f32.mrf.mxu0
        %v3823 = vpop.f32.mrf.mxu0
        %3824 = vmatmul.bf16.gmra.mxu0 %v1129
        %v3825 = vpop.f32.mrf.mxu0
        %v3826 = vpop.f32.mrf.mxu0
        %3827 = vmatmul.bf16.gmra.mxu0 %v1133
        %v3828 = vpop.f32.mrf.mxu0
        %v3829 = vadd.f32 %v3788, %v3828
        %v3830 = vpop.f32.mrf.mxu0
        %v3831 = vadd.f32 %v3790, %v3830
        %3832 = vmatmul.bf16.gmra.mxu0 %v1137
        %v3833 = vpop.f32.mrf.mxu0
        %v3834 = vadd.f32 %v3793, %v3833
        %v3835 = vpop.f32.mrf.mxu0
        %v3836 = vadd.f32 %v3795, %v3835
        %3837 = vmatmul.bf16.gmra.mxu0 %v1141
        %v3838 = vpop.f32.mrf.mxu0
        %v3839 = vadd.f32 %v3798, %v3838
        %v3840 = vpop.f32.mrf.mxu0
        %v3841 = vadd.f32 %v3800, %v3840
        %3842 = vmatmul.bf16.gmra.mxu0 %v1145
        %v3843 = vpop.f32.mrf.mxu0
        %v3844 = vadd.f32 %v3803, %v3843
        %v3845 = vpop.f32.mrf.mxu0
        %v3846 = vadd.f32 %v3805, %v3845
        %3847 = vdwg.mxu0
        %3848 = vmatpush.bf16.msra.mxu0 %v2251
        %3849 = vmatpush.bf16.msra.mxu0 %v2243
        %3850 = vmatpush.bf16.msra.mxu0 %v2235
        %3851 = vmatpush.bf16.msra.mxu0 %v2227
        %3852 = vmatpush.bf16.msra.mxu0 %v2219
        %3853 = vmatpush.bf16.msra.mxu0 %v2211
        %3854 = vmatpush.bf16.msra.mxu0 %v2203
        %3855 = vmatpush.bf16.msra.mxu0 %v2195
        %3856 = vmatmul.bf16.gmra.mxu0 %v1114
        %v3857 = vpop.f32.mrf.mxu0
        %v3858 = vpop.f32.mrf.mxu0
        %3859 = vmatmul.bf16.gmra.mxu0 %v1118
        %v3860 = vpop.f32.mrf.mxu0
        %v3861 = vpop.f32.mrf.mxu0
        %3862 = vmatmul.bf16.gmra.mxu0 %v1122
        %v3863 = vpop.f32.mrf.mxu0
        %v3864 = vpop.f32.mrf.mxu0
        %3865 = vmatmul.bf16.gmra.mxu0 %v1126
        %v3866 = vpop.f32.mrf.mxu0
        %v3867 = vpop.f32.mrf.mxu0
        %3868 = vmatmul.bf16.gmra.mxu0 %v1130
        %v3869 = vpop.f32.mrf.mxu0
        %v3870 = vadd.f32 %v1411, %v3869
        %v3871 = vpop.f32.mrf.mxu0
        %v3872 = vadd.f32 %v1411, %v3871
        %3873 = vmatmul.bf16.gmra.mxu0 %v1134
        %v3874 = vpop.f32.mrf.mxu0
        %v3875 = vadd.f32 %v1411, %v3874
        %v3876 = vpop.f32.mrf.mxu0
        %v3877 = vadd.f32 %v1411, %v3876
        %3878 = vmatmul.bf16.gmra.mxu0 %v1138
        %v3879 = vpop.f32.mrf.mxu0
        %v3880 = vadd.f32 %v1411, %v3879
        %v3881 = vpop.f32.mrf.mxu0
        %v3882 = vadd.f32 %v1411, %v3881
        %3883 = vmatmul.bf16.gmra.mxu0 %v1142
        %v3884 = vpop.f32.mrf.mxu0
        %v3885 = vadd.f32 %v1411, %v3884
        %v3886 = vpop.f32.mrf.mxu0
        %v3887 = vadd.f32 %v1411, %v3886
        %3888 = vdwg.mxu0
        %3889 = vmatpush.bf16.msra.mxu0 %v2315
        %3890 = vmatpush.bf16.msra.mxu0 %v2307
        %3891 = vmatpush.bf16.msra.mxu0 %v2299
        %3892 = vmatpush.bf16.msra.mxu0 %v2291
        %3893 = vmatpush.bf16.msra.mxu0 %v2283
        %3894 = vmatpush.bf16.msra.mxu0 %v2275
        %3895 = vmatpush.bf16.msra.mxu0 %v2267
        %3896 = vmatpush.bf16.msra.mxu0 %v2259
        %3897 = vmatmul.bf16.gmra.mxu0 %v1115
        %v3898 = vpop.f32.mrf.mxu0
        %v3899 = vpop.f32.mrf.mxu0
        %3900 = vmatmul.bf16.gmra.mxu0 %v1119
        %v3901 = vpop.f32.mrf.mxu0
        %v3902 = vpop.f32.mrf.mxu0
        %3903 = vmatmul.bf16.gmra.mxu0 %v1123
        %v3904 = vpop.f32.mrf.mxu0
        %v3905 = vpop.f32.mrf.mxu0
        %3906 = vmatmul.bf16.gmra.mxu0 %v1127
        %v3907 = vpop.f32.mrf.mxu0
        %v3908 = vpop.f32.mrf.mxu0
        %3909 = vmatmul.bf16.gmra.mxu0 %v1131
        %v3910 = vpop.f32.mrf.mxu0
        %v3911 = vadd.f32 %v3870, %v3910
        %v3912 = vpop.f32.mrf.mxu0
        %v3913 = vadd.f32 %v3872, %v3912
        %3914 = vmatmul.bf16.gmra.mxu0 %v1135
        %v3915 = vpop.f32.mrf.mxu0
        %v3916 = vadd.f32 %v3875, %v3915
        %v3917 = vpop.f32.mrf.mxu0
        %v3918 = vadd.f32 %v3877, %v3917
        %3919 = vmatmul.bf16.gmra.mxu0 %v1139
        %v3920 = vpop.f32.mrf.mxu0
        %v3921 = vadd.f32 %v3880, %v3920
        %v3922 = vpop.f32.mrf.mxu0
        %v3923 = vadd.f32 %v3882, %v3922
        %3924 = vmatmul.bf16.gmra.mxu0 %v1143
        %v3925 = vpop.f32.mrf.mxu0
        %v3926 = vadd.f32 %v3885, %v3925
        %v3927 = vpop.f32.mrf.mxu0
        %v3928 = vadd.f32 %v3887, %v3927
        %3929 = vdwg.mxu0
        %3930 = vmatpush.bf16.msra.mxu0 %v2379
        %3931 = vmatpush.bf16.msra.mxu0 %v2371
        %3932 = vmatpush.bf16.msra.mxu0 %v2363
        %3933 = vmatpush.bf16.msra.mxu0 %v2355
        %3934 = vmatpush.bf16.msra.mxu0 %v2347
        %3935 = vmatpush.bf16.msra.mxu0 %v2339
        %3936 = vmatpush.bf16.msra.mxu0 %v2331
        %3937 = vmatpush.bf16.msra.mxu0 %v2323
        %3938 = vmatmul.bf16.gmra.mxu0 %v1116
        %v3939 = vpop.f32.mrf.mxu0
        %v3940 = vpop.f32.mrf.mxu0
        %3941 = vmatmul.bf16.gmra.mxu0 %v1120
        %v3942 = vpop.f32.mrf.mxu0
        %v3943 = vpop.f32.mrf.mxu0
        %3944 = vmatmul.bf16.gmra.mxu0 %v1124
        %v3945 = vpop.f32.mrf.mxu0
        %v3946 = vpop.f32.mrf.mxu0
        %3947 = vmatmul.bf16.gmra.mxu0 %v1128
        %v3948 = vpop.f32.mrf.mxu0
        %v3949 = vpop.f32.mrf.mxu0
        %3950 = vmatmul.bf16.gmra.mxu0 %v1132
        %v3951 = vpop.f32.mrf.mxu0
        %v3952 = vadd.f32 %v3911, %v3951
        %v3953 = vpop.f32.mrf.mxu0
        %v3954 = vadd.f32 %v3913, %v3953
        %3955 = vmatmul.bf16.gmra.mxu0 %v1136
        %v3956 = vpop.f32.mrf.mxu0
        %v3957 = vadd.f32 %v3916, %v3956
        %v3958 = vpop.f32.mrf.mxu0
        %v3959 = vadd.f32 %v3918, %v3958
        %3960 = vmatmul.bf16.gmra.mxu0 %v1140
        %v3961 = vpop.f32.mrf.mxu0
        %v3962 = vadd.f32 %v3921, %v3961
        %v3963 = vpop.f32.mrf.mxu0
        %v3964 = vadd.f32 %v3923, %v3963
        %3965 = vmatmul.bf16.gmra.mxu0 %v1144
        %v3966 = vpop.f32.mrf.mxu0
        %v3967 = vadd.f32 %v3926, %v3966
        %v3968 = vpop.f32.mrf.mxu0
        %v3969 = vadd.f32 %v3928, %v3968
        %3970 = vdwg.mxu0
        %3971 = vmatpush.bf16.msra.mxu0 %v2443
        %3972 = vmatpush.bf16.msra.mxu0 %v2435
        %3973 = vmatpush.bf16.msra.mxu0 %v2427
        %3974 = vmatpush.bf16.msra.mxu0 %v2419
        %3975 = vmatpush.bf16.msra.mxu0 %v2411
        %3976 = vmatpush.bf16.msra.mxu0 %v2403
        %3977 = vmatpush.bf16.msra.mxu0 %v2395
        %3978 = vmatpush.bf16.msra.mxu0 %v2387
        %3979 = vmatmul.bf16.gmra.mxu0 %v1117
        %v3980 = vpop.f32.mrf.mxu0
        %v3981 = vpop.f32.mrf.mxu0
        %3982 = vmatmul.bf16.gmra.mxu0 %v1121
        %v3983 = vpop.f32.mrf.mxu0
        %v3984 = vpop.f32.mrf.mxu0
        %3985 = vmatmul.bf16.gmra.mxu0 %v1125
        %v3986 = vpop.f32.mrf.mxu0
        %v3987 = vpop.f32.mrf.mxu0
        %3988 = vmatmul.bf16.gmra.mxu0 %v1129
        %v3989 = vpop.f32.mrf.mxu0
        %v3990 = vpop.f32.mrf.mxu0
        %3991 = vmatmul.bf16.gmra.mxu0 %v1133
        %v3992 = vpop.f32.mrf.mxu0
        %v3993 = vadd.f32 %v3952, %v3992
        %v3994 = vpop.f32.mrf.mxu0
        %v3995 = vadd.f32 %v3954, %v3994
        %3996 = vmatmul.bf16.gmra.mxu0 %v1137
        %v3997 = vpop.f32.mrf.mxu0
        %v3998 = vadd.f32 %v3957, %v3997
        %v3999 = vpop.f32.mrf.mxu0
        %v4000 = vadd.f32 %v3959, %v3999
        %4001 = vmatmul.bf16.gmra.mxu0 %v1141
        %v4002 = vpop.f32.mrf.mxu0
        %v4003 = vadd.f32 %v3962, %v4002
        %v4004 = vpop.f32.mrf.mxu0
        %v4005 = vadd.f32 %v3964, %v4004
        %4006 = vmatmul.bf16.gmra.mxu0 %v1145
        %v4007 = vpop.f32.mrf.mxu0
        %v4008 = vadd.f32 %v3967, %v4007
        %v4009 = vpop.f32.mrf.mxu0
        %v4010 = vadd.f32 %v3969, %v4009
        %4011 = vdwg.mxu0
        %v4012 = vmax.f32 %v2833, 0.0
        %v4013 = vmax.f32 %v2997, 0.0
        %v4014 = vmax.f32 %v3161, 0.0
        %v4015 = vmax.f32 %v3325, 0.0
        %v4016 = vmax.f32 %v2835, 0.0
        %v4017 = vmax.f32 %v2999, 0.0
        %v4018 = vmax.f32 %v3163, 0.0
        %v4019 = vmax.f32 %v3327, 0.0
        %v4020 = vmax.f32 %v2838, 0.0
        %v4021 = vmax.f32 %v3002, 0.0
        %v4022 = vmax.f32 %v3166, 0.0
        %v4023 = vmax.f32 %v3330, 0.0
        %v4024 = vmax.f32 %v2840, 0.0
        %v4025 = vmax.f32 %v3004, 0.0
        %v4026 = vmax.f32 %v3168, 0.0
        %v4027 = vmax.f32 %v3332, 0.0
        %v4028 = vmax.f32 %v2843, 0.0
        %v4029 = vmax.f32 %v3007, 0.0
        %v4030 = vmax.f32 %v3171, 0.0
        %v4031 = vmax.f32 %v3335, 0.0
        %v4032 = vmax.f32 %v2845, 0.0
        %v4033 = vmax.f32 %v3009, 0.0
        %v4034 = vmax.f32 %v3173, 0.0
        %v4035 = vmax.f32 %v3337, 0.0
        %v4036 = vmax.f32 %v2848, 0.0
        %v4037 = vmax.f32 %v3012, 0.0
        %v4038 = vmax.f32 %v3176, 0.0
        %v4039 = vmax.f32 %v3340, 0.0
        %v4040 = vmax.f32 %v2850, 0.0
        %v4041 = vmax.f32 %v3014, 0.0
        %v4042 = vmax.f32 %v3178, 0.0
        %v4043 = vmax.f32 %v3342, 0.0
        %v4044 = vmax.f32 %v3501, 0.0
        %v4045 = vmax.f32 %v3665, 0.0
        %v4046 = vmax.f32 %v3829, 0.0
        %v4047 = vmax.f32 %v3993, 0.0
        %v4048 = vmax.f32 %v3503, 0.0
        %v4049 = vmax.f32 %v3667, 0.0
        %v4050 = vmax.f32 %v3831, 0.0
        %v4051 = vmax.f32 %v3995, 0.0
        %v4052 = vmax.f32 %v3506, 0.0
        %v4053 = vmax.f32 %v3670, 0.0
        %v4054 = vmax.f32 %v3834, 0.0
        %v4055 = vmax.f32 %v3998, 0.0
        %v4056 = vmax.f32 %v3508, 0.0
        %v4057 = vmax.f32 %v3672, 0.0
        %v4058 = vmax.f32 %v3836, 0.0
        %v4059 = vmax.f32 %v4000, 0.0
        %v4060 = vmax.f32 %v3511, 0.0
        %v4061 = vmax.f32 %v3675, 0.0
        %v4062 = vmax.f32 %v3839, 0.0
        %v4063 = vmax.f32 %v4003, 0.0
        %v4064 = vmax.f32 %v3513, 0.0
        %v4065 = vmax.f32 %v3677, 0.0
        %v4066 = vmax.f32 %v3841, 0.0
        %v4067 = vmax.f32 %v4005, 0.0
        %v4068 = vmax.f32 %v3516, 0.0
        %v4069 = vmax.f32 %v3680, 0.0
        %v4070 = vmax.f32 %v3844, 0.0
        %v4071 = vmax.f32 %v4008, 0.0
        %v4072 = vmax.f32 %v3518, 0.0
        %v4073 = vmax.f32 %v3682, 0.0
        %v4074 = vmax.f32 %v3846, 0.0
        %v4075 = vmax.f32 %v4010, 0.0
        %v4076 = vpack.c.bf16 %v4016, %v4012
        %v4077 = vpack.c.bf16 %v4017, %v4013
        %v4078 = vpack.c.bf16 %v4018, %v4014
        %v4079 = vpack.c.bf16 %v4019, %v4015
        %v4080 = vpack.c.bf16 %v4024, %v4020
        %v4081 = vpack.c.bf16 %v4025, %v4021
        %v4082 = vpack.c.bf16 %v4026, %v4022
        %v4083 = vpack.c.bf16 %v4027, %v4023
        %v4084 = vpack.c.bf16 %v4032, %v4028
        %v4085 = vpack.c.bf16 %v4033, %v4029
        %v4086 = vpack.c.bf16 %v4034, %v4030
        %v4087 = vpack.c.bf16 %v4035, %v4031
        %v4088 = vpack.c.bf16 %v4040, %v4036
        %v4089 = vpack.c.bf16 %v4041, %v4037
        %v4090 = vpack.c.bf16 %v4042, %v4038
        %v4091 = vpack.c.bf16 %v4043, %v4039
        %v4092 = vpack.c.bf16 %v4048, %v4044
        %v4093 = vpack.c.bf16 %v4049, %v4045
        %v4094 = vpack.c.bf16 %v4050, %v4046
        %v4095 = vpack.c.bf16 %v4051, %v4047
        %v4096 = vpack.c.bf16 %v4056, %v4052
        %v4097 = vpack.c.bf16 %v4057, %v4053
        %v4098 = vpack.c.bf16 %v4058, %v4054
        %v4099 = vpack.c.bf16 %v4059, %v4055
        %v4100 = vpack.c.bf16 %v4064, %v4060
        %v4101 = vpack.c.bf16 %v4065, %v4061
        %v4102 = vpack.c.bf16 %v4066, %v4062
        %v4103 = vpack.c.bf16 %v4067, %v4063
        %v4104 = vpack.c.bf16 %v4072, %v4068
        %v4105 = vpack.c.bf16 %v4073, %v4069
        %v4106 = vpack.c.bf16 %v4074, %v4070
        %v4107 = vpack.c.bf16 %v4075, %v4071
        %v4108 = vld [vmem:[#allocation4] sm:$0xff]
        %v4109 = vld [vmem:[#allocation4 + $0x8] sm:$0xff]
        %v4110 = vld [vmem:[#allocation4 + $0x10] sm:$0xff]
        %v4111 = vld [vmem:[#allocation4 + $0x18] sm:$0xff]
        %v4112 = vld [vmem:[#allocation4 + $0x20] sm:$0xff]
        %v4113 = vld [vmem:[#allocation4 + $0x28] sm:$0xff]
        %v4114 = vld [vmem:[#allocation4 + $0x30] sm:$0xff]
        %v4115 = vld [vmem:[#allocation4 + $0x38] sm:$0xff]
        %v4116 = vld [vmem:[#allocation4 + $0x40] sm:$0xff]
        %v4117 = vld [vmem:[#allocation4 + $0x48] sm:$0xff]
        %v4118 = vld [vmem:[#allocation4 + $0x50] sm:$0xff]
        %v4119 = vld [vmem:[#allocation4 + $0x58] sm:$0xff]
        %v4120 = vld [vmem:[#allocation4 + $0x60] sm:$0xff]
        %v4121 = vld [vmem:[#allocation4 + $0x68] sm:$0xff]
        %v4122 = vld [vmem:[#allocation4 + $0x70] sm:$0xff]
        %v4123 = vld [vmem:[#allocation4 + $0x78] sm:$0xff]
        %v4124 = vld [vmem:[#allocation4 + $0x80] sm:$0xff]
        %v4125 = vld [vmem:[#allocation4 + $0x88] sm:$0xff]
        %v4126 = vld [vmem:[#allocation4 + $0x90] sm:$0xff]
        %v4127 = vld [vmem:[#allocation4 + $0x98] sm:$0xff]
        %v4128 = vld [vmem:[#allocation4 + $0xa0] sm:$0xff]
        %v4129 = vld [vmem:[#allocation4 + $0xa8] sm:$0xff]
        %v4130 = vld [vmem:[#allocation4 + $0xb0] sm:$0xff]
        %v4131 = vld [vmem:[#allocation4 + $0xb8] sm:$0xff]
        %v4132 = vld [vmem:[#allocation4 + $0xc0] sm:$0xff]
        %v4133 = vld [vmem:[#allocation4 + $0xc8] sm:$0xff]
        %v4134 = vld [vmem:[#allocation4 + $0xd0] sm:$0xff]
        %v4135 = vld [vmem:[#allocation4 + $0xd8] sm:$0xff]
        %v4136 = vld [vmem:[#allocation4 + $0xe0] sm:$0xff]
        %v4137 = vld [vmem:[#allocation4 + $0xe8] sm:$0xff]
        %v4138 = vld [vmem:[#allocation4 + $0xf0] sm:$0xff]
        %v4139 = vld [vmem:[#allocation4 + $0xf8] sm:$0xff]
        %v4140 = vld [vmem:[#allocation4 + $0x100] sm:$0xff]
        %v4141 = vld [vmem:[#allocation4 + $0x108] sm:$0xff]
        %v4142 = vld [vmem:[#allocation4 + $0x110] sm:$0xff]
        %v4143 = vld [vmem:[#allocation4 + $0x118] sm:$0xff]
        %v4144 = vld [vmem:[#allocation4 + $0x120] sm:$0xff]
        %v4145 = vld [vmem:[#allocation4 + $0x128] sm:$0xff]
        %v4146 = vld [vmem:[#allocation4 + $0x130] sm:$0xff]
        %v4147 = vld [vmem:[#allocation4 + $0x138] sm:$0xff]
        %v4148 = vld [vmem:[#allocation4 + $0x140] sm:$0xff]
        %v4149 = vld [vmem:[#allocation4 + $0x148] sm:$0xff]
        %v4150 = vld [vmem:[#allocation4 + $0x150] sm:$0xff]
        %v4151 = vld [vmem:[#allocation4 + $0x158] sm:$0xff]
        %v4152 = vld [vmem:[#allocation4 + $0x160] sm:$0xff]
        %v4153 = vld [vmem:[#allocation4 + $0x168] sm:$0xff]
        %v4154 = vld [vmem:[#allocation4 + $0x170] sm:$0xff]
        %v4155 = vld [vmem:[#allocation4 + $0x178] sm:$0xff]
        %v4156 = vld [vmem:[#allocation4 + $0x180] sm:$0xff]
        %v4157 = vld [vmem:[#allocation4 + $0x188] sm:$0xff]
        %v4158 = vld [vmem:[#allocation4 + $0x190] sm:$0xff]
        %v4159 = vld [vmem:[#allocation4 + $0x198] sm:$0xff]
        %v4160 = vld [vmem:[#allocation4 + $0x1a0] sm:$0xff]
        %v4161 = vld [vmem:[#allocation4 + $0x1a8] sm:$0xff]
        %v4162 = vld [vmem:[#allocation4 + $0x1b0] sm:$0xff]
        %v4163 = vld [vmem:[#allocation4 + $0x1b8] sm:$0xff]
        %v4164 = vld [vmem:[#allocation4 + $0x1c0] sm:$0xff]
        %v4165 = vld [vmem:[#allocation4 + $0x1c8] sm:$0xff]
        %v4166 = vld [vmem:[#allocation4 + $0x1d0] sm:$0xff]
        %v4167 = vld [vmem:[#allocation4 + $0x1d8] sm:$0xff]
        %v4168 = vld [vmem:[#allocation4 + $0x1e0] sm:$0xff]
        %v4169 = vld [vmem:[#allocation4 + $0x1e8] sm:$0xff]
        %v4170 = vld [vmem:[#allocation4 + $0x1f0] sm:$0xff]
        %v4171 = vld [vmem:[#allocation4 + $0x1f8] sm:$0xff]
        %v4172 = vld [vmem:[#allocation4 + $0x200] sm:$0xff]
        %v4173 = vld [vmem:[#allocation4 + $0x208] sm:$0xff]
        %v4174 = vld [vmem:[#allocation4 + $0x210] sm:$0xff]
        %v4175 = vld [vmem:[#allocation4 + $0x218] sm:$0xff]
        %v4176 = vld [vmem:[#allocation4 + $0x220] sm:$0xff]
        %v4177 = vld [vmem:[#allocation4 + $0x228] sm:$0xff]
        %v4178 = vld [vmem:[#allocation4 + $0x230] sm:$0xff]
        %v4179 = vld [vmem:[#allocation4 + $0x238] sm:$0xff]
        %v4180 = vld [vmem:[#allocation4 + $0x240] sm:$0xff]
        %v4181 = vld [vmem:[#allocation4 + $0x248] sm:$0xff]
        %v4182 = vld [vmem:[#allocation4 + $0x250] sm:$0xff]
        %v4183 = vld [vmem:[#allocation4 + $0x258] sm:$0xff]
        %v4184 = vld [vmem:[#allocation4 + $0x260] sm:$0xff]
        %v4185 = vld [vmem:[#allocation4 + $0x268] sm:$0xff]
        %v4186 = vld [vmem:[#allocation4 + $0x270] sm:$0xff]
        %v4187 = vld [vmem:[#allocation4 + $0x278] sm:$0xff]
        %v4188 = vld [vmem:[#allocation4 + $0x280] sm:$0xff]
        %v4189 = vld [vmem:[#allocation4 + $0x288] sm:$0xff]
        %v4190 = vld [vmem:[#allocation4 + $0x290] sm:$0xff]
        %v4191 = vld [vmem:[#allocation4 + $0x298] sm:$0xff]
        %v4192 = vld [vmem:[#allocation4 + $0x2a0] sm:$0xff]
        %v4193 = vld [vmem:[#allocation4 + $0x2a8] sm:$0xff]
        %v4194 = vld [vmem:[#allocation4 + $0x2b0] sm:$0xff]
        %v4195 = vld [vmem:[#allocation4 + $0x2b8] sm:$0xff]
        %v4196 = vld [vmem:[#allocation4 + $0x2c0] sm:$0xff]
        %v4197 = vld [vmem:[#allocation4 + $0x2c8] sm:$0xff]
        %v4198 = vld [vmem:[#allocation4 + $0x2d0] sm:$0xff]
        %v4199 = vld [vmem:[#allocation4 + $0x2d8] sm:$0xff]
        %v4200 = vld [vmem:[#allocation4 + $0x2e0] sm:$0xff]
        %v4201 = vld [vmem:[#allocation4 + $0x2e8] sm:$0xff]
        %v4202 = vld [vmem:[#allocation4 + $0x2f0] sm:$0xff]
        %v4203 = vld [vmem:[#allocation4 + $0x2f8] sm:$0xff]
        %v4204 = vld [vmem:[#allocation4 + $0x300] sm:$0xff]
        %v4205 = vld [vmem:[#allocation4 + $0x308] sm:$0xff]
        %v4206 = vld [vmem:[#allocation4 + $0x310] sm:$0xff]
        %v4207 = vld [vmem:[#allocation4 + $0x318] sm:$0xff]
        %v4208 = vld [vmem:[#allocation4 + $0x320] sm:$0xff]
        %v4209 = vld [vmem:[#allocation4 + $0x328] sm:$0xff]
        %v4210 = vld [vmem:[#allocation4 + $0x330] sm:$0xff]
        %v4211 = vld [vmem:[#allocation4 + $0x338] sm:$0xff]
        %v4212 = vld [vmem:[#allocation4 + $0x340] sm:$0xff]
        %v4213 = vld [vmem:[#allocation4 + $0x348] sm:$0xff]
        %v4214 = vld [vmem:[#allocation4 + $0x350] sm:$0xff]
        %v4215 = vld [vmem:[#allocation4 + $0x358] sm:$0xff]
        %v4216 = vld [vmem:[#allocation4 + $0x360] sm:$0xff]
        %v4217 = vld [vmem:[#allocation4 + $0x368] sm:$0xff]
        %v4218 = vld [vmem:[#allocation4 + $0x370] sm:$0xff]
        %v4219 = vld [vmem:[#allocation4 + $0x378] sm:$0xff]
        %v4220 = vld [vmem:[#allocation4 + $0x380] sm:$0xff]
        %v4221 = vld [vmem:[#allocation4 + $0x388] sm:$0xff]
        %v4222 = vld [vmem:[#allocation4 + $0x390] sm:$0xff]
        %v4223 = vld [vmem:[#allocation4 + $0x398] sm:$0xff]
        %v4224 = vld [vmem:[#allocation4 + $0x3a0] sm:$0xff]
        %v4225 = vld [vmem:[#allocation4 + $0x3a8] sm:$0xff]
        %v4226 = vld [vmem:[#allocation4 + $0x3b0] sm:$0xff]
        %v4227 = vld [vmem:[#allocation4 + $0x3b8] sm:$0xff]
        %v4228 = vld [vmem:[#allocation4 + $0x3c0] sm:$0xff]
        %v4229 = vld [vmem:[#allocation4 + $0x3c8] sm:$0xff]
        %v4230 = vld [vmem:[#allocation4 + $0x3d0] sm:$0xff]
        %v4231 = vld [vmem:[#allocation4 + $0x3d8] sm:$0xff]
        %v4232 = vld [vmem:[#allocation4 + $0x3e0] sm:$0xff]
        %v4233 = vld [vmem:[#allocation4 + $0x3e8] sm:$0xff]
        %v4234 = vld [vmem:[#allocation4 + $0x3f0] sm:$0xff]
        %v4235 = vld [vmem:[#allocation4 + $0x3f8] sm:$0xff]
        %v4236 = vld [vmem:[#allocation6] sm:$0xff]
        %v4237 = vld [vmem:[#allocation6 + $0x8] sm:$0xff]
        %v4238 = vld [vmem:[#allocation6 + $0x10] sm:$0xff]
        %v4239 = vld [vmem:[#allocation6 + $0x18] sm:$0xff]
        %v4240 = vld [vmem:[#allocation6 + $0x20] sm:$0xff]
        %v4241 = vld [vmem:[#allocation6 + $0x28] sm:$0xff]
        %v4242 = vld [vmem:[#allocation6 + $0x30] sm:$0xff]
        %v4243 = vld [vmem:[#allocation6 + $0x38] sm:$0xff]
        %v4244 = vld [vmem:[#allocation6 + $0x40] sm:$0xff]
        %v4245 = vld [vmem:[#allocation6 + $0x48] sm:$0xff]
        %v4246 = vld [vmem:[#allocation6 + $0x50] sm:$0xff]
        %v4247 = vld [vmem:[#allocation6 + $0x58] sm:$0xff]
        %v4248 = vld [vmem:[#allocation6 + $0x60] sm:$0xff]
        %v4249 = vld [vmem:[#allocation6 + $0x68] sm:$0xff]
        %v4250 = vld [vmem:[#allocation6 + $0x70] sm:$0xff]
        %v4251 = vld [vmem:[#allocation6 + $0x78] sm:$0xff]
        %v4252 = vld [vmem:[#allocation6 + $0x80] sm:$0xff]
        %v4253 = vld [vmem:[#allocation6 + $0x88] sm:$0xff]
        %v4254 = vld [vmem:[#allocation6 + $0x90] sm:$0xff]
        %v4255 = vld [vmem:[#allocation6 + $0x98] sm:$0xff]
        %v4256 = vld [vmem:[#allocation6 + $0xa0] sm:$0xff]
        %v4257 = vld [vmem:[#allocation6 + $0xa8] sm:$0xff]
        %v4258 = vld [vmem:[#allocation6 + $0xb0] sm:$0xff]
        %v4259 = vld [vmem:[#allocation6 + $0xb8] sm:$0xff]
        %v4260 = vld [vmem:[#allocation6 + $0xc0] sm:$0xff]
        %v4261 = vld [vmem:[#allocation6 + $0xc8] sm:$0xff]
        %v4262 = vld [vmem:[#allocation6 + $0xd0] sm:$0xff]
        %v4263 = vld [vmem:[#allocation6 + $0xd8] sm:$0xff]
        %v4264 = vld [vmem:[#allocation6 + $0xe0] sm:$0xff]
        %v4265 = vld [vmem:[#allocation6 + $0xe8] sm:$0xff]
        %v4266 = vld [vmem:[#allocation6 + $0xf0] sm:$0xff]
        %v4267 = vld [vmem:[#allocation6 + $0xf8] sm:$0xff]
        %v4268 = vld [vmem:[#allocation6 + $0x100] sm:$0xff]
        %v4269 = vld [vmem:[#allocation6 + $0x108] sm:$0xff]
        %v4270 = vld [vmem:[#allocation6 + $0x110] sm:$0xff]
        %v4271 = vld [vmem:[#allocation6 + $0x118] sm:$0xff]
        %v4272 = vld [vmem:[#allocation6 + $0x120] sm:$0xff]
        %v4273 = vld [vmem:[#allocation6 + $0x128] sm:$0xff]
        %v4274 = vld [vmem:[#allocation6 + $0x130] sm:$0xff]
        %v4275 = vld [vmem:[#allocation6 + $0x138] sm:$0xff]
        %v4276 = vld [vmem:[#allocation6 + $0x140] sm:$0xff]
        %v4277 = vld [vmem:[#allocation6 + $0x148] sm:$0xff]
        %v4278 = vld [vmem:[#allocation6 + $0x150] sm:$0xff]
        %v4279 = vld [vmem:[#allocation6 + $0x158] sm:$0xff]
        %v4280 = vld [vmem:[#allocation6 + $0x160] sm:$0xff]
        %v4281 = vld [vmem:[#allocation6 + $0x168] sm:$0xff]
        %v4282 = vld [vmem:[#allocation6 + $0x170] sm:$0xff]
        %v4283 = vld [vmem:[#allocation6 + $0x178] sm:$0xff]
        %v4284 = vld [vmem:[#allocation6 + $0x180] sm:$0xff]
        %v4285 = vld [vmem:[#allocation6 + $0x188] sm:$0xff]
        %v4286 = vld [vmem:[#allocation6 + $0x190] sm:$0xff]
        %v4287 = vld [vmem:[#allocation6 + $0x198] sm:$0xff]
        %v4288 = vld [vmem:[#allocation6 + $0x1a0] sm:$0xff]
        %v4289 = vld [vmem:[#allocation6 + $0x1a8] sm:$0xff]
        %v4290 = vld [vmem:[#allocation6 + $0x1b0] sm:$0xff]
        %v4291 = vld [vmem:[#allocation6 + $0x1b8] sm:$0xff]
        %v4292 = vld [vmem:[#allocation6 + $0x1c0] sm:$0xff]
        %v4293 = vld [vmem:[#allocation6 + $0x1c8] sm:$0xff]
        %v4294 = vld [vmem:[#allocation6 + $0x1d0] sm:$0xff]
        %v4295 = vld [vmem:[#allocation6 + $0x1d8] sm:$0xff]
        %v4296 = vld [vmem:[#allocation6 + $0x1e0] sm:$0xff]
        %v4297 = vld [vmem:[#allocation6 + $0x1e8] sm:$0xff]
        %v4298 = vld [vmem:[#allocation6 + $0x1f0] sm:$0xff]
        %v4299 = vld [vmem:[#allocation6 + $0x1f8] sm:$0xff]
        %v4300 = vld [vmem:[#allocation6 + $0x200] sm:$0xff]
        %v4301 = vld [vmem:[#allocation6 + $0x208] sm:$0xff]
        %v4302 = vld [vmem:[#allocation6 + $0x210] sm:$0xff]
        %v4303 = vld [vmem:[#allocation6 + $0x218] sm:$0xff]
        %v4304 = vld [vmem:[#allocation6 + $0x220] sm:$0xff]
        %v4305 = vld [vmem:[#allocation6 + $0x228] sm:$0xff]
        %v4306 = vld [vmem:[#allocation6 + $0x230] sm:$0xff]
        %v4307 = vld [vmem:[#allocation6 + $0x238] sm:$0xff]
        %v4308 = vld [vmem:[#allocation6 + $0x240] sm:$0xff]
        %v4309 = vld [vmem:[#allocation6 + $0x248] sm:$0xff]
        %v4310 = vld [vmem:[#allocation6 + $0x250] sm:$0xff]
        %v4311 = vld [vmem:[#allocation6 + $0x258] sm:$0xff]
        %v4312 = vld [vmem:[#allocation6 + $0x260] sm:$0xff]
        %v4313 = vld [vmem:[#allocation6 + $0x268] sm:$0xff]
        %v4314 = vld [vmem:[#allocation6 + $0x270] sm:$0xff]
        %v4315 = vld [vmem:[#allocation6 + $0x278] sm:$0xff]
        %v4316 = vld [vmem:[#allocation6 + $0x280] sm:$0xff]
        %v4317 = vld [vmem:[#allocation6 + $0x288] sm:$0xff]
        %v4318 = vld [vmem:[#allocation6 + $0x290] sm:$0xff]
        %v4319 = vld [vmem:[#allocation6 + $0x298] sm:$0xff]
        %v4320 = vld [vmem:[#allocation6 + $0x2a0] sm:$0xff]
        %v4321 = vld [vmem:[#allocation6 + $0x2a8] sm:$0xff]
        %v4322 = vld [vmem:[#allocation6 + $0x2b0] sm:$0xff]
        %v4323 = vld [vmem:[#allocation6 + $0x2b8] sm:$0xff]
        %v4324 = vld [vmem:[#allocation6 + $0x2c0] sm:$0xff]
        %v4325 = vld [vmem:[#allocation6 + $0x2c8] sm:$0xff]
        %v4326 = vld [vmem:[#allocation6 + $0x2d0] sm:$0xff]
        %v4327 = vld [vmem:[#allocation6 + $0x2d8] sm:$0xff]
        %v4328 = vld [vmem:[#allocation6 + $0x2e0] sm:$0xff]
        %v4329 = vld [vmem:[#allocation6 + $0x2e8] sm:$0xff]
        %v4330 = vld [vmem:[#allocation6 + $0x2f0] sm:$0xff]
        %v4331 = vld [vmem:[#allocation6 + $0x2f8] sm:$0xff]
        %v4332 = vld [vmem:[#allocation6 + $0x300] sm:$0xff]
        %v4333 = vld [vmem:[#allocation6 + $0x308] sm:$0xff]
        %v4334 = vld [vmem:[#allocation6 + $0x310] sm:$0xff]
        %v4335 = vld [vmem:[#allocation6 + $0x318] sm:$0xff]
        %v4336 = vld [vmem:[#allocation6 + $0x320] sm:$0xff]
        %v4337 = vld [vmem:[#allocation6 + $0x328] sm:$0xff]
        %v4338 = vld [vmem:[#allocation6 + $0x330] sm:$0xff]
        %v4339 = vld [vmem:[#allocation6 + $0x338] sm:$0xff]
        %v4340 = vld [vmem:[#allocation6 + $0x340] sm:$0xff]
        %v4341 = vld [vmem:[#allocation6 + $0x348] sm:$0xff]
        %v4342 = vld [vmem:[#allocation6 + $0x350] sm:$0xff]
        %v4343 = vld [vmem:[#allocation6 + $0x358] sm:$0xff]
        %v4344 = vld [vmem:[#allocation6 + $0x360] sm:$0xff]
        %v4345 = vld [vmem:[#allocation6 + $0x368] sm:$0xff]
        %v4346 = vld [vmem:[#allocation6 + $0x370] sm:$0xff]
        %v4347 = vld [vmem:[#allocation6 + $0x378] sm:$0xff]
        %v4348 = vld [vmem:[#allocation6 + $0x380] sm:$0xff]
        %v4349 = vld [vmem:[#allocation6 + $0x388] sm:$0xff]
        %v4350 = vld [vmem:[#allocation6 + $0x390] sm:$0xff]
        %v4351 = vld [vmem:[#allocation6 + $0x398] sm:$0xff]
        %v4352 = vld [vmem:[#allocation6 + $0x3a0] sm:$0xff]
        %v4353 = vld [vmem:[#allocation6 + $0x3a8] sm:$0xff]
        %v4354 = vld [vmem:[#allocation6 + $0x3b0] sm:$0xff]
        %v4355 = vld [vmem:[#allocation6 + $0x3b8] sm:$0xff]
        %v4356 = vld [vmem:[#allocation6 + $0x3c0] sm:$0xff]
        %v4357 = vld [vmem:[#allocation6 + $0x3c8] sm:$0xff]
        %v4358 = vld [vmem:[#allocation6 + $0x3d0] sm:$0xff]
        %v4359 = vld [vmem:[#allocation6 + $0x3d8] sm:$0xff]
        %v4360 = vld [vmem:[#allocation6 + $0x3e0] sm:$0xff]
        %v4361 = vld [vmem:[#allocation6 + $0x3e8] sm:$0xff]
        %v4362 = vld [vmem:[#allocation6 + $0x3f0] sm:$0xff]
        %v4363 = vld [vmem:[#allocation6 + $0x3f8] sm:$0xff]
        %v4492 = vunpack.c.l.b16 %v4236
        %v4493 = vunpack.c.h.b16 %v4236
        %v4494 = vunpack.c.l.b16 %v4237
        %v4495 = vunpack.c.h.b16 %v4237
        %v4496 = vunpack.c.l.b16 %v4238
        %v4497 = vunpack.c.h.b16 %v4238
        %v4498 = vunpack.c.l.b16 %v4239
        %v4499 = vunpack.c.h.b16 %v4239
        %v4500 = vunpack.c.l.b16 %v4240
        %v4501 = vunpack.c.h.b16 %v4240
        %v4502 = vunpack.c.l.b16 %v4241
        %v4503 = vunpack.c.h.b16 %v4241
        %v4504 = vunpack.c.l.b16 %v4242
        %v4505 = vunpack.c.h.b16 %v4242
        %v4506 = vunpack.c.l.b16 %v4243
        %v4507 = vunpack.c.h.b16 %v4243
        %v4508 = vunpack.c.l.b16 %v4244
        %v4509 = vunpack.c.h.b16 %v4244
        %v4510 = vunpack.c.l.b16 %v4245
        %v4511 = vunpack.c.h.b16 %v4245
        %v4512 = vunpack.c.l.b16 %v4246
        %v4513 = vunpack.c.h.b16 %v4246
        %v4514 = vunpack.c.l.b16 %v4247
        %v4515 = vunpack.c.h.b16 %v4247
        %v4516 = vunpack.c.l.b16 %v4248
        %v4517 = vunpack.c.h.b16 %v4248
        %v4518 = vunpack.c.l.b16 %v4249
        %v4519 = vunpack.c.h.b16 %v4249
        %v4520 = vunpack.c.l.b16 %v4250
        %v4521 = vunpack.c.h.b16 %v4250
        %v4522 = vunpack.c.l.b16 %v4251
        %v4523 = vunpack.c.h.b16 %v4251
        %v4524 = vunpack.c.l.b16 %v4252
        %v4525 = vunpack.c.h.b16 %v4252
        %v4526 = vunpack.c.l.b16 %v4253
        %v4527 = vunpack.c.h.b16 %v4253
        %v4528 = vunpack.c.l.b16 %v4254
        %v4529 = vunpack.c.h.b16 %v4254
        %v4530 = vunpack.c.l.b16 %v4255
        %v4531 = vunpack.c.h.b16 %v4255
        %v4532 = vunpack.c.l.b16 %v4256
        %v4533 = vunpack.c.h.b16 %v4256
        %v4534 = vunpack.c.l.b16 %v4257
        %v4535 = vunpack.c.h.b16 %v4257
        %v4536 = vunpack.c.l.b16 %v4258
        %v4537 = vunpack.c.h.b16 %v4258
        %v4538 = vunpack.c.l.b16 %v4259
        %v4539 = vunpack.c.h.b16 %v4259
        %v4540 = vunpack.c.l.b16 %v4260
        %v4541 = vunpack.c.h.b16 %v4260
        %v4542 = vunpack.c.l.b16 %v4261
        %v4543 = vunpack.c.h.b16 %v4261
        %v4544 = vunpack.c.l.b16 %v4262
        %v4545 = vunpack.c.h.b16 %v4262
        %v4546 = vunpack.c.l.b16 %v4263
        %v4547 = vunpack.c.h.b16 %v4263
        %v4548 = vunpack.c.l.b16 %v4264
        %v4549 = vunpack.c.h.b16 %v4264
        %v4550 = vunpack.c.l.b16 %v4265
        %v4551 = vunpack.c.h.b16 %v4265
        %v4552 = vunpack.c.l.b16 %v4266
        %v4553 = vunpack.c.h.b16 %v4266
        %v4554 = vunpack.c.l.b16 %v4267
        %v4555 = vunpack.c.h.b16 %v4267
        %v4556 = vunpack.c.l.b16 %v4268
        %v4557 = vunpack.c.h.b16 %v4268
        %v4558 = vunpack.c.l.b16 %v4269
        %v4559 = vunpack.c.h.b16 %v4269
        %v4560 = vunpack.c.l.b16 %v4270
        %v4561 = vunpack.c.h.b16 %v4270
        %v4562 = vunpack.c.l.b16 %v4271
        %v4563 = vunpack.c.h.b16 %v4271
        %v4564 = vunpack.c.l.b16 %v4272
        %v4565 = vunpack.c.h.b16 %v4272
        %v4566 = vunpack.c.l.b16 %v4273
        %v4567 = vunpack.c.h.b16 %v4273
        %v4568 = vunpack.c.l.b16 %v4274
        %v4569 = vunpack.c.h.b16 %v4274
        %v4570 = vunpack.c.l.b16 %v4275
        %v4571 = vunpack.c.h.b16 %v4275
        %v4572 = vunpack.c.l.b16 %v4276
        %v4573 = vunpack.c.h.b16 %v4276
        %v4574 = vunpack.c.l.b16 %v4277
        %v4575 = vunpack.c.h.b16 %v4277
        %v4576 = vunpack.c.l.b16 %v4278
        %v4577 = vunpack.c.h.b16 %v4278
        %v4578 = vunpack.c.l.b16 %v4279
        %v4579 = vunpack.c.h.b16 %v4279
        %v4580 = vunpack.c.l.b16 %v4280
        %v4581 = vunpack.c.h.b16 %v4280
        %v4582 = vunpack.c.l.b16 %v4281
        %v4583 = vunpack.c.h.b16 %v4281
        %v4584 = vunpack.c.l.b16 %v4282
        %v4585 = vunpack.c.h.b16 %v4282
        %v4586 = vunpack.c.l.b16 %v4283
        %v4587 = vunpack.c.h.b16 %v4283
        %v4588 = vunpack.c.l.b16 %v4284
        %v4589 = vunpack.c.h.b16 %v4284
        %v4590 = vunpack.c.l.b16 %v4285
        %v4591 = vunpack.c.h.b16 %v4285
        %v4592 = vunpack.c.l.b16 %v4286
        %v4593 = vunpack.c.h.b16 %v4286
        %v4594 = vunpack.c.l.b16 %v4287
        %v4595 = vunpack.c.h.b16 %v4287
        %v4596 = vunpack.c.l.b16 %v4288
        %v4597 = vunpack.c.h.b16 %v4288
        %v4598 = vunpack.c.l.b16 %v4289
        %v4599 = vunpack.c.h.b16 %v4289
        %v4600 = vunpack.c.l.b16 %v4290
        %v4601 = vunpack.c.h.b16 %v4290
        %v4602 = vunpack.c.l.b16 %v4291
        %v4603 = vunpack.c.h.b16 %v4291
        %v4604 = vunpack.c.l.b16 %v4292
        %v4605 = vunpack.c.h.b16 %v4292
        %v4606 = vunpack.c.l.b16 %v4293
        %v4607 = vunpack.c.h.b16 %v4293
        %v4608 = vunpack.c.l.b16 %v4294
        %v4609 = vunpack.c.h.b16 %v4294
        %v4610 = vunpack.c.l.b16 %v4295
        %v4611 = vunpack.c.h.b16 %v4295
        %v4612 = vunpack.c.l.b16 %v4296
        %v4613 = vunpack.c.h.b16 %v4296
        %v4614 = vunpack.c.l.b16 %v4297
        %v4615 = vunpack.c.h.b16 %v4297
        %v4616 = vunpack.c.l.b16 %v4298
        %v4617 = vunpack.c.h.b16 %v4298
        %v4618 = vunpack.c.l.b16 %v4299
        %v4619 = vunpack.c.h.b16 %v4299
        %v4620 = vunpack.c.l.b16 %v4300
        %v4621 = vunpack.c.h.b16 %v4300
        %v4622 = vunpack.c.l.b16 %v4301
        %v4623 = vunpack.c.h.b16 %v4301
        %v4624 = vunpack.c.l.b16 %v4302
        %v4625 = vunpack.c.h.b16 %v4302
        %v4626 = vunpack.c.l.b16 %v4303
        %v4627 = vunpack.c.h.b16 %v4303
        %v4628 = vunpack.c.l.b16 %v4304
        %v4629 = vunpack.c.h.b16 %v4304
        %v4630 = vunpack.c.l.b16 %v4305
        %v4631 = vunpack.c.h.b16 %v4305
        %v4632 = vunpack.c.l.b16 %v4306
        %v4633 = vunpack.c.h.b16 %v4306
        %v4634 = vunpack.c.l.b16 %v4307
        %v4635 = vunpack.c.h.b16 %v4307
        %v4636 = vunpack.c.l.b16 %v4308
        %v4637 = vunpack.c.h.b16 %v4308
        %v4638 = vunpack.c.l.b16 %v4309
        %v4639 = vunpack.c.h.b16 %v4309
        %v4640 = vunpack.c.l.b16 %v4310
        %v4641 = vunpack.c.h.b16 %v4310
        %v4642 = vunpack.c.l.b16 %v4311
        %v4643 = vunpack.c.h.b16 %v4311
        %v4644 = vunpack.c.l.b16 %v4312
        %v4645 = vunpack.c.h.b16 %v4312
        %v4646 = vunpack.c.l.b16 %v4313
        %v4647 = vunpack.c.h.b16 %v4313
        %v4648 = vunpack.c.l.b16 %v4314
        %v4649 = vunpack.c.h.b16 %v4314
        %v4650 = vunpack.c.l.b16 %v4315
        %v4651 = vunpack.c.h.b16 %v4315
        %v4652 = vunpack.c.l.b16 %v4316
        %v4653 = vunpack.c.h.b16 %v4316
        %v4654 = vunpack.c.l.b16 %v4317
        %v4655 = vunpack.c.h.b16 %v4317
        %v4656 = vunpack.c.l.b16 %v4318
        %v4657 = vunpack.c.h.b16 %v4318
        %v4658 = vunpack.c.l.b16 %v4319
        %v4659 = vunpack.c.h.b16 %v4319
        %v4660 = vunpack.c.l.b16 %v4320
        %v4661 = vunpack.c.h.b16 %v4320
        %v4662 = vunpack.c.l.b16 %v4321
        %v4663 = vunpack.c.h.b16 %v4321
        %v4664 = vunpack.c.l.b16 %v4322
        %v4665 = vunpack.c.h.b16 %v4322
        %v4666 = vunpack.c.l.b16 %v4323
        %v4667 = vunpack.c.h.b16 %v4323
        %v4668 = vunpack.c.l.b16 %v4324
        %v4669 = vunpack.c.h.b16 %v4324
        %v4670 = vunpack.c.l.b16 %v4325
        %v4671 = vunpack.c.h.b16 %v4325
        %v4672 = vunpack.c.l.b16 %v4326
        %v4673 = vunpack.c.h.b16 %v4326
        %v4674 = vunpack.c.l.b16 %v4327
        %v4675 = vunpack.c.h.b16 %v4327
        %v4676 = vunpack.c.l.b16 %v4328
        %v4677 = vunpack.c.h.b16 %v4328
        %v4678 = vunpack.c.l.b16 %v4329
        %v4679 = vunpack.c.h.b16 %v4329
        %v4680 = vunpack.c.l.b16 %v4330
        %v4681 = vunpack.c.h.b16 %v4330
        %v4682 = vunpack.c.l.b16 %v4331
        %v4683 = vunpack.c.h.b16 %v4331
        %v4684 = vunpack.c.l.b16 %v4332
        %v4685 = vunpack.c.h.b16 %v4332
        %v4686 = vunpack.c.l.b16 %v4333
        %v4687 = vunpack.c.h.b16 %v4333
        %v4688 = vunpack.c.l.b16 %v4334
        %v4689 = vunpack.c.h.b16 %v4334
        %v4690 = vunpack.c.l.b16 %v4335
        %v4691 = vunpack.c.h.b16 %v4335
        %v4692 = vunpack.c.l.b16 %v4336
        %v4693 = vunpack.c.h.b16 %v4336
        %v4694 = vunpack.c.l.b16 %v4337
        %v4695 = vunpack.c.h.b16 %v4337
        %v4696 = vunpack.c.l.b16 %v4338
        %v4697 = vunpack.c.h.b16 %v4338
        %v4698 = vunpack.c.l.b16 %v4339
        %v4699 = vunpack.c.h.b16 %v4339
        %v4700 = vunpack.c.l.b16 %v4340
        %v4701 = vunpack.c.h.b16 %v4340
        %v4702 = vunpack.c.l.b16 %v4341
        %v4703 = vunpack.c.h.b16 %v4341
        %v4704 = vunpack.c.l.b16 %v4342
        %v4705 = vunpack.c.h.b16 %v4342
        %v4706 = vunpack.c.l.b16 %v4343
        %v4707 = vunpack.c.h.b16 %v4343
        %v4708 = vunpack.c.l.b16 %v4344
        %v4709 = vunpack.c.h.b16 %v4344
        %v4710 = vunpack.c.l.b16 %v4345
        %v4711 = vunpack.c.h.b16 %v4345
        %v4712 = vunpack.c.l.b16 %v4346
        %v4713 = vunpack.c.h.b16 %v4346
        %v4714 = vunpack.c.l.b16 %v4347
        %v4715 = vunpack.c.h.b16 %v4347
        %v4716 = vunpack.c.l.b16 %v4348
        %v4717 = vunpack.c.h.b16 %v4348
        %v4718 = vunpack.c.l.b16 %v4349
        %v4719 = vunpack.c.h.b16 %v4349
        %v4720 = vunpack.c.l.b16 %v4350
        %v4721 = vunpack.c.h.b16 %v4350
        %v4722 = vunpack.c.l.b16 %v4351
        %v4723 = vunpack.c.h.b16 %v4351
        %v4724 = vunpack.c.l.b16 %v4352
        %v4725 = vunpack.c.h.b16 %v4352
        %v4726 = vunpack.c.l.b16 %v4353
        %v4727 = vunpack.c.h.b16 %v4353
        %v4728 = vunpack.c.l.b16 %v4354
        %v4729 = vunpack.c.h.b16 %v4354
        %v4730 = vunpack.c.l.b16 %v4355
        %v4731 = vunpack.c.h.b16 %v4355
        %v4732 = vunpack.c.l.b16 %v4356
        %v4733 = vunpack.c.h.b16 %v4356
        %v4734 = vunpack.c.l.b16 %v4357
        %v4735 = vunpack.c.h.b16 %v4357
        %v4736 = vunpack.c.l.b16 %v4358
        %v4737 = vunpack.c.h.b16 %v4358
        %v4738 = vunpack.c.l.b16 %v4359
        %v4739 = vunpack.c.h.b16 %v4359
        %v4740 = vunpack.c.l.b16 %v4360
        %v4741 = vunpack.c.h.b16 %v4360
        %v4742 = vunpack.c.l.b16 %v4361
        %v4743 = vunpack.c.h.b16 %v4361
        %v4744 = vunpack.c.l.b16 %v4362
        %v4745 = vunpack.c.h.b16 %v4362
        %v4746 = vunpack.c.l.b16 %v4363
        %v4747 = vunpack.c.h.b16 %v4363
        %v4748 = vpack.c.b16 %v4496, %v4492
        %v4749 = vpack.c.b16 %v4497, %v4493
        %v4750 = vpack.c.b16 %v4498, %v4494
        %v4751 = vpack.c.b16 %v4499, %v4495
        %v4752 = vpack.c.b16 %v4504, %v4500
        %v4753 = vpack.c.b16 %v4505, %v4501
        %v4754 = vpack.c.b16 %v4506, %v4502
        %v4755 = vpack.c.b16 %v4507, %v4503
        %v4756 = vpack.c.b16 %v4512, %v4508
        %v4757 = vpack.c.b16 %v4513, %v4509
        %v4758 = vpack.c.b16 %v4514, %v4510
        %v4759 = vpack.c.b16 %v4515, %v4511
        %v4760 = vpack.c.b16 %v4520, %v4516
        %v4761 = vpack.c.b16 %v4521, %v4517
        %v4762 = vpack.c.b16 %v4522, %v4518
        %v4763 = vpack.c.b16 %v4523, %v4519
        %v4764 = vpack.c.b16 %v4528, %v4524
        %v4765 = vpack.c.b16 %v4529, %v4525
        %v4766 = vpack.c.b16 %v4530, %v4526
        %v4767 = vpack.c.b16 %v4531, %v4527
        %v4768 = vpack.c.b16 %v4536, %v4532
        %v4769 = vpack.c.b16 %v4537, %v4533
        %v4770 = vpack.c.b16 %v4538, %v4534
        %v4771 = vpack.c.b16 %v4539, %v4535
        %v4772 = vpack.c.b16 %v4544, %v4540
        %v4773 = vpack.c.b16 %v4545, %v4541
        %v4774 = vpack.c.b16 %v4546, %v4542
        %v4775 = vpack.c.b16 %v4547, %v4543
        %v4776 = vpack.c.b16 %v4552, %v4548
        %v4777 = vpack.c.b16 %v4553, %v4549
        %v4778 = vpack.c.b16 %v4554, %v4550
        %v4779 = vpack.c.b16 %v4555, %v4551
        %v4780 = vpack.c.b16 %v4560, %v4556
        %v4781 = vpack.c.b16 %v4561, %v4557
        %v4782 = vpack.c.b16 %v4562, %v4558
        %v4783 = vpack.c.b16 %v4563, %v4559
        %v4784 = vpack.c.b16 %v4568, %v4564
        %v4785 = vpack.c.b16 %v4569, %v4565
        %v4786 = vpack.c.b16 %v4570, %v4566
        %v4787 = vpack.c.b16 %v4571, %v4567
        %v4788 = vpack.c.b16 %v4576, %v4572
        %v4789 = vpack.c.b16 %v4577, %v4573
        %v4790 = vpack.c.b16 %v4578, %v4574
        %v4791 = vpack.c.b16 %v4579, %v4575
        %v4792 = vpack.c.b16 %v4584, %v4580
        %v4793 = vpack.c.b16 %v4585, %v4581
        %v4794 = vpack.c.b16 %v4586, %v4582
        %v4795 = vpack.c.b16 %v4587, %v4583
        %v4796 = vpack.c.b16 %v4592, %v4588
        %v4797 = vpack.c.b16 %v4593, %v4589
        %v4798 = vpack.c.b16 %v4594, %v4590
        %v4799 = vpack.c.b16 %v4595, %v4591
        %v4800 = vpack.c.b16 %v4600, %v4596
        %v4801 = vpack.c.b16 %v4601, %v4597
        %v4802 = vpack.c.b16 %v4602, %v4598
        %v4803 = vpack.c.b16 %v4603, %v4599
        %v4804 = vpack.c.b16 %v4608, %v4604
        %v4805 = vpack.c.b16 %v4609, %v4605
        %v4806 = vpack.c.b16 %v4610, %v4606
        %v4807 = vpack.c.b16 %v4611, %v4607
        %v4808 = vpack.c.b16 %v4616, %v4612
        %v4809 = vpack.c.b16 %v4617, %v4613
        %v4810 = vpack.c.b16 %v4618, %v4614
        %v4811 = vpack.c.b16 %v4619, %v4615
        %v4812 = vpack.c.b16 %v4624, %v4620
        %v4813 = vpack.c.b16 %v4625, %v4621
        %v4814 = vpack.c.b16 %v4626, %v4622
        %v4815 = vpack.c.b16 %v4627, %v4623
        %v4816 = vpack.c.b16 %v4632, %v4628
        %v4817 = vpack.c.b16 %v4633, %v4629
        %v4818 = vpack.c.b16 %v4634, %v4630
        %v4819 = vpack.c.b16 %v4635, %v4631
        %v4820 = vpack.c.b16 %v4640, %v4636
        %v4821 = vpack.c.b16 %v4641, %v4637
        %v4822 = vpack.c.b16 %v4642, %v4638
        %v4823 = vpack.c.b16 %v4643, %v4639
        %v4824 = vpack.c.b16 %v4648, %v4644
        %v4825 = vpack.c.b16 %v4649, %v4645
        %v4826 = vpack.c.b16 %v4650, %v4646
        %v4827 = vpack.c.b16 %v4651, %v4647
        %v4828 = vpack.c.b16 %v4656, %v4652
        %v4829 = vpack.c.b16 %v4657, %v4653
        %v4830 = vpack.c.b16 %v4658, %v4654
        %v4831 = vpack.c.b16 %v4659, %v4655
        %v4832 = vpack.c.b16 %v4664, %v4660
        %v4833 = vpack.c.b16 %v4665, %v4661
        %v4834 = vpack.c.b16 %v4666, %v4662
        %v4835 = vpack.c.b16 %v4667, %v4663
        %v4836 = vpack.c.b16 %v4672, %v4668
        %v4837 = vpack.c.b16 %v4673, %v4669
        %v4838 = vpack.c.b16 %v4674, %v4670
        %v4839 = vpack.c.b16 %v4675, %v4671
        %v4840 = vpack.c.b16 %v4680, %v4676
        %v4841 = vpack.c.b16 %v4681, %v4677
        %v4842 = vpack.c.b16 %v4682, %v4678
        %v4843 = vpack.c.b16 %v4683, %v4679
        %v4844 = vpack.c.b16 %v4688, %v4684
        %v4845 = vpack.c.b16 %v4689, %v4685
        %v4846 = vpack.c.b16 %v4690, %v4686
        %v4847 = vpack.c.b16 %v4691, %v4687
        %v4848 = vpack.c.b16 %v4696, %v4692
        %v4849 = vpack.c.b16 %v4697, %v4693
        %v4850 = vpack.c.b16 %v4698, %v4694
        %v4851 = vpack.c.b16 %v4699, %v4695
        %v4852 = vpack.c.b16 %v4704, %v4700
        %v4853 = vpack.c.b16 %v4705, %v4701
        %v4854 = vpack.c.b16 %v4706, %v4702
        %v4855 = vpack.c.b16 %v4707, %v4703
        %v4856 = vpack.c.b16 %v4712, %v4708
        %v4857 = vpack.c.b16 %v4713, %v4709
        %v4858 = vpack.c.b16 %v4714, %v4710
        %v4859 = vpack.c.b16 %v4715, %v4711
        %v4860 = vpack.c.b16 %v4720, %v4716
        %v4861 = vpack.c.b16 %v4721, %v4717
        %v4862 = vpack.c.b16 %v4722, %v4718
        %v4863 = vpack.c.b16 %v4723, %v4719
        %v4864 = vpack.c.b16 %v4728, %v4724
        %v4865 = vpack.c.b16 %v4729, %v4725
        %v4866 = vpack.c.b16 %v4730, %v4726
        %v4867 = vpack.c.b16 %v4731, %v4727
        %v4868 = vpack.c.b16 %v4736, %v4732
        %v4869 = vpack.c.b16 %v4737, %v4733
        %v4870 = vpack.c.b16 %v4738, %v4734
        %v4871 = vpack.c.b16 %v4739, %v4735
        %v4872 = vpack.c.b16 %v4744, %v4740
        %v4873 = vpack.c.b16 %v4745, %v4741
        %v4874 = vpack.c.b16 %v4746, %v4742
        %v4875 = vpack.c.b16 %v4747, %v4743
        %5004 = vmatpush.bf16.msra.mxu0 %v4776
        %5005 = vmatpush.bf16.msra.mxu0 %v4772
        %5006 = vmatpush.bf16.msra.mxu0 %v4768
        %5007 = vmatpush.bf16.msra.mxu0 %v4764
        %5008 = vmatpush.bf16.msra.mxu0 %v4760
        %5009 = vmatpush.bf16.msra.mxu0 %v4756
        %5010 = vmatpush.bf16.msra.mxu0 %v4752
        %5011 = vmatpush.bf16.msra.mxu0 %v4748
        %5012 = vmatmul.bf16.gmra.mxu0 %v4092
        %v5013 = vpop.f32.mrf.mxu0
        %v5014 = vadd.f32 0.0, %v5013
        %v5015 = vpop.f32.mrf.mxu0
        %v5016 = vadd.f32 0.0, %v5015
        %5017 = vmatmul.bf16.gmra.mxu0 %v4096
        %v5018 = vpop.f32.mrf.mxu0
        %v5019 = vadd.f32 0.0, %v5018
        %v5020 = vpop.f32.mrf.mxu0
        %v5021 = vadd.f32 0.0, %v5020
        %5022 = vmatmul.bf16.gmra.mxu0 %v4100
        %v5023 = vpop.f32.mrf.mxu0
        %v5024 = vadd.f32 0.0, %v5023
        %v5025 = vpop.f32.mrf.mxu0
        %v5026 = vadd.f32 0.0, %v5025
        %5027 = vmatmul.bf16.gmra.mxu0 %v4104
        %v5028 = vpop.f32.mrf.mxu0
        %v5029 = vadd.f32 0.0, %v5028
        %v5030 = vpop.f32.mrf.mxu0
        %v5031 = vadd.f32 0.0, %v5030
        %5032 = vdwg.mxu0
        %5033 = vmatpush.bf16.msra.mxu0 %v4808
        %5034 = vmatpush.bf16.msra.mxu0 %v4804
        %5035 = vmatpush.bf16.msra.mxu0 %v4800
        %5036 = vmatpush.bf16.msra.mxu0 %v4796
        %5037 = vmatpush.bf16.msra.mxu0 %v4792
        %5038 = vmatpush.bf16.msra.mxu0 %v4788
        %5039 = vmatpush.bf16.msra.mxu0 %v4784
        %5040 = vmatpush.bf16.msra.mxu0 %v4780
        %5041 = vmatmul.bf16.gmra.mxu0 %v4093
        %v5042 = vpop.f32.mrf.mxu0
        %v5043 = vadd.f32 %v5014, %v5042
        %v5044 = vpop.f32.mrf.mxu0
        %v5045 = vadd.f32 %v5016, %v5044
        %5046 = vmatmul.bf16.gmra.mxu0 %v4097
        %v5047 = vpop.f32.mrf.mxu0
        %v5048 = vadd.f32 %v5019, %v5047
        %v5049 = vpop.f32.mrf.mxu0
        %v5050 = vadd.f32 %v5021, %v5049
        %5051 = vmatmul.bf16.gmra.mxu0 %v4101
        %v5052 = vpop.f32.mrf.mxu0
        %v5053 = vadd.f32 %v5024, %v5052
        %v5054 = vpop.f32.mrf.mxu0
        %v5055 = vadd.f32 %v5026, %v5054
        %5056 = vmatmul.bf16.gmra.mxu0 %v4105
        %v5057 = vpop.f32.mrf.mxu0
        %v5058 = vadd.f32 %v5029, %v5057
        %v5059 = vpop.f32.mrf.mxu0
        %v5060 = vadd.f32 %v5031, %v5059
        %5061 = vdwg.mxu0
        %5062 = vmatpush.bf16.msra.mxu0 %v4840
        %5063 = vmatpush.bf16.msra.mxu0 %v4836
        %5064 = vmatpush.bf16.msra.mxu0 %v4832
        %5065 = vmatpush.bf16.msra.mxu0 %v4828
        %5066 = vmatpush.bf16.msra.mxu0 %v4824
        %5067 = vmatpush.bf16.msra.mxu0 %v4820
        %5068 = vmatpush.bf16.msra.mxu0 %v4816
        %5069 = vmatpush.bf16.msra.mxu0 %v4812
        %5070 = vmatmul.bf16.gmra.mxu0 %v4094
        %v5071 = vpop.f32.mrf.mxu0
        %v5072 = vadd.f32 %v5043, %v5071
        %v5073 = vpop.f32.mrf.mxu0
        %v5074 = vadd.f32 %v5045, %v5073
        %5075 = vmatmul.bf16.gmra.mxu0 %v4098
        %v5076 = vpop.f32.mrf.mxu0
        %v5077 = vadd.f32 %v5048, %v5076
        %v5078 = vpop.f32.mrf.mxu0
        %v5079 = vadd.f32 %v5050, %v5078
        %5080 = vmatmul.bf16.gmra.mxu0 %v4102
        %v5081 = vpop.f32.mrf.mxu0
        %v5082 = vadd.f32 %v5053, %v5081
        %v5083 = vpop.f32.mrf.mxu0
        %v5084 = vadd.f32 %v5055, %v5083
        %5085 = vmatmul.bf16.gmra.mxu0 %v4106
        %v5086 = vpop.f32.mrf.mxu0
        %v5087 = vadd.f32 %v5058, %v5086
        %v5088 = vpop.f32.mrf.mxu0
        %v5089 = vadd.f32 %v5060, %v5088
        %5090 = vdwg.mxu0
        %5091 = vmatpush.bf16.msra.mxu0 %v4872
        %5092 = vmatpush.bf16.msra.mxu0 %v4868
        %5093 = vmatpush.bf16.msra.mxu0 %v4864
        %5094 = vmatpush.bf16.msra.mxu0 %v4860
        %5095 = vmatpush.bf16.msra.mxu0 %v4856
        %5096 = vmatpush.bf16.msra.mxu0 %v4852
        %5097 = vmatpush.bf16.msra.mxu0 %v4848
        %5098 = vmatpush.bf16.msra.mxu0 %v4844
        %5099 = vmatmul.bf16.gmra.mxu0 %v4095
        %v5100 = vpop.f32.mrf.mxu0
        %v5101 = vadd.f32 %v5072, %v5100
        %v5102 = vpop.f32.mrf.mxu0
        %v5103 = vadd.f32 %v5074, %v5102
        %5104 = vmatmul.bf16.gmra.mxu0 %v4099
        %v5105 = vpop.f32.mrf.mxu0
        %v5106 = vadd.f32 %v5077, %v5105
        %v5107 = vpop.f32.mrf.mxu0
        %v5108 = vadd.f32 %v5079, %v5107
        %5109 = vmatmul.bf16.gmra.mxu0 %v4103
        %v5110 = vpop.f32.mrf.mxu0
        %v5111 = vadd.f32 %v5082, %v5110
        %v5112 = vpop.f32.mrf.mxu0
        %v5113 = vadd.f32 %v5084, %v5112
        %5114 = vmatmul.bf16.gmra.mxu0 %v4107
        %v5115 = vpop.f32.mrf.mxu0
        %v5116 = vadd.f32 %v5087, %v5115
        %v5117 = vpop.f32.mrf.mxu0
        %v5118 = vadd.f32 %v5089, %v5117
        %5119 = vdwg.mxu0
        %5120 = vmatpush.bf16.msra.mxu0 %v4777
        %5121 = vmatpush.bf16.msra.mxu0 %v4773
        %5122 = vmatpush.bf16.msra.mxu0 %v4769
        %5123 = vmatpush.bf16.msra.mxu0 %v4765
        %5124 = vmatpush.bf16.msra.mxu0 %v4761
        %5125 = vmatpush.bf16.msra.mxu0 %v4757
        %5126 = vmatpush.bf16.msra.mxu0 %v4753
        %5127 = vmatpush.bf16.msra.mxu0 %v4749
        %5128 = vmatmul.bf16.gmra.mxu0 %v4092
        %v5129 = vpop.f32.mrf.mxu0
        %v5130 = vadd.f32 0.0, %v5129
        %v5131 = vpop.f32.mrf.mxu0
        %v5132 = vadd.f32 0.0, %v5131
        %5133 = vmatmul.bf16.gmra.mxu0 %v4096
        %v5134 = vpop.f32.mrf.mxu0
        %v5135 = vadd.f32 0.0, %v5134
        %v5136 = vpop.f32.mrf.mxu0
        %v5137 = vadd.f32 0.0, %v5136
        %5138 = vmatmul.bf16.gmra.mxu0 %v4100
        %v5139 = vpop.f32.mrf.mxu0
        %v5140 = vadd.f32 0.0, %v5139
        %v5141 = vpop.f32.mrf.mxu0
        %v5142 = vadd.f32 0.0, %v5141
        %5143 = vmatmul.bf16.gmra.mxu0 %v4104
        %v5144 = vpop.f32.mrf.mxu0
        %v5145 = vadd.f32 0.0, %v5144
        %v5146 = vpop.f32.mrf.mxu0
        %v5147 = vadd.f32 0.0, %v5146
        %5148 = vdwg.mxu0
        %5149 = vmatpush.bf16.msra.mxu0 %v4809
        %5150 = vmatpush.bf16.msra.mxu0 %v4805
        %5151 = vmatpush.bf16.msra.mxu0 %v4801
        %5152 = vmatpush.bf16.msra.mxu0 %v4797
        %5153 = vmatpush.bf16.msra.mxu0 %v4793
        %5154 = vmatpush.bf16.msra.mxu0 %v4789
        %5155 = vmatpush.bf16.msra.mxu0 %v4785
        %5156 = vmatpush.bf16.msra.mxu0 %v4781
        %5157 = vmatmul.bf16.gmra.mxu0 %v4093
        %v5158 = vpop.f32.mrf.mxu0
        %v5159 = vadd.f32 %v5130, %v5158
        %v5160 = vpop.f32.mrf.mxu0
        %v5161 = vadd.f32 %v5132, %v5160
        %5162 = vmatmul.bf16.gmra.mxu0 %v4097
        %v5163 = vpop.f32.mrf.mxu0
        %v5164 = vadd.f32 %v5135, %v5163
        %v5165 = vpop.f32.mrf.mxu0
        %v5166 = vadd.f32 %v5137, %v5165
        %5167 = vmatmul.bf16.gmra.mxu0 %v4101
        %v5168 = vpop.f32.mrf.mxu0
        %v5169 = vadd.f32 %v5140, %v5168
        %v5170 = vpop.f32.mrf.mxu0
        %v5171 = vadd.f32 %v5142, %v5170
        %5172 = vmatmul.bf16.gmra.mxu0 %v4105
        %v5173 = vpop.f32.mrf.mxu0
        %v5174 = vadd.f32 %v5145, %v5173
        %v5175 = vpop.f32.mrf.mxu0
        %v5176 = vadd.f32 %v5147, %v5175
        %5177 = vdwg.mxu0
        %5178 = vmatpush.bf16.msra.mxu0 %v4841
        %5179 = vmatpush.bf16.msra.mxu0 %v4837
        %5180 = vmatpush.bf16.msra.mxu0 %v4833
        %5181 = vmatpush.bf16.msra.mxu0 %v4829
        %5182 = vmatpush.bf16.msra.mxu0 %v4825
        %5183 = vmatpush.bf16.msra.mxu0 %v4821
        %5184 = vmatpush.bf16.msra.mxu0 %v4817
        %5185 = vmatpush.bf16.msra.mxu0 %v4813
        %5186 = vmatmul.bf16.gmra.mxu0 %v4094
        %v5187 = vpop.f32.mrf.mxu0
        %v5188 = vadd.f32 %v5159, %v5187
        %v5189 = vpop.f32.mrf.mxu0
        %v5190 = vadd.f32 %v5161, %v5189
        %5191 = vmatmul.bf16.gmra.mxu0 %v4098
        %v5192 = vpop.f32.mrf.mxu0
        %v5193 = vadd.f32 %v5164, %v5192
        %v5194 = vpop.f32.mrf.mxu0
        %v5195 = vadd.f32 %v5166, %v5194
        %5196 = vmatmul.bf16.gmra.mxu0 %v4102
        %v5197 = vpop.f32.mrf.mxu0
        %v5198 = vadd.f32 %v5169, %v5197
        %v5199 = vpop.f32.mrf.mxu0
        %v5200 = vadd.f32 %v5171, %v5199
        %5201 = vmatmul.bf16.gmra.mxu0 %v4106
        %v5202 = vpop.f32.mrf.mxu0
        %v5203 = vadd.f32 %v5174, %v5202
        %v5204 = vpop.f32.mrf.mxu0
        %v5205 = vadd.f32 %v5176, %v5204
        %5206 = vdwg.mxu0
        %5207 = vmatpush.bf16.msra.mxu0 %v4873
        %5208 = vmatpush.bf16.msra.mxu0 %v4869
        %5209 = vmatpush.bf16.msra.mxu0 %v4865
        %5210 = vmatpush.bf16.msra.mxu0 %v4861
        %5211 = vmatpush.bf16.msra.mxu0 %v4857
        %5212 = vmatpush.bf16.msra.mxu0 %v4853
        %5213 = vmatpush.bf16.msra.mxu0 %v4849
        %5214 = vmatpush.bf16.msra.mxu0 %v4845
        %5215 = vmatmul.bf16.gmra.mxu0 %v4095
        %v5216 = vpop.f32.mrf.mxu0
        %v5217 = vadd.f32 %v5188, %v5216
        %v5218 = vpop.f32.mrf.mxu0
        %v5219 = vadd.f32 %v5190, %v5218
        %5220 = vmatmul.bf16.gmra.mxu0 %v4099
        %v5221 = vpop.f32.mrf.mxu0
        %v5222 = vadd.f32 %v5193, %v5221
        %v5223 = vpop.f32.mrf.mxu0
        %v5224 = vadd.f32 %v5195, %v5223
        %5225 = vmatmul.bf16.gmra.mxu0 %v4103
        %v5226 = vpop.f32.mrf.mxu0
        %v5227 = vadd.f32 %v5198, %v5226
        %v5228 = vpop.f32.mrf.mxu0
        %v5229 = vadd.f32 %v5200, %v5228
        %5230 = vmatmul.bf16.gmra.mxu0 %v4107
        %v5231 = vpop.f32.mrf.mxu0
        %v5232 = vadd.f32 %v5203, %v5231
        %v5233 = vpop.f32.mrf.mxu0
        %v5234 = vadd.f32 %v5205, %v5233
        %5235 = vdwg.mxu0
        %5236 = vmatpush.bf16.msra.mxu0 %v4778
        %5237 = vmatpush.bf16.msra.mxu0 %v4774
        %5238 = vmatpush.bf16.msra.mxu0 %v4770
        %5239 = vmatpush.bf16.msra.mxu0 %v4766
        %5240 = vmatpush.bf16.msra.mxu0 %v4762
        %5241 = vmatpush.bf16.msra.mxu0 %v4758
        %5242 = vmatpush.bf16.msra.mxu0 %v4754
        %5243 = vmatpush.bf16.msra.mxu0 %v4750
        %5244 = vmatmul.bf16.gmra.mxu0 %v4092
        %v5245 = vpop.f32.mrf.mxu0
        %v5246 = vadd.f32 0.0, %v5245
        %v5247 = vpop.f32.mrf.mxu0
        %v5248 = vadd.f32 0.0, %v5247
        %5249 = vmatmul.bf16.gmra.mxu0 %v4096
        %v5250 = vpop.f32.mrf.mxu0
        %v5251 = vadd.f32 0.0, %v5250
        %v5252 = vpop.f32.mrf.mxu0
        %v5253 = vadd.f32 0.0, %v5252
        %5254 = vmatmul.bf16.gmra.mxu0 %v4100
        %v5255 = vpop.f32.mrf.mxu0
        %v5256 = vadd.f32 0.0, %v5255
        %v5257 = vpop.f32.mrf.mxu0
        %v5258 = vadd.f32 0.0, %v5257
        %5259 = vmatmul.bf16.gmra.mxu0 %v4104
        %v5260 = vpop.f32.mrf.mxu0
        %v5261 = vadd.f32 0.0, %v5260
        %v5262 = vpop.f32.mrf.mxu0
        %v5263 = vadd.f32 0.0, %v5262
        %5264 = vdwg.mxu0
        %5265 = vmatpush.bf16.msra.mxu0 %v4810
        %5266 = vmatpush.bf16.msra.mxu0 %v4806
        %5267 = vmatpush.bf16.msra.mxu0 %v4802
        %5268 = vmatpush.bf16.msra.mxu0 %v4798
        %5269 = vmatpush.bf16.msra.mxu0 %v4794
        %5270 = vmatpush.bf16.msra.mxu0 %v4790
        %5271 = vmatpush.bf16.msra.mxu0 %v4786
        %5272 = vmatpush.bf16.msra.mxu0 %v4782
        %5273 = vmatmul.bf16.gmra.mxu0 %v4093
        %v5274 = vpop.f32.mrf.mxu0
        %v5275 = vadd.f32 %v5246, %v5274
        %v5276 = vpop.f32.mrf.mxu0
        %v5277 = vadd.f32 %v5248, %v5276
        %5278 = vmatmul.bf16.gmra.mxu0 %v4097
        %v5279 = vpop.f32.mrf.mxu0
        %v5280 = vadd.f32 %v5251, %v5279
        %v5281 = vpop.f32.mrf.mxu0
        %v5282 = vadd.f32 %v5253, %v5281
        %5283 = vmatmul.bf16.gmra.mxu0 %v4101
        %v5284 = vpop.f32.mrf.mxu0
        %v5285 = vadd.f32 %v5256, %v5284
        %v5286 = vpop.f32.mrf.mxu0
        %v5287 = vadd.f32 %v5258, %v5286
        %5288 = vmatmul.bf16.gmra.mxu0 %v4105
        %v5289 = vpop.f32.mrf.mxu0
        %v5290 = vadd.f32 %v5261, %v5289
        %v5291 = vpop.f32.mrf.mxu0
        %v5292 = vadd.f32 %v5263, %v5291
        %5293 = vdwg.mxu0
        %5294 = vmatpush.bf16.msra.mxu0 %v4842
        %5295 = vmatpush.bf16.msra.mxu0 %v4838
        %5296 = vmatpush.bf16.msra.mxu0 %v4834
        %5297 = vmatpush.bf16.msra.mxu0 %v4830
        %5298 = vmatpush.bf16.msra.mxu0 %v4826
        %5299 = vmatpush.bf16.msra.mxu0 %v4822
        %5300 = vmatpush.bf16.msra.mxu0 %v4818
        %5301 = vmatpush.bf16.msra.mxu0 %v4814
        %5302 = vmatmul.bf16.gmra.mxu0 %v4094
        %v5303 = vpop.f32.mrf.mxu0
        %v5304 = vadd.f32 %v5275, %v5303
        %v5305 = vpop.f32.mrf.mxu0
        %v5306 = vadd.f32 %v5277, %v5305
        %5307 = vmatmul.bf16.gmra.mxu0 %v4098
        %v5308 = vpop.f32.mrf.mxu0
        %v5309 = vadd.f32 %v5280, %v5308
        %v5310 = vpop.f32.mrf.mxu0
        %v5311 = vadd.f32 %v5282, %v5310
        %5312 = vmatmul.bf16.gmra.mxu0 %v4102
        %v5313 = vpop.f32.mrf.mxu0
        %v5314 = vadd.f32 %v5285, %v5313
        %v5315 = vpop.f32.mrf.mxu0
        %v5316 = vadd.f32 %v5287, %v5315
        %5317 = vmatmul.bf16.gmra.mxu0 %v4106
        %v5318 = vpop.f32.mrf.mxu0
        %v5319 = vadd.f32 %v5290, %v5318
        %v5320 = vpop.f32.mrf.mxu0
        %v5321 = vadd.f32 %v5292, %v5320
        %5322 = vdwg.mxu0
        %5323 = vmatpush.bf16.msra.mxu0 %v4874
        %5324 = vmatpush.bf16.msra.mxu0 %v4870
        %5325 = vmatpush.bf16.msra.mxu0 %v4866
        %5326 = vmatpush.bf16.msra.mxu0 %v4862
        %5327 = vmatpush.bf16.msra.mxu0 %v4858
        %5328 = vmatpush.bf16.msra.mxu0 %v4854
        %5329 = vmatpush.bf16.msra.mxu0 %v4850
        %5330 = vmatpush.bf16.msra.mxu0 %v4846
        %5331 = vmatmul.bf16.gmra.mxu0 %v4095
        %v5332 = vpop.f32.mrf.mxu0
        %v5333 = vadd.f32 %v5304, %v5332
        %v5334 = vpop.f32.mrf.mxu0
        %v5335 = vadd.f32 %v5306, %v5334
        %5336 = vmatmul.bf16.gmra.mxu0 %v4099
        %v5337 = vpop.f32.mrf.mxu0
        %v5338 = vadd.f32 %v5309, %v5337
        %v5339 = vpop.f32.mrf.mxu0
        %v5340 = vadd.f32 %v5311, %v5339
        %5341 = vmatmul.bf16.gmra.mxu0 %v4103
        %v5342 = vpop.f32.mrf.mxu0
        %v5343 = vadd.f32 %v5314, %v5342
        %v5344 = vpop.f32.mrf.mxu0
        %v5345 = vadd.f32 %v5316, %v5344
        %5346 = vmatmul.bf16.gmra.mxu0 %v4107
        %v5347 = vpop.f32.mrf.mxu0
        %v5348 = vadd.f32 %v5319, %v5347
        %v5349 = vpop.f32.mrf.mxu0
        %v5350 = vadd.f32 %v5321, %v5349
        %5351 = vdwg.mxu0
        %5352 = vmatpush.bf16.msra.mxu0 %v4779
        %5353 = vmatpush.bf16.msra.mxu0 %v4775
        %5354 = vmatpush.bf16.msra.mxu0 %v4771
        %5355 = vmatpush.bf16.msra.mxu0 %v4767
        %5356 = vmatpush.bf16.msra.mxu0 %v4763
        %5357 = vmatpush.bf16.msra.mxu0 %v4759
        %5358 = vmatpush.bf16.msra.mxu0 %v4755
        %5359 = vmatpush.bf16.msra.mxu0 %v4751
        %5360 = vmatmul.bf16.gmra.mxu0 %v4092
        %v5361 = vpop.f32.mrf.mxu0
        %v5362 = vadd.f32 0.0, %v5361
        %v5363 = vpop.f32.mrf.mxu0
        %v5364 = vadd.f32 0.0, %v5363
        %5365 = vmatmul.bf16.gmra.mxu0 %v4096
        %v5366 = vpop.f32.mrf.mxu0
        %v5367 = vadd.f32 0.0, %v5366
        %v5368 = vpop.f32.mrf.mxu0
        %v5369 = vadd.f32 0.0, %v5368
        %5370 = vmatmul.bf16.gmra.mxu0 %v4100
        %v5371 = vpop.f32.mrf.mxu0
        %v5372 = vadd.f32 0.0, %v5371
        %v5373 = vpop.f32.mrf.mxu0
        %v5374 = vadd.f32 0.0, %v5373
        %5375 = vmatmul.bf16.gmra.mxu0 %v4104
        %v5376 = vpop.f32.mrf.mxu0
        %v5377 = vadd.f32 0.0, %v5376
        %v5378 = vpop.f32.mrf.mxu0
        %v5379 = vadd.f32 0.0, %v5378
        %5380 = vdwg.mxu0
        %5381 = vmatpush.bf16.msra.mxu0 %v4811
        %5382 = vmatpush.bf16.msra.mxu0 %v4807
        %5383 = vmatpush.bf16.msra.mxu0 %v4803
        %5384 = vmatpush.bf16.msra.mxu0 %v4799
        %5385 = vmatpush.bf16.msra.mxu0 %v4795
        %5386 = vmatpush.bf16.msra.mxu0 %v4791
        %5387 = vmatpush.bf16.msra.mxu0 %v4787
        %5388 = vmatpush.bf16.msra.mxu0 %v4783
        %5389 = vmatmul.bf16.gmra.mxu0 %v4093
        %v5390 = vpop.f32.mrf.mxu0
        %v5391 = vadd.f32 %v5362, %v5390
        %v5392 = vpop.f32.mrf.mxu0
        %v5393 = vadd.f32 %v5364, %v5392
        %5394 = vmatmul.bf16.gmra.mxu0 %v4097
        %v5395 = vpop.f32.mrf.mxu0
        %v5396 = vadd.f32 %v5367, %v5395
        %v5397 = vpop.f32.mrf.mxu0
        %v5398 = vadd.f32 %v5369, %v5397
        %5399 = vmatmul.bf16.gmra.mxu0 %v4101
        %v5400 = vpop.f32.mrf.mxu0
        %v5401 = vadd.f32 %v5372, %v5400
        %v5402 = vpop.f32.mrf.mxu0
        %v5403 = vadd.f32 %v5374, %v5402
        %5404 = vmatmul.bf16.gmra.mxu0 %v4105
        %v5405 = vpop.f32.mrf.mxu0
        %v5406 = vadd.f32 %v5377, %v5405
        %v5407 = vpop.f32.mrf.mxu0
        %v5408 = vadd.f32 %v5379, %v5407
        %5409 = vdwg.mxu0
        %5410 = vmatpush.bf16.msra.mxu0 %v4843
        %5411 = vmatpush.bf16.msra.mxu0 %v4839
        %5412 = vmatpush.bf16.msra.mxu0 %v4835
        %5413 = vmatpush.bf16.msra.mxu0 %v4831
        %5414 = vmatpush.bf16.msra.mxu0 %v4827
        %5415 = vmatpush.bf16.msra.mxu0 %v4823
        %5416 = vmatpush.bf16.msra.mxu0 %v4819
        %5417 = vmatpush.bf16.msra.mxu0 %v4815
        %5418 = vmatmul.bf16.gmra.mxu0 %v4094
        %v5419 = vpop.f32.mrf.mxu0
        %v5420 = vadd.f32 %v5391, %v5419
        %v5421 = vpop.f32.mrf.mxu0
        %v5422 = vadd.f32 %v5393, %v5421
        %5423 = vmatmul.bf16.gmra.mxu0 %v4098
        %v5424 = vpop.f32.mrf.mxu0
        %v5425 = vadd.f32 %v5396, %v5424
        %v5426 = vpop.f32.mrf.mxu0
        %v5427 = vadd.f32 %v5398, %v5426
        %5428 = vmatmul.bf16.gmra.mxu0 %v4102
        %v5429 = vpop.f32.mrf.mxu0
        %v5430 = vadd.f32 %v5401, %v5429
        %v5431 = vpop.f32.mrf.mxu0
        %v5432 = vadd.f32 %v5403, %v5431
        %5433 = vmatmul.bf16.gmra.mxu0 %v4106
        %v5434 = vpop.f32.mrf.mxu0
        %v5435 = vadd.f32 %v5406, %v5434
        %v5436 = vpop.f32.mrf.mxu0
        %v5437 = vadd.f32 %v5408, %v5436
        %5438 = vdwg.mxu0
        %5439 = vmatpush.bf16.msra.mxu0 %v4875
        %5440 = vmatpush.bf16.msra.mxu0 %v4871
        %5441 = vmatpush.bf16.msra.mxu0 %v4867
        %5442 = vmatpush.bf16.msra.mxu0 %v4863
        %5443 = vmatpush.bf16.msra.mxu0 %v4859
        %5444 = vmatpush.bf16.msra.mxu0 %v4855
        %5445 = vmatpush.bf16.msra.mxu0 %v4851
        %5446 = vmatpush.bf16.msra.mxu0 %v4847
        %5447 = vmatmul.bf16.gmra.mxu0 %v4095
        %v5448 = vpop.f32.mrf.mxu0
        %v5449 = vadd.f32 %v5420, %v5448
        %v5450 = vpop.f32.mrf.mxu0
        %v5451 = vadd.f32 %v5422, %v5450
        %5452 = vmatmul.bf16.gmra.mxu0 %v4099
        %v5453 = vpop.f32.mrf.mxu0
        %v5454 = vadd.f32 %v5425, %v5453
        %v5455 = vpop.f32.mrf.mxu0
        %v5456 = vadd.f32 %v5427, %v5455
        %5457 = vmatmul.bf16.gmra.mxu0 %v4103
        %v5458 = vpop.f32.mrf.mxu0
        %v5459 = vadd.f32 %v5430, %v5458
        %v5460 = vpop.f32.mrf.mxu0
        %v5461 = vadd.f32 %v5432, %v5460
        %5462 = vmatmul.bf16.gmra.mxu0 %v4107
        %v5463 = vpop.f32.mrf.mxu0
        %v5464 = vadd.f32 %v5435, %v5463
        %v5465 = vpop.f32.mrf.mxu0
        %v5466 = vadd.f32 %v5437, %v5465
        %5467 = vdwg.mxu0
        %v5596 = vunpack.c.l.b16 %v4108
        %v5597 = vunpack.c.h.b16 %v4108
        %v5598 = vunpack.c.l.b16 %v4109
        %v5599 = vunpack.c.h.b16 %v4109
        %v5600 = vunpack.c.l.b16 %v4110
        %v5601 = vunpack.c.h.b16 %v4110
        %v5602 = vunpack.c.l.b16 %v4111
        %v5603 = vunpack.c.h.b16 %v4111
        %v5604 = vunpack.c.l.b16 %v4112
        %v5605 = vunpack.c.h.b16 %v4112
        %v5606 = vunpack.c.l.b16 %v4113
        %v5607 = vunpack.c.h.b16 %v4113
        %v5608 = vunpack.c.l.b16 %v4114
        %v5609 = vunpack.c.h.b16 %v4114
        %v5610 = vunpack.c.l.b16 %v4115
        %v5611 = vunpack.c.h.b16 %v4115
        %v5612 = vunpack.c.l.b16 %v4116
        %v5613 = vunpack.c.h.b16 %v4116
        %v5614 = vunpack.c.l.b16 %v4117
        %v5615 = vunpack.c.h.b16 %v4117
        %v5616 = vunpack.c.l.b16 %v4118
        %v5617 = vunpack.c.h.b16 %v4118
        %v5618 = vunpack.c.l.b16 %v4119
        %v5619 = vunpack.c.h.b16 %v4119
        %v5620 = vunpack.c.l.b16 %v4120
        %v5621 = vunpack.c.h.b16 %v4120
        %v5622 = vunpack.c.l.b16 %v4121
        %v5623 = vunpack.c.h.b16 %v4121
        %v5624 = vunpack.c.l.b16 %v4122
        %v5625 = vunpack.c.h.b16 %v4122
        %v5626 = vunpack.c.l.b16 %v4123
        %v5627 = vunpack.c.h.b16 %v4123
        %v5628 = vunpack.c.l.b16 %v4124
        %v5629 = vunpack.c.h.b16 %v4124
        %v5630 = vunpack.c.l.b16 %v4125
        %v5631 = vunpack.c.h.b16 %v4125
        %v5632 = vunpack.c.l.b16 %v4126
        %v5633 = vunpack.c.h.b16 %v4126
        %v5634 = vunpack.c.l.b16 %v4127
        %v5635 = vunpack.c.h.b16 %v4127
        %v5636 = vunpack.c.l.b16 %v4128
        %v5637 = vunpack.c.h.b16 %v4128
        %v5638 = vunpack.c.l.b16 %v4129
        %v5639 = vunpack.c.h.b16 %v4129
        %v5640 = vunpack.c.l.b16 %v4130
        %v5641 = vunpack.c.h.b16 %v4130
        %v5642 = vunpack.c.l.b16 %v4131
        %v5643 = vunpack.c.h.b16 %v4131
        %v5644 = vunpack.c.l.b16 %v4132
        %v5645 = vunpack.c.h.b16 %v4132
        %v5646 = vunpack.c.l.b16 %v4133
        %v5647 = vunpack.c.h.b16 %v4133
        %v5648 = vunpack.c.l.b16 %v4134
        %v5649 = vunpack.c.h.b16 %v4134
        %v5650 = vunpack.c.l.b16 %v4135
        %v5651 = vunpack.c.h.b16 %v4135
        %v5652 = vunpack.c.l.b16 %v4136
        %v5653 = vunpack.c.h.b16 %v4136
        %v5654 = vunpack.c.l.b16 %v4137
        %v5655 = vunpack.c.h.b16 %v4137
        %v5656 = vunpack.c.l.b16 %v4138
        %v5657 = vunpack.c.h.b16 %v4138
        %v5658 = vunpack.c.l.b16 %v4139
        %v5659 = vunpack.c.h.b16 %v4139
        %v5660 = vunpack.c.l.b16 %v4140
        %v5661 = vunpack.c.h.b16 %v4140
        %v5662 = vunpack.c.l.b16 %v4141
        %v5663 = vunpack.c.h.b16 %v4141
        %v5664 = vunpack.c.l.b16 %v4142
        %v5665 = vunpack.c.h.b16 %v4142
        %v5666 = vunpack.c.l.b16 %v4143
        %v5667 = vunpack.c.h.b16 %v4143
        %v5668 = vunpack.c.l.b16 %v4144
        %v5669 = vunpack.c.h.b16 %v4144
        %v5670 = vunpack.c.l.b16 %v4145
        %v5671 = vunpack.c.h.b16 %v4145
        %v5672 = vunpack.c.l.b16 %v4146
        %v5673 = vunpack.c.h.b16 %v4146
        %v5674 = vunpack.c.l.b16 %v4147
        %v5675 = vunpack.c.h.b16 %v4147
        %v5676 = vunpack.c.l.b16 %v4148
        %v5677 = vunpack.c.h.b16 %v4148
        %v5678 = vunpack.c.l.b16 %v4149
        %v5679 = vunpack.c.h.b16 %v4149
        %v5680 = vunpack.c.l.b16 %v4150
        %v5681 = vunpack.c.h.b16 %v4150
        %v5682 = vunpack.c.l.b16 %v4151
        %v5683 = vunpack.c.h.b16 %v4151
        %v5684 = vunpack.c.l.b16 %v4152
        %v5685 = vunpack.c.h.b16 %v4152
        %v5686 = vunpack.c.l.b16 %v4153
        %v5687 = vunpack.c.h.b16 %v4153
        %v5688 = vunpack.c.l.b16 %v4154
        %v5689 = vunpack.c.h.b16 %v4154
        %v5690 = vunpack.c.l.b16 %v4155
        %v5691 = vunpack.c.h.b16 %v4155
        %v5692 = vunpack.c.l.b16 %v4156
        %v5693 = vunpack.c.h.b16 %v4156
        %v5694 = vunpack.c.l.b16 %v4157
        %v5695 = vunpack.c.h.b16 %v4157
        %v5696 = vunpack.c.l.b16 %v4158
        %v5697 = vunpack.c.h.b16 %v4158
        %v5698 = vunpack.c.l.b16 %v4159
        %v5699 = vunpack.c.h.b16 %v4159
        %v5700 = vunpack.c.l.b16 %v4160
        %v5701 = vunpack.c.h.b16 %v4160
        %v5702 = vunpack.c.l.b16 %v4161
        %v5703 = vunpack.c.h.b16 %v4161
        %v5704 = vunpack.c.l.b16 %v4162
        %v5705 = vunpack.c.h.b16 %v4162
        %v5706 = vunpack.c.l.b16 %v4163
        %v5707 = vunpack.c.h.b16 %v4163
        %v5708 = vunpack.c.l.b16 %v4164
        %v5709 = vunpack.c.h.b16 %v4164
        %v5710 = vunpack.c.l.b16 %v4165
        %v5711 = vunpack.c.h.b16 %v4165
        %v5712 = vunpack.c.l.b16 %v4166
        %v5713 = vunpack.c.h.b16 %v4166
        %v5714 = vunpack.c.l.b16 %v4167
        %v5715 = vunpack.c.h.b16 %v4167
        %v5716 = vunpack.c.l.b16 %v4168
        %v5717 = vunpack.c.h.b16 %v4168
        %v5718 = vunpack.c.l.b16 %v4169
        %v5719 = vunpack.c.h.b16 %v4169
        %v5720 = vunpack.c.l.b16 %v4170
        %v5721 = vunpack.c.h.b16 %v4170
        %v5722 = vunpack.c.l.b16 %v4171
        %v5723 = vunpack.c.h.b16 %v4171
        %v5724 = vunpack.c.l.b16 %v4172
        %v5725 = vunpack.c.h.b16 %v4172
        %v5726 = vunpack.c.l.b16 %v4173
        %v5727 = vunpack.c.h.b16 %v4173
        %v5728 = vunpack.c.l.b16 %v4174
        %v5729 = vunpack.c.h.b16 %v4174
        %v5730 = vunpack.c.l.b16 %v4175
        %v5731 = vunpack.c.h.b16 %v4175
        %v5732 = vunpack.c.l.b16 %v4176
        %v5733 = vunpack.c.h.b16 %v4176
        %v5734 = vunpack.c.l.b16 %v4177
        %v5735 = vunpack.c.h.b16 %v4177
        %v5736 = vunpack.c.l.b16 %v4178
        %v5737 = vunpack.c.h.b16 %v4178
        %v5738 = vunpack.c.l.b16 %v4179
        %v5739 = vunpack.c.h.b16 %v4179
        %v5740 = vunpack.c.l.b16 %v4180
        %v5741 = vunpack.c.h.b16 %v4180
        %v5742 = vunpack.c.l.b16 %v4181
        %v5743 = vunpack.c.h.b16 %v4181
        %v5744 = vunpack.c.l.b16 %v4182
        %v5745 = vunpack.c.h.b16 %v4182
        %v5746 = vunpack.c.l.b16 %v4183
        %v5747 = vunpack.c.h.b16 %v4183
        %v5748 = vunpack.c.l.b16 %v4184
        %v5749 = vunpack.c.h.b16 %v4184
        %v5750 = vunpack.c.l.b16 %v4185
        %v5751 = vunpack.c.h.b16 %v4185
        %v5752 = vunpack.c.l.b16 %v4186
        %v5753 = vunpack.c.h.b16 %v4186
        %v5754 = vunpack.c.l.b16 %v4187
        %v5755 = vunpack.c.h.b16 %v4187
        %v5756 = vunpack.c.l.b16 %v4188
        %v5757 = vunpack.c.h.b16 %v4188
        %v5758 = vunpack.c.l.b16 %v4189
        %v5759 = vunpack.c.h.b16 %v4189
        %v5760 = vunpack.c.l.b16 %v4190
        %v5761 = vunpack.c.h.b16 %v4190
        %v5762 = vunpack.c.l.b16 %v4191
        %v5763 = vunpack.c.h.b16 %v4191
        %v5764 = vunpack.c.l.b16 %v4192
        %v5765 = vunpack.c.h.b16 %v4192
        %v5766 = vunpack.c.l.b16 %v4193
        %v5767 = vunpack.c.h.b16 %v4193
        %v5768 = vunpack.c.l.b16 %v4194
        %v5769 = vunpack.c.h.b16 %v4194
        %v5770 = vunpack.c.l.b16 %v4195
        %v5771 = vunpack.c.h.b16 %v4195
        %v5772 = vunpack.c.l.b16 %v4196
        %v5773 = vunpack.c.h.b16 %v4196
        %v5774 = vunpack.c.l.b16 %v4197
        %v5775 = vunpack.c.h.b16 %v4197
        %v5776 = vunpack.c.l.b16 %v4198
        %v5777 = vunpack.c.h.b16 %v4198
        %v5778 = vunpack.c.l.b16 %v4199
        %v5779 = vunpack.c.h.b16 %v4199
        %v5780 = vunpack.c.l.b16 %v4200
        %v5781 = vunpack.c.h.b16 %v4200
        %v5782 = vunpack.c.l.b16 %v4201
        %v5783 = vunpack.c.h.b16 %v4201
        %v5784 = vunpack.c.l.b16 %v4202
        %v5785 = vunpack.c.h.b16 %v4202
        %v5786 = vunpack.c.l.b16 %v4203
        %v5787 = vunpack.c.h.b16 %v4203
        %v5788 = vunpack.c.l.b16 %v4204
        %v5789 = vunpack.c.h.b16 %v4204
        %v5790 = vunpack.c.l.b16 %v4205
        %v5791 = vunpack.c.h.b16 %v4205
        %v5792 = vunpack.c.l.b16 %v4206
        %v5793 = vunpack.c.h.b16 %v4206
        %v5794 = vunpack.c.l.b16 %v4207
        %v5795 = vunpack.c.h.b16 %v4207
        %v5796 = vunpack.c.l.b16 %v4208
        %v5797 = vunpack.c.h.b16 %v4208
        %v5798 = vunpack.c.l.b16 %v4209
        %v5799 = vunpack.c.h.b16 %v4209
        %v5800 = vunpack.c.l.b16 %v4210
        %v5801 = vunpack.c.h.b16 %v4210
        %v5802 = vunpack.c.l.b16 %v4211
        %v5803 = vunpack.c.h.b16 %v4211
        %v5804 = vunpack.c.l.b16 %v4212
        %v5805 = vunpack.c.h.b16 %v4212
        %v5806 = vunpack.c.l.b16 %v4213
        %v5807 = vunpack.c.h.b16 %v4213
        %v5808 = vunpack.c.l.b16 %v4214
        %v5809 = vunpack.c.h.b16 %v4214
        %v5810 = vunpack.c.l.b16 %v4215
        %v5811 = vunpack.c.h.b16 %v4215
        %v5812 = vunpack.c.l.b16 %v4216
        %v5813 = vunpack.c.h.b16 %v4216
        %v5814 = vunpack.c.l.b16 %v4217
        %v5815 = vunpack.c.h.b16 %v4217
        %v5816 = vunpack.c.l.b16 %v4218
        %v5817 = vunpack.c.h.b16 %v4218
        %v5818 = vunpack.c.l.b16 %v4219
        %v5819 = vunpack.c.h.b16 %v4219
        %v5820 = vunpack.c.l.b16 %v4220
        %v5821 = vunpack.c.h.b16 %v4220
        %v5822 = vunpack.c.l.b16 %v4221
        %v5823 = vunpack.c.h.b16 %v4221
        %v5824 = vunpack.c.l.b16 %v4222
        %v5825 = vunpack.c.h.b16 %v4222
        %v5826 = vunpack.c.l.b16 %v4223
        %v5827 = vunpack.c.h.b16 %v4223
        %v5828 = vunpack.c.l.b16 %v4224
        %v5829 = vunpack.c.h.b16 %v4224
        %v5830 = vunpack.c.l.b16 %v4225
        %v5831 = vunpack.c.h.b16 %v4225
        %v5832 = vunpack.c.l.b16 %v4226
        %v5833 = vunpack.c.h.b16 %v4226
        %v5834 = vunpack.c.l.b16 %v4227
        %v5835 = vunpack.c.h.b16 %v4227
        %v5836 = vunpack.c.l.b16 %v4228
        %v5837 = vunpack.c.h.b16 %v4228
        %v5838 = vunpack.c.l.b16 %v4229
        %v5839 = vunpack.c.h.b16 %v4229
        %v5840 = vunpack.c.l.b16 %v4230
        %v5841 = vunpack.c.h.b16 %v4230
        %v5842 = vunpack.c.l.b16 %v4231
        %v5843 = vunpack.c.h.b16 %v4231
        %v5844 = vunpack.c.l.b16 %v4232
        %v5845 = vunpack.c.h.b16 %v4232
        %v5846 = vunpack.c.l.b16 %v4233
        %v5847 = vunpack.c.h.b16 %v4233
        %v5848 = vunpack.c.l.b16 %v4234
        %v5849 = vunpack.c.h.b16 %v4234
        %v5850 = vunpack.c.l.b16 %v4235
        %v5851 = vunpack.c.h.b16 %v4235
        %v5852 = vpack.c.b16 %v5600, %v5596
        %v5853 = vpack.c.b16 %v5601, %v5597
        %v5854 = vpack.c.b16 %v5602, %v5598
        %v5855 = vpack.c.b16 %v5603, %v5599
        %v5856 = vpack.c.b16 %v5608, %v5604
        %v5857 = vpack.c.b16 %v5609, %v5605
        %v5858 = vpack.c.b16 %v5610, %v5606
        %v5859 = vpack.c.b16 %v5611, %v5607
        %v5860 = vpack.c.b16 %v5616, %v5612
        %v5861 = vpack.c.b16 %v5617, %v5613
        %v5862 = vpack.c.b16 %v5618, %v5614
        %v5863 = vpack.c.b16 %v5619, %v5615
        %v5864 = vpack.c.b16 %v5624, %v5620
        %v5865 = vpack.c.b16 %v5625, %v5621
        %v5866 = vpack.c.b16 %v5626, %v5622
        %v5867 = vpack.c.b16 %v5627, %v5623
        %v5868 = vpack.c.b16 %v5632, %v5628
        %v5869 = vpack.c.b16 %v5633, %v5629
        %v5870 = vpack.c.b16 %v5634, %v5630
        %v5871 = vpack.c.b16 %v5635, %v5631
        %v5872 = vpack.c.b16 %v5640, %v5636
        %v5873 = vpack.c.b16 %v5641, %v5637
        %v5874 = vpack.c.b16 %v5642, %v5638
        %v5875 = vpack.c.b16 %v5643, %v5639
        %v5876 = vpack.c.b16 %v5648, %v5644
        %v5877 = vpack.c.b16 %v5649, %v5645
        %v5878 = vpack.c.b16 %v5650, %v5646
        %v5879 = vpack.c.b16 %v5651, %v5647
        %v5880 = vpack.c.b16 %v5656, %v5652
        %v5881 = vpack.c.b16 %v5657, %v5653
        %v5882 = vpack.c.b16 %v5658, %v5654
        %v5883 = vpack.c.b16 %v5659, %v5655
        %v5884 = vpack.c.b16 %v5664, %v5660
        %v5885 = vpack.c.b16 %v5665, %v5661
        %v5886 = vpack.c.b16 %v5666, %v5662
        %v5887 = vpack.c.b16 %v5667, %v5663
        %v5888 = vpack.c.b16 %v5672, %v5668
        %v5889 = vpack.c.b16 %v5673, %v5669
        %v5890 = vpack.c.b16 %v5674, %v5670
        %v5891 = vpack.c.b16 %v5675, %v5671
        %v5892 = vpack.c.b16 %v5680, %v5676
        %v5893 = vpack.c.b16 %v5681, %v5677
        %v5894 = vpack.c.b16 %v5682, %v5678
        %v5895 = vpack.c.b16 %v5683, %v5679
        %v5896 = vpack.c.b16 %v5688, %v5684
        %v5897 = vpack.c.b16 %v5689, %v5685
        %v5898 = vpack.c.b16 %v5690, %v5686
        %v5899 = vpack.c.b16 %v5691, %v5687
        %v5900 = vpack.c.b16 %v5696, %v5692
        %v5901 = vpack.c.b16 %v5697, %v5693
        %v5902 = vpack.c.b16 %v5698, %v5694
        %v5903 = vpack.c.b16 %v5699, %v5695
        %v5904 = vpack.c.b16 %v5704, %v5700
        %v5905 = vpack.c.b16 %v5705, %v5701
        %v5906 = vpack.c.b16 %v5706, %v5702
        %v5907 = vpack.c.b16 %v5707, %v5703
        %v5908 = vpack.c.b16 %v5712, %v5708
        %v5909 = vpack.c.b16 %v5713, %v5709
        %v5910 = vpack.c.b16 %v5714, %v5710
        %v5911 = vpack.c.b16 %v5715, %v5711
        %v5912 = vpack.c.b16 %v5720, %v5716
        %v5913 = vpack.c.b16 %v5721, %v5717
        %v5914 = vpack.c.b16 %v5722, %v5718
        %v5915 = vpack.c.b16 %v5723, %v5719
        %v5916 = vpack.c.b16 %v5728, %v5724
        %v5917 = vpack.c.b16 %v5729, %v5725
        %v5918 = vpack.c.b16 %v5730, %v5726
        %v5919 = vpack.c.b16 %v5731, %v5727
        %v5920 = vpack.c.b16 %v5736, %v5732
        %v5921 = vpack.c.b16 %v5737, %v5733
        %v5922 = vpack.c.b16 %v5738, %v5734
        %v5923 = vpack.c.b16 %v5739, %v5735
        %v5924 = vpack.c.b16 %v5744, %v5740
        %v5925 = vpack.c.b16 %v5745, %v5741
        %v5926 = vpack.c.b16 %v5746, %v5742
        %v5927 = vpack.c.b16 %v5747, %v5743
        %v5928 = vpack.c.b16 %v5752, %v5748
        %v5929 = vpack.c.b16 %v5753, %v5749
        %v5930 = vpack.c.b16 %v5754, %v5750
        %v5931 = vpack.c.b16 %v5755, %v5751
        %v5932 = vpack.c.b16 %v5760, %v5756
        %v5933 = vpack.c.b16 %v5761, %v5757
        %v5934 = vpack.c.b16 %v5762, %v5758
        %v5935 = vpack.c.b16 %v5763, %v5759
        %v5936 = vpack.c.b16 %v5768, %v5764
        %v5937 = vpack.c.b16 %v5769, %v5765
        %v5938 = vpack.c.b16 %v5770, %v5766
        %v5939 = vpack.c.b16 %v5771, %v5767
        %v5940 = vpack.c.b16 %v5776, %v5772
        %v5941 = vpack.c.b16 %v5777, %v5773
        %v5942 = vpack.c.b16 %v5778, %v5774
        %v5943 = vpack.c.b16 %v5779, %v5775
        %v5944 = vpack.c.b16 %v5784, %v5780
        %v5945 = vpack.c.b16 %v5785, %v5781
        %v5946 = vpack.c.b16 %v5786, %v5782
        %v5947 = vpack.c.b16 %v5787, %v5783
        %v5948 = vpack.c.b16 %v5792, %v5788
        %v5949 = vpack.c.b16 %v5793, %v5789
        %v5950 = vpack.c.b16 %v5794, %v5790
        %v5951 = vpack.c.b16 %v5795, %v5791
        %v5952 = vpack.c.b16 %v5800, %v5796
        %v5953 = vpack.c.b16 %v5801, %v5797
        %v5954 = vpack.c.b16 %v5802, %v5798
        %v5955 = vpack.c.b16 %v5803, %v5799
        %v5956 = vpack.c.b16 %v5808, %v5804
        %v5957 = vpack.c.b16 %v5809, %v5805
        %v5958 = vpack.c.b16 %v5810, %v5806
        %v5959 = vpack.c.b16 %v5811, %v5807
        %v5960 = vpack.c.b16 %v5816, %v5812
        %v5961 = vpack.c.b16 %v5817, %v5813
        %v5962 = vpack.c.b16 %v5818, %v5814
        %v5963 = vpack.c.b16 %v5819, %v5815
        %v5964 = vpack.c.b16 %v5824, %v5820
        %v5965 = vpack.c.b16 %v5825, %v5821
        %v5966 = vpack.c.b16 %v5826, %v5822
        %v5967 = vpack.c.b16 %v5827, %v5823
        %v5968 = vpack.c.b16 %v5832, %v5828
        %v5969 = vpack.c.b16 %v5833, %v5829
        %v5970 = vpack.c.b16 %v5834, %v5830
        %v5971 = vpack.c.b16 %v5835, %v5831
        %v5972 = vpack.c.b16 %v5840, %v5836
        %v5973 = vpack.c.b16 %v5841, %v5837
        %v5974 = vpack.c.b16 %v5842, %v5838
        %v5975 = vpack.c.b16 %v5843, %v5839
        %v5976 = vpack.c.b16 %v5848, %v5844
        %v5977 = vpack.c.b16 %v5849, %v5845
        %v5978 = vpack.c.b16 %v5850, %v5846
        %v5979 = vpack.c.b16 %v5851, %v5847
        %6108 = vmatpush.bf16.msra.mxu0 %v5880
        %6109 = vmatpush.bf16.msra.mxu0 %v5876
        %6110 = vmatpush.bf16.msra.mxu0 %v5872
        %6111 = vmatpush.bf16.msra.mxu0 %v5868
        %6112 = vmatpush.bf16.msra.mxu0 %v5864
        %6113 = vmatpush.bf16.msra.mxu0 %v5860
        %6114 = vmatpush.bf16.msra.mxu0 %v5856
        %6115 = vmatpush.bf16.msra.mxu0 %v5852
        %6116 = vmatmul.bf16.gmra.mxu0 %v4076
        %v6117 = vpop.f32.mrf.mxu0
        %v6118 = vadd.f32 %v5101, %v6117
        %v6119 = vpop.f32.mrf.mxu0
        %v6120 = vadd.f32 %v5103, %v6119
        %6121 = vmatmul.bf16.gmra.mxu0 %v4080
        %v6122 = vpop.f32.mrf.mxu0
        %v6123 = vadd.f32 %v5106, %v6122
        %v6124 = vpop.f32.mrf.mxu0
        %v6125 = vadd.f32 %v5108, %v6124
        %6126 = vmatmul.bf16.gmra.mxu0 %v4084
        %v6127 = vpop.f32.mrf.mxu0
        %v6128 = vadd.f32 %v5111, %v6127
        %v6129 = vpop.f32.mrf.mxu0
        %v6130 = vadd.f32 %v5113, %v6129
        %6131 = vmatmul.bf16.gmra.mxu0 %v4088
        %v6132 = vpop.f32.mrf.mxu0
        %v6133 = vadd.f32 %v5116, %v6132
        %v6134 = vpop.f32.mrf.mxu0
        %v6135 = vadd.f32 %v5118, %v6134
        %6136 = vdwg.mxu0
        %6137 = vmatpush.bf16.msra.mxu0 %v5912
        %6138 = vmatpush.bf16.msra.mxu0 %v5908
        %6139 = vmatpush.bf16.msra.mxu0 %v5904
        %6140 = vmatpush.bf16.msra.mxu0 %v5900
        %6141 = vmatpush.bf16.msra.mxu0 %v5896
        %6142 = vmatpush.bf16.msra.mxu0 %v5892
        %6143 = vmatpush.bf16.msra.mxu0 %v5888
        %6144 = vmatpush.bf16.msra.mxu0 %v5884
        %6145 = vmatmul.bf16.gmra.mxu0 %v4077
        %v6146 = vpop.f32.mrf.mxu0
        %v6147 = vadd.f32 %v6118, %v6146
        %v6148 = vpop.f32.mrf.mxu0
        %v6149 = vadd.f32 %v6120, %v6148
        %6150 = vmatmul.bf16.gmra.mxu0 %v4081
        %v6151 = vpop.f32.mrf.mxu0
        %v6152 = vadd.f32 %v6123, %v6151
        %v6153 = vpop.f32.mrf.mxu0
        %v6154 = vadd.f32 %v6125, %v6153
        %6155 = vmatmul.bf16.gmra.mxu0 %v4085
        %v6156 = vpop.f32.mrf.mxu0
        %v6157 = vadd.f32 %v6128, %v6156
        %v6158 = vpop.f32.mrf.mxu0
        %v6159 = vadd.f32 %v6130, %v6158
        %6160 = vmatmul.bf16.gmra.mxu0 %v4089
        %v6161 = vpop.f32.mrf.mxu0
        %v6162 = vadd.f32 %v6133, %v6161
        %v6163 = vpop.f32.mrf.mxu0
        %v6164 = vadd.f32 %v6135, %v6163
        %6165 = vdwg.mxu0
        %6166 = vmatpush.bf16.msra.mxu0 %v5944
        %6167 = vmatpush.bf16.msra.mxu0 %v5940
        %6168 = vmatpush.bf16.msra.mxu0 %v5936
        %6169 = vmatpush.bf16.msra.mxu0 %v5932
        %6170 = vmatpush.bf16.msra.mxu0 %v5928
        %6171 = vmatpush.bf16.msra.mxu0 %v5924
        %6172 = vmatpush.bf16.msra.mxu0 %v5920
        %6173 = vmatpush.bf16.msra.mxu0 %v5916
        %6174 = vmatmul.bf16.gmra.mxu0 %v4078
        %v6175 = vpop.f32.mrf.mxu0
        %v6176 = vadd.f32 %v6147, %v6175
        %v6177 = vpop.f32.mrf.mxu0
        %v6178 = vadd.f32 %v6149, %v6177
        %6179 = vmatmul.bf16.gmra.mxu0 %v4082
        %v6180 = vpop.f32.mrf.mxu0
        %v6181 = vadd.f32 %v6152, %v6180
        %v6182 = vpop.f32.mrf.mxu0
        %v6183 = vadd.f32 %v6154, %v6182
        %6184 = vmatmul.bf16.gmra.mxu0 %v4086
        %v6185 = vpop.f32.mrf.mxu0
        %v6186 = vadd.f32 %v6157, %v6185
        %v6187 = vpop.f32.mrf.mxu0
        %v6188 = vadd.f32 %v6159, %v6187
        %6189 = vmatmul.bf16.gmra.mxu0 %v4090
        %v6190 = vpop.f32.mrf.mxu0
        %v6191 = vadd.f32 %v6162, %v6190
        %v6192 = vpop.f32.mrf.mxu0
        %v6193 = vadd.f32 %v6164, %v6192
        %6194 = vdwg.mxu0
        %6195 = vmatpush.bf16.msra.mxu0 %v5976
        %6196 = vmatpush.bf16.msra.mxu0 %v5972
        %6197 = vmatpush.bf16.msra.mxu0 %v5968
        %6198 = vmatpush.bf16.msra.mxu0 %v5964
        %6199 = vmatpush.bf16.msra.mxu0 %v5960
        %6200 = vmatpush.bf16.msra.mxu0 %v5956
        %6201 = vmatpush.bf16.msra.mxu0 %v5952
        %6202 = vmatpush.bf16.msra.mxu0 %v5948
        %6203 = vmatmul.bf16.gmra.mxu0 %v4079
        %v6204 = vpop.f32.mrf.mxu0
        %v6205 = vadd.f32 %v6176, %v6204
        %v6206 = vpop.f32.mrf.mxu0
        %v6207 = vadd.f32 %v6178, %v6206
        %6208 = vmatmul.bf16.gmra.mxu0 %v4083
        %v6209 = vpop.f32.mrf.mxu0
        %v6210 = vadd.f32 %v6181, %v6209
        %v6211 = vpop.f32.mrf.mxu0
        %v6212 = vadd.f32 %v6183, %v6211
        %6213 = vmatmul.bf16.gmra.mxu0 %v4087
        %v6214 = vpop.f32.mrf.mxu0
        %v6215 = vadd.f32 %v6186, %v6214
        %v6216 = vpop.f32.mrf.mxu0
        %v6217 = vadd.f32 %v6188, %v6216
        %6218 = vmatmul.bf16.gmra.mxu0 %v4091
        %v6219 = vpop.f32.mrf.mxu0
        %v6220 = vadd.f32 %v6191, %v6219
        %v6221 = vpop.f32.mrf.mxu0
        %v6222 = vadd.f32 %v6193, %v6221
        %6223 = vdwg.mxu0
        %6224 = vmatpush.bf16.msra.mxu0 %v5881
        %6225 = vmatpush.bf16.msra.mxu0 %v5877
        %6226 = vmatpush.bf16.msra.mxu0 %v5873
        %6227 = vmatpush.bf16.msra.mxu0 %v5869
        %6228 = vmatpush.bf16.msra.mxu0 %v5865
        %6229 = vmatpush.bf16.msra.mxu0 %v5861
        %6230 = vmatpush.bf16.msra.mxu0 %v5857
        %6231 = vmatpush.bf16.msra.mxu0 %v5853
        %6232 = vmatmul.bf16.gmra.mxu0 %v4076
        %v6233 = vpop.f32.mrf.mxu0
        %v6234 = vadd.f32 %v5217, %v6233
        %v6235 = vpop.f32.mrf.mxu0
        %v6236 = vadd.f32 %v5219, %v6235
        %6237 = vmatmul.bf16.gmra.mxu0 %v4080
        %v6238 = vpop.f32.mrf.mxu0
        %v6239 = vadd.f32 %v5222, %v6238
        %v6240 = vpop.f32.mrf.mxu0
        %v6241 = vadd.f32 %v5224, %v6240
        %6242 = vmatmul.bf16.gmra.mxu0 %v4084
        %v6243 = vpop.f32.mrf.mxu0
        %v6244 = vadd.f32 %v5227, %v6243
        %v6245 = vpop.f32.mrf.mxu0
        %v6246 = vadd.f32 %v5229, %v6245
        %6247 = vmatmul.bf16.gmra.mxu0 %v4088
        %v6248 = vpop.f32.mrf.mxu0
        %v6249 = vadd.f32 %v5232, %v6248
        %v6250 = vpop.f32.mrf.mxu0
        %v6251 = vadd.f32 %v5234, %v6250
        %6252 = vdwg.mxu0
        %6253 = vmatpush.bf16.msra.mxu0 %v5913
        %6254 = vmatpush.bf16.msra.mxu0 %v5909
        %6255 = vmatpush.bf16.msra.mxu0 %v5905
        %6256 = vmatpush.bf16.msra.mxu0 %v5901
        %6257 = vmatpush.bf16.msra.mxu0 %v5897
        %6258 = vmatpush.bf16.msra.mxu0 %v5893
        %6259 = vmatpush.bf16.msra.mxu0 %v5889
        %6260 = vmatpush.bf16.msra.mxu0 %v5885
        %6261 = vmatmul.bf16.gmra.mxu0 %v4077
        %v6262 = vpop.f32.mrf.mxu0
        %v6263 = vadd.f32 %v6234, %v6262
        %v6264 = vpop.f32.mrf.mxu0
        %v6265 = vadd.f32 %v6236, %v6264
        %6266 = vmatmul.bf16.gmra.mxu0 %v4081
        %v6267 = vpop.f32.mrf.mxu0
        %v6268 = vadd.f32 %v6239, %v6267
        %v6269 = vpop.f32.mrf.mxu0
        %v6270 = vadd.f32 %v6241, %v6269
        %6271 = vmatmul.bf16.gmra.mxu0 %v4085
        %v6272 = vpop.f32.mrf.mxu0
        %v6273 = vadd.f32 %v6244, %v6272
        %v6274 = vpop.f32.mrf.mxu0
        %v6275 = vadd.f32 %v6246, %v6274
        %6276 = vmatmul.bf16.gmra.mxu0 %v4089
        %v6277 = vpop.f32.mrf.mxu0
        %v6278 = vadd.f32 %v6249, %v6277
        %v6279 = vpop.f32.mrf.mxu0
        %v6280 = vadd.f32 %v6251, %v6279
        %6281 = vdwg.mxu0
        %6282 = vmatpush.bf16.msra.mxu0 %v5945
        %6283 = vmatpush.bf16.msra.mxu0 %v5941
        %6284 = vmatpush.bf16.msra.mxu0 %v5937
        %6285 = vmatpush.bf16.msra.mxu0 %v5933
        %6286 = vmatpush.bf16.msra.mxu0 %v5929
        %6287 = vmatpush.bf16.msra.mxu0 %v5925
        %6288 = vmatpush.bf16.msra.mxu0 %v5921
        %6289 = vmatpush.bf16.msra.mxu0 %v5917
        %6290 = vmatmul.bf16.gmra.mxu0 %v4078
        %v6291 = vpop.f32.mrf.mxu0
        %v6292 = vadd.f32 %v6263, %v6291
        %v6293 = vpop.f32.mrf.mxu0
        %v6294 = vadd.f32 %v6265, %v6293
        %6295 = vmatmul.bf16.gmra.mxu0 %v4082
        %v6296 = vpop.f32.mrf.mxu0
        %v6297 = vadd.f32 %v6268, %v6296
        %v6298 = vpop.f32.mrf.mxu0
        %v6299 = vadd.f32 %v6270, %v6298
        %6300 = vmatmul.bf16.gmra.mxu0 %v4086
        %v6301 = vpop.f32.mrf.mxu0
        %v6302 = vadd.f32 %v6273, %v6301
        %v6303 = vpop.f32.mrf.mxu0
        %v6304 = vadd.f32 %v6275, %v6303
        %6305 = vmatmul.bf16.gmra.mxu0 %v4090
        %v6306 = vpop.f32.mrf.mxu0
        %v6307 = vadd.f32 %v6278, %v6306
        %v6308 = vpop.f32.mrf.mxu0
        %v6309 = vadd.f32 %v6280, %v6308
        %6310 = vdwg.mxu0
        %6311 = vmatpush.bf16.msra.mxu0 %v5977
        %6312 = vmatpush.bf16.msra.mxu0 %v5973
        %6313 = vmatpush.bf16.msra.mxu0 %v5969
        %6314 = vmatpush.bf16.msra.mxu0 %v5965
        %6315 = vmatpush.bf16.msra.mxu0 %v5961
        %6316 = vmatpush.bf16.msra.mxu0 %v5957
        %6317 = vmatpush.bf16.msra.mxu0 %v5953
        %6318 = vmatpush.bf16.msra.mxu0 %v5949
        %6319 = vmatmul.bf16.gmra.mxu0 %v4079
        %v6320 = vpop.f32.mrf.mxu0
        %v6321 = vadd.f32 %v6292, %v6320
        %v6322 = vpop.f32.mrf.mxu0
        %v6323 = vadd.f32 %v6294, %v6322
        %6324 = vmatmul.bf16.gmra.mxu0 %v4083
        %v6325 = vpop.f32.mrf.mxu0
        %v6326 = vadd.f32 %v6297, %v6325
        %v6327 = vpop.f32.mrf.mxu0
        %v6328 = vadd.f32 %v6299, %v6327
        %6329 = vmatmul.bf16.gmra.mxu0 %v4087
        %v6330 = vpop.f32.mrf.mxu0
        %v6331 = vadd.f32 %v6302, %v6330
        %v6332 = vpop.f32.mrf.mxu0
        %v6333 = vadd.f32 %v6304, %v6332
        %6334 = vmatmul.bf16.gmra.mxu0 %v4091
        %v6335 = vpop.f32.mrf.mxu0
        %v6336 = vadd.f32 %v6307, %v6335
        %v6337 = vpop.f32.mrf.mxu0
        %v6338 = vadd.f32 %v6309, %v6337
        %6339 = vdwg.mxu0
        %6340 = vmatpush.bf16.msra.mxu0 %v5882
        %6341 = vmatpush.bf16.msra.mxu0 %v5878
        %6342 = vmatpush.bf16.msra.mxu0 %v5874
        %6343 = vmatpush.bf16.msra.mxu0 %v5870
        %6344 = vmatpush.bf16.msra.mxu0 %v5866
        %6345 = vmatpush.bf16.msra.mxu0 %v5862
        %6346 = vmatpush.bf16.msra.mxu0 %v5858
        %6347 = vmatpush.bf16.msra.mxu0 %v5854
        %6348 = vmatmul.bf16.gmra.mxu0 %v4076
        %v6349 = vpop.f32.mrf.mxu0
        %v6350 = vadd.f32 %v5333, %v6349
        %v6351 = vpop.f32.mrf.mxu0
        %v6352 = vadd.f32 %v5335, %v6351
        %6353 = vmatmul.bf16.gmra.mxu0 %v4080
        %v6354 = vpop.f32.mrf.mxu0
        %v6355 = vadd.f32 %v5338, %v6354
        %v6356 = vpop.f32.mrf.mxu0
        %v6357 = vadd.f32 %v5340, %v6356
        %6358 = vmatmul.bf16.gmra.mxu0 %v4084
        %v6359 = vpop.f32.mrf.mxu0
        %v6360 = vadd.f32 %v5343, %v6359
        %v6361 = vpop.f32.mrf.mxu0
        %v6362 = vadd.f32 %v5345, %v6361
        %6363 = vmatmul.bf16.gmra.mxu0 %v4088
        %v6364 = vpop.f32.mrf.mxu0
        %v6365 = vadd.f32 %v5348, %v6364
        %v6366 = vpop.f32.mrf.mxu0
        %v6367 = vadd.f32 %v5350, %v6366
        %6368 = vdwg.mxu0
        %6369 = vmatpush.bf16.msra.mxu0 %v5914
        %6370 = vmatpush.bf16.msra.mxu0 %v5910
        %6371 = vmatpush.bf16.msra.mxu0 %v5906
        %6372 = vmatpush.bf16.msra.mxu0 %v5902
        %6373 = vmatpush.bf16.msra.mxu0 %v5898
        %6374 = vmatpush.bf16.msra.mxu0 %v5894
        %6375 = vmatpush.bf16.msra.mxu0 %v5890
        %6376 = vmatpush.bf16.msra.mxu0 %v5886
        %6377 = vmatmul.bf16.gmra.mxu0 %v4077
        %v6378 = vpop.f32.mrf.mxu0
        %v6379 = vadd.f32 %v6350, %v6378
        %v6380 = vpop.f32.mrf.mxu0
        %v6381 = vadd.f32 %v6352, %v6380
        %6382 = vmatmul.bf16.gmra.mxu0 %v4081
        %v6383 = vpop.f32.mrf.mxu0
        %v6384 = vadd.f32 %v6355, %v6383
        %v6385 = vpop.f32.mrf.mxu0
        %v6386 = vadd.f32 %v6357, %v6385
        %6387 = vmatmul.bf16.gmra.mxu0 %v4085
        %v6388 = vpop.f32.mrf.mxu0
        %v6389 = vadd.f32 %v6360, %v6388
        %v6390 = vpop.f32.mrf.mxu0
        %v6391 = vadd.f32 %v6362, %v6390
        %6392 = vmatmul.bf16.gmra.mxu0 %v4089
        %v6393 = vpop.f32.mrf.mxu0
        %v6394 = vadd.f32 %v6365, %v6393
        %v6395 = vpop.f32.mrf.mxu0
        %v6396 = vadd.f32 %v6367, %v6395
        %6397 = vdwg.mxu0
        %6398 = vmatpush.bf16.msra.mxu0 %v5946
        %6399 = vmatpush.bf16.msra.mxu0 %v5942
        %6400 = vmatpush.bf16.msra.mxu0 %v5938
        %6401 = vmatpush.bf16.msra.mxu0 %v5934
        %6402 = vmatpush.bf16.msra.mxu0 %v5930
        %6403 = vmatpush.bf16.msra.mxu0 %v5926
        %6404 = vmatpush.bf16.msra.mxu0 %v5922
        %6405 = vmatpush.bf16.msra.mxu0 %v5918
        %6406 = vmatmul.bf16.gmra.mxu0 %v4078
        %v6407 = vpop.f32.mrf.mxu0
        %v6408 = vadd.f32 %v6379, %v6407
        %v6409 = vpop.f32.mrf.mxu0
        %v6410 = vadd.f32 %v6381, %v6409
        %6411 = vmatmul.bf16.gmra.mxu0 %v4082
        %v6412 = vpop.f32.mrf.mxu0
        %v6413 = vadd.f32 %v6384, %v6412
        %v6414 = vpop.f32.mrf.mxu0
        %v6415 = vadd.f32 %v6386, %v6414
        %6416 = vmatmul.bf16.gmra.mxu0 %v4086
        %v6417 = vpop.f32.mrf.mxu0
        %v6418 = vadd.f32 %v6389, %v6417
        %v6419 = vpop.f32.mrf.mxu0
        %v6420 = vadd.f32 %v6391, %v6419
        %6421 = vmatmul.bf16.gmra.mxu0 %v4090
        %v6422 = vpop.f32.mrf.mxu0
        %v6423 = vadd.f32 %v6394, %v6422
        %v6424 = vpop.f32.mrf.mxu0
        %v6425 = vadd.f32 %v6396, %v6424
        %6426 = vdwg.mxu0
        %6427 = vmatpush.bf16.msra.mxu0 %v5978
        %6428 = vmatpush.bf16.msra.mxu0 %v5974
        %6429 = vmatpush.bf16.msra.mxu0 %v5970
        %6430 = vmatpush.bf16.msra.mxu0 %v5966
        %6431 = vmatpush.bf16.msra.mxu0 %v5962
        %6432 = vmatpush.bf16.msra.mxu0 %v5958
        %6433 = vmatpush.bf16.msra.mxu0 %v5954
        %6434 = vmatpush.bf16.msra.mxu0 %v5950
        %6435 = vmatmul.bf16.gmra.mxu0 %v4079
        %v6436 = vpop.f32.mrf.mxu0
        %v6437 = vadd.f32 %v6408, %v6436
        %v6438 = vpop.f32.mrf.mxu0
        %v6439 = vadd.f32 %v6410, %v6438
        %6440 = vmatmul.bf16.gmra.mxu0 %v4083
        %v6441 = vpop.f32.mrf.mxu0
        %v6442 = vadd.f32 %v6413, %v6441
        %v6443 = vpop.f32.mrf.mxu0
        %v6444 = vadd.f32 %v6415, %v6443
        %6445 = vmatmul.bf16.gmra.mxu0 %v4087
        %v6446 = vpop.f32.mrf.mxu0
        %v6447 = vadd.f32 %v6418, %v6446
        %v6448 = vpop.f32.mrf.mxu0
        %v6449 = vadd.f32 %v6420, %v6448
        %6450 = vmatmul.bf16.gmra.mxu0 %v4091
        %v6451 = vpop.f32.mrf.mxu0
        %v6452 = vadd.f32 %v6423, %v6451
        %v6453 = vpop.f32.mrf.mxu0
        %v6454 = vadd.f32 %v6425, %v6453
        %6455 = vdwg.mxu0
        %6456 = vmatpush.bf16.msra.mxu0 %v5883
        %6457 = vmatpush.bf16.msra.mxu0 %v5879
        %6458 = vmatpush.bf16.msra.mxu0 %v5875
        %6459 = vmatpush.bf16.msra.mxu0 %v5871
        %6460 = vmatpush.bf16.msra.mxu0 %v5867
        %6461 = vmatpush.bf16.msra.mxu0 %v5863
        %6462 = vmatpush.bf16.msra.mxu0 %v5859
        %6463 = vmatpush.bf16.msra.mxu0 %v5855
        %6464 = vmatmul.bf16.gmra.mxu0 %v4076
        %v6465 = vpop.f32.mrf.mxu0
        %v6466 = vadd.f32 %v5449, %v6465
        %v6467 = vpop.f32.mrf.mxu0
        %v6468 = vadd.f32 %v5451, %v6467
        %6469 = vmatmul.bf16.gmra.mxu0 %v4080
        %v6470 = vpop.f32.mrf.mxu0
        %v6471 = vadd.f32 %v5454, %v6470
        %v6472 = vpop.f32.mrf.mxu0
        %v6473 = vadd.f32 %v5456, %v6472
        %6474 = vmatmul.bf16.gmra.mxu0 %v4084
        %v6475 = vpop.f32.mrf.mxu0
        %v6476 = vadd.f32 %v5459, %v6475
        %v6477 = vpop.f32.mrf.mxu0
        %v6478 = vadd.f32 %v5461, %v6477
        %6479 = vmatmul.bf16.gmra.mxu0 %v4088
        %v6480 = vpop.f32.mrf.mxu0
        %v6481 = vadd.f32 %v5464, %v6480
        %v6482 = vpop.f32.mrf.mxu0
        %v6483 = vadd.f32 %v5466, %v6482
        %6484 = vdwg.mxu0
        %6485 = vmatpush.bf16.msra.mxu0 %v5915
        %6486 = vmatpush.bf16.msra.mxu0 %v5911
        %6487 = vmatpush.bf16.msra.mxu0 %v5907
        %6488 = vmatpush.bf16.msra.mxu0 %v5903
        %6489 = vmatpush.bf16.msra.mxu0 %v5899
        %6490 = vmatpush.bf16.msra.mxu0 %v5895
        %6491 = vmatpush.bf16.msra.mxu0 %v5891
        %6492 = vmatpush.bf16.msra.mxu0 %v5887
        %6493 = vmatmul.bf16.gmra.mxu0 %v4077
        %v6494 = vpop.f32.mrf.mxu0
        %v6495 = vadd.f32 %v6466, %v6494
        %v6496 = vpop.f32.mrf.mxu0
        %v6497 = vadd.f32 %v6468, %v6496
        %6498 = vmatmul.bf16.gmra.mxu0 %v4081
        %v6499 = vpop.f32.mrf.mxu0
        %v6500 = vadd.f32 %v6471, %v6499
        %v6501 = vpop.f32.mrf.mxu0
        %v6502 = vadd.f32 %v6473, %v6501
        %6503 = vmatmul.bf16.gmra.mxu0 %v4085
        %v6504 = vpop.f32.mrf.mxu0
        %v6505 = vadd.f32 %v6476, %v6504
        %v6506 = vpop.f32.mrf.mxu0
        %v6507 = vadd.f32 %v6478, %v6506
        %6508 = vmatmul.bf16.gmra.mxu0 %v4089
        %v6509 = vpop.f32.mrf.mxu0
        %v6510 = vadd.f32 %v6481, %v6509
        %v6511 = vpop.f32.mrf.mxu0
        %v6512 = vadd.f32 %v6483, %v6511
        %6513 = vdwg.mxu0
        %6514 = vmatpush.bf16.msra.mxu0 %v5947
        %6515 = vmatpush.bf16.msra.mxu0 %v5943
        %6516 = vmatpush.bf16.msra.mxu0 %v5939
        %6517 = vmatpush.bf16.msra.mxu0 %v5935
        %6518 = vmatpush.bf16.msra.mxu0 %v5931
        %6519 = vmatpush.bf16.msra.mxu0 %v5927
        %6520 = vmatpush.bf16.msra.mxu0 %v5923
        %6521 = vmatpush.bf16.msra.mxu0 %v5919
        %6522 = vmatmul.bf16.gmra.mxu0 %v4078
        %v6523 = vpop.f32.mrf.mxu0
        %v6524 = vadd.f32 %v6495, %v6523
        %v6525 = vpop.f32.mrf.mxu0
        %v6526 = vadd.f32 %v6497, %v6525
        %6527 = vmatmul.bf16.gmra.mxu0 %v4082
        %v6528 = vpop.f32.mrf.mxu0
        %v6529 = vadd.f32 %v6500, %v6528
        %v6530 = vpop.f32.mrf.mxu0
        %v6531 = vadd.f32 %v6502, %v6530
        %6532 = vmatmul.bf16.gmra.mxu0 %v4086
        %v6533 = vpop.f32.mrf.mxu0
        %v6534 = vadd.f32 %v6505, %v6533
        %v6535 = vpop.f32.mrf.mxu0
        %v6536 = vadd.f32 %v6507, %v6535
        %6537 = vmatmul.bf16.gmra.mxu0 %v4090
        %v6538 = vpop.f32.mrf.mxu0
        %v6539 = vadd.f32 %v6510, %v6538
        %v6540 = vpop.f32.mrf.mxu0
        %v6541 = vadd.f32 %v6512, %v6540
        %6542 = vdwg.mxu0
        %6543 = vmatpush.bf16.msra.mxu0 %v5979
        %6544 = vmatpush.bf16.msra.mxu0 %v5975
        %6545 = vmatpush.bf16.msra.mxu0 %v5971
        %6546 = vmatpush.bf16.msra.mxu0 %v5967
        %6547 = vmatpush.bf16.msra.mxu0 %v5963
        %6548 = vmatpush.bf16.msra.mxu0 %v5959
        %6549 = vmatpush.bf16.msra.mxu0 %v5955
        %6550 = vmatpush.bf16.msra.mxu0 %v5951
        %6551 = vmatmul.bf16.gmra.mxu0 %v4079
        %v6552 = vpop.f32.mrf.mxu0
        %v6553 = vadd.f32 %v6524, %v6552
        %v6554 = vpop.f32.mrf.mxu0
        %v6555 = vadd.f32 %v6526, %v6554
        %6556 = vmatmul.bf16.gmra.mxu0 %v4083
        %v6557 = vpop.f32.mrf.mxu0
        %v6558 = vadd.f32 %v6529, %v6557
        %v6559 = vpop.f32.mrf.mxu0
        %v6560 = vadd.f32 %v6531, %v6559
        %6561 = vmatmul.bf16.gmra.mxu0 %v4087
        %v6562 = vpop.f32.mrf.mxu0
        %v6563 = vadd.f32 %v6534, %v6562
        %v6564 = vpop.f32.mrf.mxu0
        %v6565 = vadd.f32 %v6536, %v6564
        %6566 = vmatmul.bf16.gmra.mxu0 %v4091
        %v6567 = vpop.f32.mrf.mxu0
        %v6568 = vadd.f32 %v6539, %v6567
        %v6569 = vpop.f32.mrf.mxu0
        %v6570 = vadd.f32 %v6541, %v6569
        %6571 = vdwg.mxu0
        %v6572 = vld [vmem:[%s8] sm:$0xf]
        %v6574 = vperm.slane %v6572, 0
        %v6575 = vperm.slane %v6572, 1
        %v6576 = vperm.slane %v6572, 2
        %v6577 = vperm.slane %v6572, 3
        %v6582 = vadd.f32 %v6205, %v6574
        %v6583 = vadd.f32 %v6321, %v6575
        %v6584 = vadd.f32 %v6437, %v6576
        %v6585 = vadd.f32 %v6553, %v6577
        %v6586 = vadd.f32 %v6207, %v6574
        %v6587 = vadd.f32 %v6323, %v6575
        %v6588 = vadd.f32 %v6439, %v6576
        %v6589 = vadd.f32 %v6555, %v6577
        %v6590 = vadd.f32 %v6210, %v6574
        %v6591 = vadd.f32 %v6326, %v6575
        %v6592 = vadd.f32 %v6442, %v6576
        %v6593 = vadd.f32 %v6558, %v6577
        %v6594 = vadd.f32 %v6212, %v6574
        %v6595 = vadd.f32 %v6328, %v6575
        %v6596 = vadd.f32 %v6444, %v6576
        %v6597 = vadd.f32 %v6560, %v6577
        %v6598 = vadd.f32 %v6215, %v6574
        %v6599 = vadd.f32 %v6331, %v6575
        %v6600 = vadd.f32 %v6447, %v6576
        %v6601 = vadd.f32 %v6563, %v6577
        %v6602 = vadd.f32 %v6217, %v6574
        %v6603 = vadd.f32 %v6333, %v6575
        %v6604 = vadd.f32 %v6449, %v6576
        %v6605 = vadd.f32 %v6565, %v6577
        %v6606 = vadd.f32 %v6220, %v6574
        %v6607 = vadd.f32 %v6336, %v6575
        %v6608 = vadd.f32 %v6452, %v6576
        %v6609 = vadd.f32 %v6568, %v6577
        %v6610 = vadd.f32 %v6222, %v6574
        %v6611 = vadd.f32 %v6338, %v6575
        %v6612 = vadd.f32 %v6454, %v6576
        %v6613 = vadd.f32 %v6570, %v6577
        %v6614 = vmax.f32 %v6582, 0.0
        %v6615 = vmax.f32 %v6583, 0.0
        %v6616 = vmax.f32 %v6584, 0.0
        %v6617 = vmax.f32 %v6585, 0.0
        %v6618 = vmax.f32 %v6586, 0.0
        %v6619 = vmax.f32 %v6587, 0.0
        %v6620 = vmax.f32 %v6588, 0.0
        %v6621 = vmax.f32 %v6589, 0.0
        %v6622 = vmax.f32 %v6590, 0.0
        %v6623 = vmax.f32 %v6591, 0.0
        %v6624 = vmax.f32 %v6592, 0.0
        %v6625 = vmax.f32 %v6593, 0.0
        %v6626 = vmax.f32 %v6594, 0.0
        %v6627 = vmax.f32 %v6595, 0.0
        %v6628 = vmax.f32 %v6596, 0.0
        %v6629 = vmax.f32 %v6597, 0.0
        %v6630 = vmax.f32 %v6598, 0.0
        %v6631 = vmax.f32 %v6599, 0.0
        %v6632 = vmax.f32 %v6600, 0.0
        %v6633 = vmax.f32 %v6601, 0.0
        %v6634 = vmax.f32 %v6602, 0.0
        %v6635 = vmax.f32 %v6603, 0.0
        %v6636 = vmax.f32 %v6604, 0.0
        %v6637 = vmax.f32 %v6605, 0.0
        %v6638 = vmax.f32 %v6606, 0.0
        %v6639 = vmax.f32 %v6607, 0.0
        %v6640 = vmax.f32 %v6608, 0.0
        %v6641 = vmax.f32 %v6609, 0.0
        %v6642 = vmax.f32 %v6610, 0.0
        %v6643 = vmax.f32 %v6611, 0.0
        %v6644 = vmax.f32 %v6612, 0.0
        %v6645 = vmax.f32 %v6613, 0.0
        %v6646 = vpack.c.bf16 %v6618, %v6614
        %v6647 = vpack.c.bf16 %v6619, %v6615
        %v6648 = vpack.c.bf16 %v6620, %v6616
        %v6649 = vpack.c.bf16 %v6621, %v6617
        %v6650 = vpack.c.bf16 %v6626, %v6622
        %v6651 = vpack.c.bf16 %v6627, %v6623
        %v6652 = vpack.c.bf16 %v6628, %v6624
        %v6653 = vpack.c.bf16 %v6629, %v6625
        %v6654 = vpack.c.bf16 %v6634, %v6630
        %v6655 = vpack.c.bf16 %v6635, %v6631
        %v6656 = vpack.c.bf16 %v6636, %v6632
        %v6657 = vpack.c.bf16 %v6637, %v6633
        %v6658 = vpack.c.bf16 %v6642, %v6638
        %v6659 = vpack.c.bf16 %v6643, %v6639
        %v6660 = vpack.c.bf16 %v6644, %v6640
        %v6661 = vpack.c.bf16 %v6645, %v6641
        %v6662 = vld [vmem:[%s9] sm:$0xf]
        %v6663 = vld [vmem:[%s9 + $0x4] sm:$0xf]
        %v6664 = vld [vmem:[%s9 + $0x8] sm:$0xf]
        %v6665 = vld [vmem:[%s9 + $0xc] sm:$0xf]
        %v6666 = vld [vmem:[%s9 + $0x10] sm:$0xf]
        %v6667 = vld [vmem:[%s9 + $0x14] sm:$0xf]
        %v6668 = vld [vmem:[%s9 + $0x18] sm:$0xf]
        %v6669 = vld [vmem:[%s9 + $0x1c] sm:$0xf]
        %v6670 = vld [vmem:[%s9 + $0x20] sm:$0xf]
        %v6671 = vld [vmem:[%s9 + $0x24] sm:$0xf]
        %v6672 = vld [vmem:[%s9 + $0x28] sm:$0xf]
        %v6673 = vld [vmem:[%s9 + $0x2c] sm:$0xf]
        %v6674 = vld [vmem:[%s9 + $0x30] sm:$0xf]
        %v6675 = vld [vmem:[%s9 + $0x34] sm:$0xf]
        %v6676 = vld [vmem:[%s9 + $0x38] sm:$0xf]
        %v6677 = vld [vmem:[%s9 + $0x3c] sm:$0xf]
        %v6678 = vld [vmem:[%s9 + $0x40] sm:$0xf]
        %v6679 = vld [vmem:[%s9 + $0x44] sm:$0xf]
        %v6680 = vld [vmem:[%s9 + $0x48] sm:$0xf]
        %v6681 = vld [vmem:[%s9 + $0x4c] sm:$0xf]
        %v6682 = vld [vmem:[%s9 + $0x50] sm:$0xf]
        %v6683 = vld [vmem:[%s9 + $0x54] sm:$0xf]
        %v6684 = vld [vmem:[%s9 + $0x58] sm:$0xf]
        %v6685 = vld [vmem:[%s9 + $0x5c] sm:$0xf]
        %v6686 = vld [vmem:[%s9 + $0x60] sm:$0xf]
        %v6687 = vld [vmem:[%s9 + $0x64] sm:$0xf]
        %v6688 = vld [vmem:[%s9 + $0x68] sm:$0xf]
        %v6689 = vld [vmem:[%s9 + $0x6c] sm:$0xf]
        %v6690 = vld [vmem:[%s9 + $0x70] sm:$0xf]
        %v6691 = vld [vmem:[%s9 + $0x74] sm:$0xf]
        %v6692 = vld [vmem:[%s9 + $0x78] sm:$0xf]
        %v6693 = vld [vmem:[%s9 + $0x7c] sm:$0xf]
        %v6694 = vld [vmem:[%s9 + $0x80] sm:$0xf]
        %v6695 = vld [vmem:[%s9 + $0x84] sm:$0xf]
        %v6696 = vld [vmem:[%s9 + $0x88] sm:$0xf]
        %v6697 = vld [vmem:[%s9 + $0x8c] sm:$0xf]
        %v6698 = vld [vmem:[%s9 + $0x90] sm:$0xf]
        %v6699 = vld [vmem:[%s9 + $0x94] sm:$0xf]
        %v6700 = vld [vmem:[%s9 + $0x98] sm:$0xf]
        %v6701 = vld [vmem:[%s9 + $0x9c] sm:$0xf]
        %v6702 = vld [vmem:[%s9 + $0xa0] sm:$0xf]
        %v6703 = vld [vmem:[%s9 + $0xa4] sm:$0xf]
        %v6704 = vld [vmem:[%s9 + $0xa8] sm:$0xf]
        %v6705 = vld [vmem:[%s9 + $0xac] sm:$0xf]
        %v6706 = vld [vmem:[%s9 + $0xb0] sm:$0xf]
        %v6707 = vld [vmem:[%s9 + $0xb4] sm:$0xf]
        %v6708 = vld [vmem:[%s9 + $0xb8] sm:$0xf]
        %v6709 = vld [vmem:[%s9 + $0xbc] sm:$0xf]
        %v6710 = vld [vmem:[%s9 + $0xc0] sm:$0xf]
        %v6711 = vld [vmem:[%s9 + $0xc4] sm:$0xf]
        %v6712 = vld [vmem:[%s9 + $0xc8] sm:$0xf]
        %v6713 = vld [vmem:[%s9 + $0xcc] sm:$0xf]
        %v6714 = vld [vmem:[%s9 + $0xd0] sm:$0xf]
        %v6715 = vld [vmem:[%s9 + $0xd4] sm:$0xf]
        %v6716 = vld [vmem:[%s9 + $0xd8] sm:$0xf]
        %v6717 = vld [vmem:[%s9 + $0xdc] sm:$0xf]
        %v6718 = vld [vmem:[%s9 + $0xe0] sm:$0xf]
        %v6719 = vld [vmem:[%s9 + $0xe4] sm:$0xf]
        %v6720 = vld [vmem:[%s9 + $0xe8] sm:$0xf]
        %v6721 = vld [vmem:[%s9 + $0xec] sm:$0xf]
        %v6722 = vld [vmem:[%s9 + $0xf0] sm:$0xf]
        %v6723 = vld [vmem:[%s9 + $0xf4] sm:$0xf]
        %v6724 = vld [vmem:[%s9 + $0xf8] sm:$0xf]
        %v6725 = vld [vmem:[%s9 + $0xfc] sm:$0xf]
        %v6726 = vld [vmem:[%s10] sm:$0x1]
        %v6728 = vperm.slane %v6726, 0
        %v6794 = vunpack.c.l.b16 %v6662
        %v6795 = vunpack.c.l.b16 %v6663
        %v6796 = vunpack.c.l.b16 %v6664
        %v6797 = vunpack.c.l.b16 %v6665
        %v6798 = vunpack.c.l.b16 %v6666
        %v6799 = vunpack.c.l.b16 %v6667
        %v6800 = vunpack.c.l.b16 %v6668
        %v6801 = vunpack.c.l.b16 %v6669
        %v6802 = vunpack.c.l.b16 %v6670
        %v6803 = vunpack.c.l.b16 %v6671
        %v6804 = vunpack.c.l.b16 %v6672
        %v6805 = vunpack.c.l.b16 %v6673
        %v6806 = vunpack.c.l.b16 %v6674
        %v6807 = vunpack.c.l.b16 %v6675
        %v6808 = vunpack.c.l.b16 %v6676
        %v6809 = vunpack.c.l.b16 %v6677
        %v6810 = vunpack.c.l.b16 %v6678
        %v6811 = vunpack.c.l.b16 %v6679
        %v6812 = vunpack.c.l.b16 %v6680
        %v6813 = vunpack.c.l.b16 %v6681
        %v6814 = vunpack.c.l.b16 %v6682
        %v6815 = vunpack.c.l.b16 %v6683
        %v6816 = vunpack.c.l.b16 %v6684
        %v6817 = vunpack.c.l.b16 %v6685
        %v6818 = vunpack.c.l.b16 %v6686
        %v6819 = vunpack.c.l.b16 %v6687
        %v6820 = vunpack.c.l.b16 %v6688
        %v6821 = vunpack.c.l.b16 %v6689
        %v6822 = vunpack.c.l.b16 %v6690
        %v6823 = vunpack.c.l.b16 %v6691
        %v6824 = vunpack.c.l.b16 %v6692
        %v6825 = vunpack.c.l.b16 %v6693
        %v6826 = vunpack.c.l.b16 %v6694
        %v6827 = vunpack.c.l.b16 %v6695
        %v6828 = vunpack.c.l.b16 %v6696
        %v6829 = vunpack.c.l.b16 %v6697
        %v6830 = vunpack.c.l.b16 %v6698
        %v6831 = vunpack.c.l.b16 %v6699
        %v6832 = vunpack.c.l.b16 %v6700
        %v6833 = vunpack.c.l.b16 %v6701
        %v6834 = vunpack.c.l.b16 %v6702
        %v6835 = vunpack.c.l.b16 %v6703
        %v6836 = vunpack.c.l.b16 %v6704
        %v6837 = vunpack.c.l.b16 %v6705
        %v6838 = vunpack.c.l.b16 %v6706
        %v6839 = vunpack.c.l.b16 %v6707
        %v6840 = vunpack.c.l.b16 %v6708
        %v6841 = vunpack.c.l.b16 %v6709
        %v6842 = vunpack.c.l.b16 %v6710
        %v6843 = vunpack.c.l.b16 %v6711
        %v6844 = vunpack.c.l.b16 %v6712
        %v6845 = vunpack.c.l.b16 %v6713
        %v6846 = vunpack.c.l.b16 %v6714
        %v6847 = vunpack.c.l.b16 %v6715
        %v6848 = vunpack.c.l.b16 %v6716
        %v6849 = vunpack.c.l.b16 %v6717
        %v6850 = vunpack.c.l.b16 %v6718
        %v6851 = vunpack.c.l.b16 %v6719
        %v6852 = vunpack.c.l.b16 %v6720
        %v6853 = vunpack.c.l.b16 %v6721
        %v6854 = vunpack.c.l.b16 %v6722
        %v6855 = vunpack.c.l.b16 %v6723
        %v6856 = vunpack.c.l.b16 %v6724
        %v6857 = vunpack.c.l.b16 %v6725
        %v6858 = vpack.c.b16 %v6795, %v6794
        %v6859 = vpack.c.b16 %v6797, %v6796
        %v6860 = vpack.c.b16 %v6799, %v6798
        %v6861 = vpack.c.b16 %v6801, %v6800
        %v6862 = vpack.c.b16 %v6803, %v6802
        %v6863 = vpack.c.b16 %v6805, %v6804
        %v6864 = vpack.c.b16 %v6807, %v6806
        %v6865 = vpack.c.b16 %v6809, %v6808
        %v6866 = vpack.c.b16 %v6811, %v6810
        %v6867 = vpack.c.b16 %v6813, %v6812
        %v6868 = vpack.c.b16 %v6815, %v6814
        %v6869 = vpack.c.b16 %v6817, %v6816
        %v6870 = vpack.c.b16 %v6819, %v6818
        %v6871 = vpack.c.b16 %v6821, %v6820
        %v6872 = vpack.c.b16 %v6823, %v6822
        %v6873 = vpack.c.b16 %v6825, %v6824
        %v6874 = vpack.c.b16 %v6827, %v6826
        %v6875 = vpack.c.b16 %v6829, %v6828
        %v6876 = vpack.c.b16 %v6831, %v6830
        %v6877 = vpack.c.b16 %v6833, %v6832
        %v6878 = vpack.c.b16 %v6835, %v6834
        %v6879 = vpack.c.b16 %v6837, %v6836
        %v6880 = vpack.c.b16 %v6839, %v6838
        %v6881 = vpack.c.b16 %v6841, %v6840
        %v6882 = vpack.c.b16 %v6843, %v6842
        %v6883 = vpack.c.b16 %v6845, %v6844
        %v6884 = vpack.c.b16 %v6847, %v6846
        %v6885 = vpack.c.b16 %v6849, %v6848
        %v6886 = vpack.c.b16 %v6851, %v6850
        %v6887 = vpack.c.b16 %v6853, %v6852
        %v6888 = vpack.c.b16 %v6855, %v6854
        %v6889 = vpack.c.b16 %v6857, %v6856
        %6922 = vmatpush.bf16.msra.mxu0 %v6865
        %6923 = vmatpush.bf16.msra.mxu0 %v6864
        %6924 = vmatpush.bf16.msra.mxu0 %v6863
        %6925 = vmatpush.bf16.msra.mxu0 %v6862
        %6926 = vmatpush.bf16.msra.mxu0 %v6861
        %6927 = vmatpush.bf16.msra.mxu0 %v6860
        %6928 = vmatpush.bf16.msra.mxu0 %v6859
        %6929 = vmatpush.bf16.msra.mxu0 %v6858
        %6930 = vmatmul.bf16.gmra.mxu0 %v6646
        %v6931 = vpop.f32.mrf.mxu0
        %v6932 = vadd.f32 %v6728, %v6931
        %v6933 = vpop.f32.mrf.mxu0
        %v6934 = vadd.f32 %v6728, %v6933
        %6935 = vmatmul.bf16.gmra.mxu0 %v6650
        %v6936 = vpop.f32.mrf.mxu0
        %v6937 = vadd.f32 %v6728, %v6936
        %v6938 = vpop.f32.mrf.mxu0
        %v6939 = vadd.f32 %v6728, %v6938
        %6940 = vmatmul.bf16.gmra.mxu0 %v6654
        %v6941 = vpop.f32.mrf.mxu0
        %v6942 = vadd.f32 %v6728, %v6941
        %v6943 = vpop.f32.mrf.mxu0
        %v6944 = vadd.f32 %v6728, %v6943
        %6945 = vmatmul.bf16.gmra.mxu0 %v6658
        %v6946 = vpop.f32.mrf.mxu0
        %v6947 = vadd.f32 %v6728, %v6946
        %v6948 = vpop.f32.mrf.mxu0
        %v6949 = vadd.f32 %v6728, %v6948
        %6950 = vdwg.mxu0
        %6951 = vmatpush.bf16.msra.mxu0 %v6873
        %6952 = vmatpush.bf16.msra.mxu0 %v6872
        %6953 = vmatpush.bf16.msra.mxu0 %v6871
        %6954 = vmatpush.bf16.msra.mxu0 %v6870
        %6955 = vmatpush.bf16.msra.mxu0 %v6869
        %6956 = vmatpush.bf16.msra.mxu0 %v6868
        %6957 = vmatpush.bf16.msra.mxu0 %v6867
        %6958 = vmatpush.bf16.msra.mxu0 %v6866
        %6959 = vmatmul.bf16.gmra.mxu0 %v6647
        %v6960 = vpop.f32.mrf.mxu0
        %v6961 = vadd.f32 %v6932, %v6960
        %v6962 = vpop.f32.mrf.mxu0
        %v6963 = vadd.f32 %v6934, %v6962
        %6964 = vmatmul.bf16.gmra.mxu0 %v6651
        %v6965 = vpop.f32.mrf.mxu0
        %v6966 = vadd.f32 %v6937, %v6965
        %v6967 = vpop.f32.mrf.mxu0
        %v6968 = vadd.f32 %v6939, %v6967
        %6969 = vmatmul.bf16.gmra.mxu0 %v6655
        %v6970 = vpop.f32.mrf.mxu0
        %v6971 = vadd.f32 %v6942, %v6970
        %v6972 = vpop.f32.mrf.mxu0
        %v6973 = vadd.f32 %v6944, %v6972
        %6974 = vmatmul.bf16.gmra.mxu0 %v6659
        %v6975 = vpop.f32.mrf.mxu0
        %v6976 = vadd.f32 %v6947, %v6975
        %v6977 = vpop.f32.mrf.mxu0
        %v6978 = vadd.f32 %v6949, %v6977
        %6979 = vdwg.mxu0
        %6980 = vmatpush.bf16.msra.mxu0 %v6881
        %6981 = vmatpush.bf16.msra.mxu0 %v6880
        %6982 = vmatpush.bf16.msra.mxu0 %v6879
        %6983 = vmatpush.bf16.msra.mxu0 %v6878
        %6984 = vmatpush.bf16.msra.mxu0 %v6877
        %6985 = vmatpush.bf16.msra.mxu0 %v6876
        %6986 = vmatpush.bf16.msra.mxu0 %v6875
        %6987 = vmatpush.bf16.msra.mxu0 %v6874
        %6988 = vmatmul.bf16.gmra.mxu0 %v6648
        %v6989 = vpop.f32.mrf.mxu0
        %v6990 = vadd.f32 %v6961, %v6989
        %v6991 = vpop.f32.mrf.mxu0
        %v6992 = vadd.f32 %v6963, %v6991
        %6993 = vmatmul.bf16.gmra.mxu0 %v6652
        %v6994 = vpop.f32.mrf.mxu0
        %v6995 = vadd.f32 %v6966, %v6994
        %v6996 = vpop.f32.mrf.mxu0
        %v6997 = vadd.f32 %v6968, %v6996
        %6998 = vmatmul.bf16.gmra.mxu0 %v6656
        %v6999 = vpop.f32.mrf.mxu0
        %v7000 = vadd.f32 %v6971, %v6999
        %v7001 = vpop.f32.mrf.mxu0
        %v7002 = vadd.f32 %v6973, %v7001
        %7003 = vmatmul.bf16.gmra.mxu0 %v6660
        %v7004 = vpop.f32.mrf.mxu0
        %v7005 = vadd.f32 %v6976, %v7004
        %v7006 = vpop.f32.mrf.mxu0
        %v7007 = vadd.f32 %v6978, %v7006
        %7008 = vdwg.mxu0
        %7009 = vmatpush.bf16.msra.mxu0 %v6889
        %7010 = vmatpush.bf16.msra.mxu0 %v6888
        %7011 = vmatpush.bf16.msra.mxu0 %v6887
        %7012 = vmatpush.bf16.msra.mxu0 %v6886
        %7013 = vmatpush.bf16.msra.mxu0 %v6885
        %7014 = vmatpush.bf16.msra.mxu0 %v6884
        %7015 = vmatpush.bf16.msra.mxu0 %v6883
        %7016 = vmatpush.bf16.msra.mxu0 %v6882
        %7017 = vmatmul.bf16.gmra.mxu0 %v6649
        %v7018 = vpop.f32.mrf.mxu0
        %v7019 = vadd.f32 %v6990, %v7018
        %v7020 = vpop.f32.mrf.mxu0
        %v7021 = vadd.f32 %v6992, %v7020
        %7022 = vmatmul.bf16.gmra.mxu0 %v6653
        %v7023 = vpop.f32.mrf.mxu0
        %v7024 = vadd.f32 %v6995, %v7023
        %v7025 = vpop.f32.mrf.mxu0
        %v7026 = vadd.f32 %v6997, %v7025
        %7027 = vmatmul.bf16.gmra.mxu0 %v6657
        %v7028 = vpop.f32.mrf.mxu0
        %v7029 = vadd.f32 %v7000, %v7028
        %v7030 = vpop.f32.mrf.mxu0
        %v7031 = vadd.f32 %v7002, %v7030
        %7032 = vmatmul.bf16.gmra.mxu0 %v6661
        %v7033 = vpop.f32.mrf.mxu0
        %v7034 = vadd.f32 %v7005, %v7033
        %v7035 = vpop.f32.mrf.mxu0
        %v7036 = vadd.f32 %v7007, %v7035
        %7037 = vdwg.mxu0
        %vm7038 = vcmask 130048
        %7039 = vst.msk [vmem:[%s460] sm:$0xff] %vm7038, %v7019
        %7040 = vst.msk [vmem:[%s460 + $0x8] sm:$0xff] %vm7038, %v7021
        %7041 = vst.msk [vmem:[%s460 + $0x10] sm:$0xff] %vm7038, %v7024
        %7042 = vst.msk [vmem:[%s460 + $0x18] sm:$0xff] %vm7038, %v7026
        %7043 = vst.msk [vmem:[%s460 + $0x20] sm:$0xff] %vm7038, %v7029
        %7044 = vst.msk [vmem:[%s460 + $0x28] sm:$0xff] %vm7038, %v7031
        %7045 = vst.msk [vmem:[%s460 + $0x30] sm:$0xff] %vm7038, %v7034
        %7046 = vst.msk [vmem:[%s460 + $0x38] sm:$0xff] %vm7038, %v7036
        %s7047 = smul.u32 8, %s24
        %p7048 = scmp.lt.s32.totalorder %s7047, 15
        %s7049 = scalar_select %p7048, %s7047, 15
        %s7050 = smul.addr %s7049, 8
        %s7051 = scalar_lea.vmem %s11, %s7050
        // Predicated region
        $region77: #{tpu_custom_call.1} parent=63 // pred_check
          %p7052 = pneg %p283
        $region78: #{tpu_custom_call.1} parent=63 // pred_check_branch
          %7054 = sbr.rel (%p7052) target = $region80
        $region79: #{tpu_custom_call.1} parent=63 // pred_region
          %s7055 = smul.u32 8, %s24
        $region80: #{tpu_custom_call.1} parent=63 // pred_fallthru
          _
      $region64: #{tpu_custom_call.1} parent=5 // pred_fallthru
        _
      %p7056 = scmp.le.s32.totalorder 2, %s19
      // Predicated region
      $region81: #{tpu_custom_call.1} parent=5 // pred_check
        %p7057 = pneg %p7056
      $region82: #{tpu_custom_call.1} parent=5 // pred_check_branch
        %7059 = sbr.rel (%p7057) target = $region84
      $region83: #{tpu_custom_call.1} parent=5 // pred_region
        %s7060 = ssub.s32 %s19, 2
        // Predicated region
        $region85: #{tpu_custom_call.1} parent=83 // pred_check
          %p7061 = pneg %p289
        $region86: #{tpu_custom_call.1} parent=83 // pred_check_branch
          %7063 = sbr.rel (%p7061) target = $region88
        $region87: #{tpu_custom_call.1} parent=83 // pred_region
          %s7064 = smul.u32 8, %s25
          %p7065 = scmp.lt.s32.totalorder %s7064, 15
          %s7066 = scalar_select %p7065, %s7064, 15
          %s7067 = smul.addr %s7066, 8
          %s7068 = scalar_lea.vmem %s11, %s7067
        $region88: #{tpu_custom_call.1} parent=83 // pred_fallthru
          _
      $region84: #{tpu_custom_call.1} parent=5 // pred_fallthru
        _
    $region6: #{tpu_custom_call.1} parent=1 // loop_footer
      %s23 = sadd.s32 1, %s19
    $region7: #{tpu_custom_call.1} parent=1 // loop_footer_branch
      %18 = sbr.rel target = $region3
    $region8: #{tpu_custom_call.1} parent=1 // loop_exit
      _
    %7069 = vsyncpa [#allocation3], 1
    %s7070 = scalar_lea.sflag [#allocation3], 1
    %7071 = vsyncpa %s7070, 1
    %7072 = vsyncpa [#allocation5], 1

</llo_original>
